<compile_context>
chip_gen: v7x
topology: tpu7x:2x2x1
jax: 0.10.0
libtpu: 0.0.40
codegen_flags: <defaults>
</compile_context>

<pallas_src>
import jax
import jax.numpy as jnp
from jax.experimental import pallas as pl
from jax.experimental.pallas import tpu as pltpu


# ----------------------------------------------------------------------------
# Kernel 1: hoisted input projection  (one big GEMM over all timesteps)
#   x_flat (M, D)  @  w_ih_g (4, D, H)  +  b_g (4, 1, H)  ->  pg (4, M, H)
# ----------------------------------------------------------------------------
def _pregate_kernel(x_ref, w_ref, b_ref, out_ref):
    x = x_ref[...]                                   # (bm, D)
    for g in range(4):                               # static: gate-major outputs
        out_ref[g] = (
            jnp.dot(x, w_ref[g], preferred_element_type=jnp.float32) + b_ref[g]
        ).astype(out_ref.dtype)


def _pregates(x_flat, w_ih_g, b_g):
    M, D = x_flat.shape
    H = w_ih_g.shape[-1]
    bm = M if M <= 256 else 256                      # row tile (full array if small)
    grid = (pl.cdiv(M, bm),)
    return pl.pallas_call(
        _pregate_kernel,
        out_shape=jax.ShapeDtypeStruct((4, M, H), jnp.float32),
        grid_spec=pltpu.PrefetchScalarGridSpec(
            num_scalar_prefetch=0,
            grid=grid,
            in_specs=[
                pl.BlockSpec((bm, D), lambda m: (m, 0)),        # x rows
                pl.BlockSpec((4, D, H), lambda m: (0, 0, 0)),   # W_ih gate-major (resident)
                pl.BlockSpec((4, 1, H), lambda m: (0, 0, 0)),   # bias gate-major (resident)
            ],
            out_specs=pl.BlockSpec((4, bm, H), lambda m: (0, m, 0)),
        ),
        compiler_params=pltpu.CompilerParams(
            dimension_semantics=("parallel",),
        ),
    )(x_flat, w_ih_g, b_g)


# ----------------------------------------------------------------------------
# Kernel 2: the recurrence.  Grid axis 0 = time chunks (sequential).
#   pg_ref   (4, TC, B, H)  gate-major pre-gates for this chunk (bias included)
#   w_hh_ref (4, H, H)      recurrent weights, gate-major, pre-transposed (resident)
#   out_ref  (TC, B, H)     hidden states for this chunk
#   h_sc/c_sc (B, H)        VMEM scratch carrying state across chunks
# ----------------------------------------------------------------------------
def _lstm_recurrent_kernel(pg_ref, w_hh_ref, out_ref, h_sc, c_sc):
    t = pl.program_id(0)

    @pl.when(t == 0)
    def _():
        h_sc[...] = jnp.zeros_like(h_sc)
        c_sc[...] = jnp.zeros_like(c_sc)

    # Hoist resident recurrent weights out of the step loop.
    w_i = w_hh_ref[0]
    w_f = w_hh_ref[1]
    w_g = w_hh_ref[2]
    w_o = w_hh_ref[3]

    h = h_sc[...]
    c = c_sc[...]
    TC = out_ref.shape[0]

    # Fully-unrolled inner time loop (static trip count, small TC).
    for s in range(TC):
        zi = pg_ref[0, s] + jnp.dot(h, w_i, preferred_element_type=jnp.float32)
        zf = pg_ref[1, s] + jnp.dot(h, w_f, preferred_element_type=jnp.float32)
        zg = pg_ref[2, s] + jnp.dot(h, w_g, preferred_element_type=jnp.float32)
        zo = pg_ref[3, s] + jnp.dot(h, w_o, preferred_element_type=jnp.float32)

        i = jax.nn.sigmoid(zi)
        f = jax.nn.sigmoid(zf)
        g = jnp.tanh(zg)
        o = jax.nn.sigmoid(zo)

        c = f * c + i * g
        h = o * jnp.tanh(c)
        out_ref[s] = h.astype(out_ref.dtype)   # VMEM write; DMA to HBM once per chunk

    h_sc[...] = h
    c_sc[...] = c


def _pick_time_chunk(T, max_chunk=32):
    tc = min(T, max_chunk)
    while T % tc != 0:
        tc -= 1
    return tc


def lstm_layer_pallas(x_tbd, w_ih, w_hh, b_ih, b_hh, *, max_time_chunk=32):
    """One LSTM layer over a full sequence.

    x_tbd: (T, B, D) float32 time-major input
    w_ih:  (4H, D), w_hh: (4H, H), b_ih/b_hh: (4H,)   (PyTorch layout, gates i,f,g,o)
    returns (T, B, H) float32
    """
    T, B, D = x_tbd.shape
    H = w_hh.shape[1]

    # Gate-major, pre-transposed weights / combined bias.
    w_ih_g = jnp.transpose(jnp.asarray(w_ih, jnp.float32).reshape(4, H, D), (0, 2, 1))  # (4, D, H)
    w_hh_g = jnp.transpose(jnp.asarray(w_hh, jnp.float32).reshape(4, H, H), (0, 2, 1))  # (4, H, H)
    b_g = (jnp.asarray(b_ih, jnp.float32) + jnp.asarray(b_hh, jnp.float32)).reshape(4, 1, H)

    # 1) Hoisted input projection: one batched GEMM over all T*B rows.
    pg = _pregates(x_tbd.reshape(T * B, D), w_ih_g, b_g)      # (4, T*B, H)
    pg = pg.reshape(4, T, B, H)

    # 2) Recurrence over time chunks.
    TC = _pick_time_chunk(T, max_time_chunk)
    grid = (T // TC,)

    return pl.pallas_call(
        _lstm_recurrent_kernel,
        out_shape=jax.ShapeDtypeStruct((T, B, H), jnp.float32),
        grid_spec=pltpu.PrefetchScalarGridSpec(
            num_scalar_prefetch=0,
            grid=grid,
            in_specs=[
                pl.BlockSpec((4, TC, B, H), lambda t: (0, t, 0, 0)),  # pre-gate chunk
                pl.BlockSpec((4, H, H), lambda t: (0, 0, 0)),         # W_hh (resident)
            ],
            out_specs=pl.BlockSpec((TC, B, H), lambda t: (t, 0, 0)),
            scratch_shapes=[
                pltpu.VMEM((B, H), jnp.float32),   # h carry
                pltpu.VMEM((B, H), jnp.float32),   # c carry
            ],
        ),
        compiler_params=pltpu.CompilerParams(
            dimension_semantics=("arbitrary",),    # time recurrence is sequential
        ),
    )(pg, w_hh_g)


def custom_sentence_encoder_forward(token_ids, params):
    """Equivalent of CustomSentenceEncoder.forward.

    token_ids: (B, T) int32 indices
    params: dict with 'emb' (V, word_dim) and per-layer LSTM weights
    returns (B, T, hidden) float32  (matches nn.LSTM(batch_first=True) `out`)
    """
    # Embedding lookup (glue). Gather with transposed ids -> time-major directly.
    x_tbd = jnp.take(params["emb"], token_ids.T, axis=0).astype(jnp.float32)  # (T, B, D)

    h = x_tbd
    for layer in params["lstm_layers"]:
        h = lstm_layer_pallas(h, layer["w_ih"], layer["w_hh"],
                              layer["b_ih"], layer["b_hh"])                   # (T, B, H)

    return jnp.transpose(h, (1, 0, 2))  # single transpose at the very end


# ---------------- pure-JAX reference (for correctness check) ----------------

def _lstm_layer_ref(x_tbd, w_ih, w_hh, b_ih, b_hh):
    T, B, D = x_tbd.shape
    H = w_hh.shape[1]
    w_ih_t, w_hh_t = w_ih.T, w_hh.T
    b = b_ih + b_hh

    def step(carry, xt):
        h, c = carry
        gates = xt @ w_ih_t + h @ w_hh_t + b
        i = jax.nn.sigmoid(gates[:, 0 * H:1 * H])
        f = jax.nn.sigmoid(gates[:, 1 * H:2 * H])
        g = jnp.tanh(gates[:, 2 * H:3 * H])
        o = jax.nn.sigmoid(gates[:, 3 * H:4 * H])
        c = f * c + i * g
        h = o * jnp.tanh(c)
        return (h, c), h

    init = (jnp.zeros((B, H), jnp.float32), jnp.zeros((B, H), jnp.float32))
    _, ys = jax.lax.scan(step, init, x_tbd)
    return ys


def encoder_ref(token_ids, params):
    x = jnp.take(params["emb"], token_ids, axis=0)
    h = jnp.transpose(x, (1, 0, 2)).astype(jnp.float32)
    for layer in params["lstm_layers"]:
        h = _lstm_layer_ref(h, layer["w_ih"], layer["w_hh"],
                            layer["b_ih"], layer["b_hh"])
    return jnp.transpose(h, (1, 0, 2))


# ---------------- deterministic parameter init + demo ----------------

def init_params(key, vocab, word_dim, hidden, num_layer):
    keys = jax.random.split(key, 1 + 4 * num_layer)
    emb = jax.random.normal(keys[0], (vocab, word_dim), jnp.float32) * 0.1
    k = 1.0 / jnp.sqrt(hidden)
    layers = []
    for l in range(num_layer):
        in_dim = word_dim if l == 0 else hidden
        kw = keys[1 + 4 * l: 1 + 4 * (l + 1)]
        layers.append(dict(
            w_ih=jax.random.uniform(kw[0], (4 * hidden, in_dim), jnp.float32, -k, k),
            w_hh=jax.random.uniform(kw[1], (4 * hidden, hidden), jnp.float32, -k, k),
            b_ih=jax.random.uniform(kw[2], (4 * hidden,), jnp.float32, -k, k),
            b_hh=jax.random.uniform(kw[3], (4 * hidden,), jnp.float32, -k, k),
        ))
    return {"emb": emb, "lstm_layers": layers}


if __name__ == "__main__":
    B, T = 2, 8
    vocab, word_dim, hidden, num_layer = 50, 32, 32, 2

    key = jax.random.PRNGKey(0)
    k_param, k_tok = jax.random.split(key)
    params = init_params(k_param, vocab, word_dim, hidden, num_layer)
    token_ids = jax.random.randint(k_tok, (B, T), 0, vocab, dtype=jnp.int32)

    fwd = jax.jit(custom_sentence_encoder_forward)
    out = jax.block_until_ready(fwd(token_ids, params))

    ref = jax.block_until_ready(encoder_ref(token_ids, params))
    assert out.shape == (B, T, hidden)
    assert jnp.allclose(out, ref, atol=1e-4, rtol=1e-4), "mismatch vs reference"

    print("KERNEL_OK")
</pallas_src>

<mosaic_0001>
module attributes {stable_mosaic.version = 11 : i64} {
  func.func @_pregate_kernel(%arg0: i32, %arg1: memref<16x32xf32, #tpu.memory_space<vmem>>, %arg2: memref<4x32x32xf32, #tpu.memory_space<vmem>>, %arg3: memref<4x1x32xf32, #tpu.memory_space<vmem>>, %arg4: memref<4x16x32xf32, #tpu.memory_space<vmem>>) attributes {dimension_semantics = [#tpu.dimension_semantics<parallel>], iteration_bounds = array<i64: 1>, scalar_prefetch = 0 : i64, scratch_operands = 0 : i64, tpu.core_type = #tpu.core_type<tc>, window_params = [{transform_indices = @transform_0, window_bounds = array<i64: 16, 32>}, {pipeline_mode = #tpu.pipeline_mode<synchronous>, transform_indices = @transform_1, window_bounds = array<i64: 4, 32, 32>}, {pipeline_mode = #tpu.pipeline_mode<synchronous>, transform_indices = @transform_2, window_bounds = array<i64: 4, 1, 32>}, {transform_indices = @transform_3, window_bounds = array<i64: 4, 16, 32>}]} {
    %c0 = arith.constant 0 : index
    %c0_0 = arith.constant 0 : index
    %0 = vector.load %arg1[%c0, %c0_0] : memref<16x32xf32, #tpu.memory_space<vmem>>, vector<16x32xf32>
    %c0_1 = arith.constant 0 : index
    %c0_2 = arith.constant 0 : index
    %c0_3 = arith.constant 0 : index
    %1 = vector.load %arg2[%c0_1, %c0_2, %c0_3] : memref<4x32x32xf32, #tpu.memory_space<vmem>>, vector<1x32x32xf32>
    %2 = vector.shape_cast %1 : vector<1x32x32xf32> to vector<32x32xf32>
    %cst = arith.constant dense<0.000000e+00> : vector<16x32xf32>
    %3 = tpu.matmul %0, %2, %cst {dimension_numbers = #tpu.dot_dimension_numbers<[1], [0], [0], [1], [0, 0, 1, 1], [], []>} : vector<16x32xf32>, vector<32x32xf32>, vector<16x32xf32> -> vector<16x32xf32>
    %c0_4 = arith.constant 0 : index
    %c0_5 = arith.constant 0 : index
    %c0_6 = arith.constant 0 : index
    %4 = vector.load %arg3[%c0_4, %c0_5, %c0_6] : memref<4x1x32xf32, #tpu.memory_space<vmem>>, vector<1x1x32xf32>
    %5 = vector.shape_cast %4 : vector<1x1x32xf32> to vector<1x32xf32>
    %6 = vector.broadcast %5 : vector<1x32xf32> to vector<16x32xf32>
    %7 = arith.addf %3, %6 : vector<16x32xf32>
    %c0_7 = arith.constant 0 : index
    %c0_8 = arith.constant 0 : index
    %c0_9 = arith.constant 0 : index
    %8 = vector.load %arg4[%c0_7, %c0_8, %c0_9] : memref<4x16x32xf32, #tpu.memory_space<vmem>>, vector<1x16x32xf32>
    %9 = vector.shape_cast %8 : vector<1x16x32xf32> to vector<16x32xf32>
    %10 = vector.shape_cast %7 : vector<16x32xf32> to vector<1x16x32xf32>
    tpu.vector_store %arg4[%c0_7, %c0_8, %c0_9], %10 {strides = array<i32>} : memref<4x16x32xf32, #tpu.memory_space<vmem>>, vector<1x16x32xf32>,
    %c1 = arith.constant 1 : index
    %c0_10 = arith.constant 0 : index
    %c0_11 = arith.constant 0 : index
    %11 = vector.load %arg2[%c1, %c0_10, %c0_11] : memref<4x32x32xf32, #tpu.memory_space<vmem>>, vector<1x32x32xf32>
    %12 = vector.shape_cast %11 : vector<1x32x32xf32> to vector<32x32xf32>
    %cst_12 = arith.constant dense<0.000000e+00> : vector<16x32xf32>
    %13 = tpu.matmul %0, %12, %cst_12 {dimension_numbers = #tpu.dot_dimension_numbers<[1], [0], [0], [1], [0, 0, 1, 1], [], []>} : vector<16x32xf32>, vector<32x32xf32>, vector<16x32xf32> -> vector<16x32xf32>
    %c1_13 = arith.constant 1 : index
    %c0_14 = arith.constant 0 : index
    %c0_15 = arith.constant 0 : index
    %14 = vector.load %arg3[%c1_13, %c0_14, %c0_15] : memref<4x1x32xf32, #tpu.memory_space<vmem>>, vector<1x1x32xf32>
    %15 = vector.shape_cast %14 : vector<1x1x32xf32> to vector<1x32xf32>
    %16 = vector.broadcast %15 : vector<1x32xf32> to vector<16x32xf32>
    %17 = arith.addf %13, %16 : vector<16x32xf32>
    %c1_16 = arith.constant 1 : index
    %c0_17 = arith.constant 0 : index
    %c0_18 = arith.constant 0 : index
    %18 = vector.load %arg4[%c1_16, %c0_17, %c0_18] : memref<4x16x32xf32, #tpu.memory_space<vmem>>, vector<1x16x32xf32>
    %19 = vector.shape_cast %18 : vector<1x16x32xf32> to vector<16x32xf32>
    %20 = vector.shape_cast %17 : vector<16x32xf32> to vector<1x16x32xf32>
    tpu.vector_store %arg4[%c1_16, %c0_17, %c0_18], %20 {strides = array<i32>} : memref<4x16x32xf32, #tpu.memory_space<vmem>>, vector<1x16x32xf32>,
    %c2 = arith.constant 2 : index
    %c0_19 = arith.constant 0 : index
    %c0_20 = arith.constant 0 : index
    %21 = vector.load %arg2[%c2, %c0_19, %c0_20] : memref<4x32x32xf32, #tpu.memory_space<vmem>>, vector<1x32x32xf32>
    %22 = vector.shape_cast %21 : vector<1x32x32xf32> to vector<32x32xf32>
    %cst_21 = arith.constant dense<0.000000e+00> : vector<16x32xf32>
    %23 = tpu.matmul %0, %22, %cst_21 {dimension_numbers = #tpu.dot_dimension_numbers<[1], [0], [0], [1], [0, 0, 1, 1], [], []>} : vector<16x32xf32>, vector<32x32xf32>, vector<16x32xf32> -> vector<16x32xf32>
    %c2_22 = arith.constant 2 : index
    %c0_23 = arith.constant 0 : index
    %c0_24 = arith.constant 0 : index
    %24 = vector.load %arg3[%c2_22, %c0_23, %c0_24] : memref<4x1x32xf32, #tpu.memory_space<vmem>>, vector<1x1x32xf32>
    %25 = vector.shape_cast %24 : vector<1x1x32xf32> to vector<1x32xf32>
    %26 = vector.broadcast %25 : vector<1x32xf32> to vector<16x32xf32>
    %27 = arith.addf %23, %26 : vector<16x32xf32>
    %c2_25 = arith.constant 2 : index
    %c0_26 = arith.constant 0 : index
    %c0_27 = arith.constant 0 : index
    %28 = vector.load %arg4[%c2_25, %c0_26, %c0_27] : memref<4x16x32xf32, #tpu.memory_space<vmem>>, vector<1x16x32xf32>
    %29 = vector.shape_cast %28 : vector<1x16x32xf32> to vector<16x32xf32>
    %30 = vector.shape_cast %27 : vector<16x32xf32> to vector<1x16x32xf32>
    tpu.vector_store %arg4[%c2_25, %c0_26, %c0_27], %30 {strides = array<i32>} : memref<4x16x32xf32, #tpu.memory_space<vmem>>, vector<1x16x32xf32>,
    %c3 = arith.constant 3 : index
    %c0_28 = arith.constant 0 : index
    %c0_29 = arith.constant 0 : index
    %31 = vector.load %arg2[%c3, %c0_28, %c0_29] : memref<4x32x32xf32, #tpu.memory_space<vmem>>, vector<1x32x32xf32>
    %32 = vector.shape_cast %31 : vector<1x32x32xf32> to vector<32x32xf32>
    %cst_30 = arith.constant dense<0.000000e+00> : vector<16x32xf32>
    %33 = tpu.matmul %0, %32, %cst_30 {dimension_numbers = #tpu.dot_dimension_numbers<[1], [0], [0], [1], [0, 0, 1, 1], [], []>} : vector<16x32xf32>, vector<32x32xf32>, vector<16x32xf32> -> vector<16x32xf32>
    %c3_31 = arith.constant 3 : index
    %c0_32 = arith.constant 0 : index
    %c0_33 = arith.constant 0 : index
    %34 = vector.load %arg3[%c3_31, %c0_32, %c0_33] : memref<4x1x32xf32, #tpu.memory_space<vmem>>, vector<1x1x32xf32>
    %35 = vector.shape_cast %34 : vector<1x1x32xf32> to vector<1x32xf32>
    %36 = vector.broadcast %35 : vector<1x32xf32> to vector<16x32xf32>
    %37 = arith.addf %33, %36 : vector<16x32xf32>
    %c3_34 = arith.constant 3 : index
    %c0_35 = arith.constant 0 : index
    %c0_36 = arith.constant 0 : index
    %38 = vector.load %arg4[%c3_34, %c0_35, %c0_36] : memref<4x16x32xf32, #tpu.memory_space<vmem>>, vector<1x16x32xf32>
    %39 = vector.shape_cast %38 : vector<1x16x32xf32> to vector<16x32xf32>
    %40 = vector.shape_cast %37 : vector<16x32xf32> to vector<1x16x32xf32>
    tpu.vector_store %arg4[%c3_34, %c0_35, %c0_36], %40 {strides = array<i32>} : memref<4x16x32xf32, #tpu.memory_space<vmem>>, vector<1x16x32xf32>,
    return
  }
  func.func @transform_0(%arg0: i32) -> (i32, i32) {
    %c0_i32 = arith.constant 0 : i32
    %c0_i32_0 = arith.constant 0 : i32
    return %arg0, %c0_i32 : i32, i32
  }
  func.func @transform_1(%arg0: i32) -> (i32, i32, i32) {
    %c0_i32 = arith.constant 0 : i32
    %c0_i32_0 = arith.constant 0 : i32
    %c0_i32_1 = arith.constant 0 : i32
    %c0_i32_2 = arith.constant 0 : i32
    return %c0_i32, %c0_i32_0, %c0_i32_1 : i32, i32, i32
  }
  func.func @transform_2(%arg0: i32) -> (i32, i32, i32) {
    %c0_i32 = arith.constant 0 : i32
    %c0_i32_0 = arith.constant 0 : i32
    %c0_i32_1 = arith.constant 0 : i32
    %c0_i32_2 = arith.constant 0 : i32
    return %c0_i32, %c0_i32_0, %c0_i32_1 : i32, i32, i32
  }
  func.func @transform_3(%arg0: i32) -> (i32, i32, i32) {
    %c0_i32 = arith.constant 0 : i32
    %c0_i32_0 = arith.constant 0 : i32
    %c0_i32_1 = arith.constant 0 : i32
    return %c0_i32, %arg0, %c0_i32_0 : i32, i32, i32
  }
}

module attributes {stable_mosaic.version = 11 : i64} {
  func.func @_lstm_recurrent_kernel(%arg0: i32, %arg1: memref<4x8x2x32xf32, #tpu.memory_space<vmem>>, %arg2: memref<4x32x32xf32, #tpu.memory_space<vmem>>, %arg3: memref<8x2x32xf32, #tpu.memory_space<vmem>>, %arg4: memref<2x32xf32, #tpu.memory_space<vmem>>, %arg5: memref<2x32xf32, #tpu.memory_space<vmem>>) attributes {dimension_semantics = [#tpu.dimension_semantics<arbitrary>], iteration_bounds = array<i64: 1>, scalar_prefetch = 0 : i64, scratch_operands = 2 : i64, tpu.core_type = #tpu.core_type<tc>, window_params = [{transform_indices = @transform_0, window_bounds = array<i64: 4, 8, 2, 32>}, {pipeline_mode = #tpu.pipeline_mode<synchronous>, transform_indices = @transform_1, window_bounds = array<i64: 4, 32, 32>}, {transform_indices = @transform_2, window_bounds = array<i64: 8, 2, 32>}]} {
    %c0_i32 = arith.constant 0 : i32
    %0 = arith.cmpi eq, %arg0, %c0_i32 : i32
    %1 = arith.extui %0 : i1 to i32
    %c0_i32_0 = arith.constant 0 : i32
    %2 = arith.cmpi ne, %1, %c0_i32_0 : i32
    scf.if %2 {
      %cst_220 = arith.constant 0.000000e+00 : f32
      %335 = vector.broadcast %cst_220 : f32 to vector<2x32xf32>
      %c0_221 = arith.constant 0 : index
      %c0_222 = arith.constant 0 : index
      %336 = vector.load %arg4[%c0_221, %c0_222] : memref<2x32xf32, #tpu.memory_space<vmem>>, vector<2x32xf32>
      tpu.vector_store %arg4[%c0_221, %c0_222], %335 {strides = array<i32>} : memref<2x32xf32, #tpu.memory_space<vmem>>, vector<2x32xf32>,
      %cst_223 = arith.constant 0.000000e+00 : f32
      %337 = vector.broadcast %cst_223 : f32 to vector<2x32xf32>
      %c0_224 = arith.constant 0 : index
      %c0_225 = arith.constant 0 : index
      %338 = vector.load %arg5[%c0_224, %c0_225] : memref<2x32xf32, #tpu.memory_space<vmem>>, vector<2x32xf32>
      tpu.vector_store %arg5[%c0_224, %c0_225], %337 {strides = array<i32>} : memref<2x32xf32, #tpu.memory_space<vmem>>, vector<2x32xf32>,
    } else {
    }
    %c0 = arith.constant 0 : index
    %c0_1 = arith.constant 0 : index
    %c0_2 = arith.constant 0 : index
    %3 = vector.load %arg2[%c0, %c0_1, %c0_2] : memref<4x32x32xf32, #tpu.memory_space<vmem>>, vector<1x32x32xf32>
    %4 = vector.shape_cast %3 : vector<1x32x32xf32> to vector<32x32xf32>
    %c1 = arith.constant 1 : index
    %c0_3 = arith.constant 0 : index
    %c0_4 = arith.constant 0 : index
    %5 = vector.load %arg2[%c1, %c0_3, %c0_4] : memref<4x32x32xf32, #tpu.memory_space<vmem>>, vector<1x32x32xf32>
    %6 = vector.shape_cast %5 : vector<1x32x32xf32> to vector<32x32xf32>
    %c2 = arith.constant 2 : index
    %c0_5 = arith.constant 0 : index
    %c0_6 = arith.constant 0 : index
    %7 = vector.load %arg2[%c2, %c0_5, %c0_6] : memref<4x32x32xf32, #tpu.memory_space<vmem>>, vector<1x32x32xf32>
    %8 = vector.shape_cast %7 : vector<1x32x32xf32> to vector<32x32xf32>
    %c3 = arith.constant 3 : index
    %c0_7 = arith.constant 0 : index
    %c0_8 = arith.constant 0 : index
    %9 = vector.load %arg2[%c3, %c0_7, %c0_8] : memref<4x32x32xf32, #tpu.memory_space<vmem>>, vector<1x32x32xf32>
    %10 = vector.shape_cast %9 : vector<1x32x32xf32> to vector<32x32xf32>
    %c0_9 = arith.constant 0 : index
    %c0_10 = arith.constant 0 : index
    %11 = vector.load %arg4[%c0_9, %c0_10] : memref<2x32xf32, #tpu.memory_space<vmem>>, vector<2x32xf32>
    %c0_11 = arith.constant 0 : index
    %c0_12 = arith.constant 0 : index
    %12 = vector.load %arg5[%c0_11, %c0_12] : memref<2x32xf32, #tpu.memory_space<vmem>>, vector<2x32xf32>
    %c0_13 = arith.constant 0 : index
    %c0_14 = arith.constant 0 : index
    %c0_15 = arith.constant 0 : index
    %c0_16 = arith.constant 0 : index
    %13 = vector.load %arg1[%c0_13, %c0_14, %c0_15, %c0_16] : memref<4x8x2x32xf32, #tpu.memory_space<vmem>>, vector<1x1x2x32xf32>
    %14 = vector.shape_cast %13 : vector<1x1x2x32xf32> to vector<2x32xf32>
    %cst = arith.constant dense<0.000000e+00> : vector<2x32xf32>
    %15 = tpu.matmul %11, %4, %cst {dimension_numbers = #tpu.dot_dimension_numbers<[1], [0], [0], [1], [0, 0, 1, 1], [], []>} : vector<2x32xf32>, vector<32x32xf32>, vector<2x32xf32> -> vector<2x32xf32>
    %16 = arith.addf %14, %15 : vector<2x32xf32>
    %c1_17 = arith.constant 1 : index
    %c0_18 = arith.constant 0 : index
    %c0_19 = arith.constant 0 : index
    %c0_20 = arith.constant 0 : index
    %17 = vector.load %arg1[%c1_17, %c0_18, %c0_19, %c0_20] : memref<4x8x2x32xf32, #tpu.memory_space<vmem>>, vector<1x1x2x32xf32>
    %18 = vector.shape_cast %17 : vector<1x1x2x32xf32> to vector<2x32xf32>
    %cst_21 = arith.constant dense<0.000000e+00> : vector<2x32xf32>
    %19 = tpu.matmul %11, %6, %cst_21 {dimension_numbers = #tpu.dot_dimension_numbers<[1], [0], [0], [1], [0, 0, 1, 1], [], []>} : vector<2x32xf32>, vector<32x32xf32>, vector<2x32xf32> -> vector<2x32xf32>
    %20 = arith.addf %18, %19 : vector<2x32xf32>
    %c2_22 = arith.constant 2 : index
    %c0_23 = arith.constant 0 : index
    %c0_24 = arith.constant 0 : index
    %c0_25 = arith.constant 0 : index
    %21 = vector.load %arg1[%c2_22, %c0_23, %c0_24, %c0_25] : memref<4x8x2x32xf32, #tpu.memory_space<vmem>>, vector<1x1x2x32xf32>
    %22 = vector.shape_cast %21 : vector<1x1x2x32xf32> to vector<2x32xf32>
    %cst_26 = arith.constant dense<0.000000e+00> : vector<2x32xf32>
    %23 = tpu.matmul %11, %8, %cst_26 {dimension_numbers = #tpu.dot_dimension_numbers<[1], [0], [0], [1], [0, 0, 1, 1], [], []>} : vector<2x32xf32>, vector<32x32xf32>, vector<2x32xf32> -> vector<2x32xf32>
    %24 = arith.addf %22, %23 : vector<2x32xf32>
    %c3_27 = arith.constant 3 : index
    %c0_28 = arith.constant 0 : index
    %c0_29 = arith.constant 0 : index
    %c0_30 = arith.constant 0 : index
    %25 = vector.load %arg1[%c3_27, %c0_28, %c0_29, %c0_30] : memref<4x8x2x32xf32, #tpu.memory_space<vmem>>, vector<1x1x2x32xf32>
    %26 = vector.shape_cast %25 : vector<1x1x2x32xf32> to vector<2x32xf32>
    %cst_31 = arith.constant dense<0.000000e+00> : vector<2x32xf32>
    %27 = tpu.matmul %11, %10, %cst_31 {dimension_numbers = #tpu.dot_dimension_numbers<[1], [0], [0], [1], [0, 0, 1, 1], [], []>} : vector<2x32xf32>, vector<32x32xf32>, vector<2x32xf32> -> vector<2x32xf32>
    %28 = arith.addf %26, %27 : vector<2x32xf32>
    %29 = arith.negf %16 : vector<2x32xf32>
    %30 = math.exp %29 : vector<2x32xf32>
    %cst_32 = arith.constant 1.000000e+00 : f32
    %31 = vector.broadcast %cst_32 : f32 to vector<2x32xf32>
    %32 = arith.addf %31, %30 : vector<2x32xf32>
    %33 = arith.divf %31, %32 : vector<2x32xf32>
    %34 = arith.negf %20 : vector<2x32xf32>
    %35 = math.exp %34 : vector<2x32xf32>
    %cst_33 = arith.constant 1.000000e+00 : f32
    %36 = vector.broadcast %cst_33 : f32 to vector<2x32xf32>
    %37 = arith.addf %36, %35 : vector<2x32xf32>
    %38 = arith.divf %36, %37 : vector<2x32xf32>
    %39 = math.tanh %24 : vector<2x32xf32>
    %40 = arith.negf %28 : vector<2x32xf32>
    %41 = math.exp %40 : vector<2x32xf32>
    %cst_34 = arith.constant 1.000000e+00 : f32
    %42 = vector.broadcast %cst_34 : f32 to vector<2x32xf32>
    %43 = arith.addf %42, %41 : vector<2x32xf32>
    %44 = arith.divf %42, %43 : vector<2x32xf32>
    %45 = arith.mulf %38, %12 : vector<2x32xf32>
    %46 = arith.mulf %33, %39 : vector<2x32xf32>
    %47 = arith.addf %45, %46 : vector<2x32xf32>
    %48 = math.tanh %47 : vector<2x32xf32>
    %49 = arith.mulf %44, %48 : vector<2x32xf32>
    %c0_35 = arith.constant 0 : index
    %c0_36 = arith.constant 0 : index
    %c0_37 = arith.constant 0 : index
    %50 = vector.load %arg3[%c0_35, %c0_36, %c0_37] : memref<8x2x32xf32, #tpu.memory_space<vmem>>, vector<1x2x32xf32>
    %51 = vector.shape_cast %50 : vector<1x2x32xf32> to vector<2x32xf32>
    %52 = vector.shape_cast %49 : vector<2x32xf32> to vector<1x2x32xf32>
    tpu.vector_store %arg3[%c0_35, %c0_36, %c0_37], %52 {strides = array<i32>} : memref<8x2x32xf32, #tpu.memory_space<vmem>>, vector<1x2x32xf32>,
    %c0_38 = arith.constant 0 : index
    %c1_39 = arith.constant 1 : index
    %c0_40 = arith.constant 0 : index
    %c0_41 = arith.constant 0 : index
    %53 = vector.load %arg1[%c0_38, %c1_39, %c0_40, %c0_41] : memref<4x8x2x32xf32, #tpu.memory_space<vmem>>, vector<1x1x2x32xf32>
    %54 = vector.shape_cast %53 : vector<1x1x2x32xf32> to vector<2x32xf32>
    %cst_42 = arith.constant dense<0.000000e+00> : vector<2x32xf32>
    %55 = tpu.matmul %49, %4, %cst_42 {dimension_numbers = #tpu.dot_dimension_numbers<[1], [0], [0], [1], [0, 0, 1, 1], [], []>} : vector<2x32xf32>, vector<32x32xf32>, vector<2x32xf32> -> vector<2x32xf32>
    %56 = arith.addf %54, %55 : vector<2x32xf32>
    %c1_43 = arith.constant 1 : index
    %c1_44 = arith.constant 1 : index
    %c0_45 = arith.constant 0 : index
    %c0_46 = arith.constant 0 : index
    %57 = vector.load %arg1[%c1_43, %c1_44, %c0_45, %c0_46] : memref<4x8x2x32xf32, #tpu.memory_space<vmem>>, vector<1x1x2x32xf32>
    %58 = vector.shape_cast %57 : vector<1x1x2x32xf32> to vector<2x32xf32>
    %cst_47 = arith.constant dense<0.000000e+00> : vector<2x32xf32>
    %59 = tpu.matmul %49, %6, %cst_47 {dimension_numbers = #tpu.dot_dimension_numbers<[1], [0], [0], [1], [0, 0, 1, 1], [], []>} : vector<2x32xf32>, vector<32x32xf32>, vector<2x32xf32> -> vector<2x32xf32>
    %60 = arith.addf %58, %59 : vector<2x32xf32>
    %c2_48 = arith.constant 2 : index
    %c1_49 = arith.constant 1 : index
    %c0_50 = arith.constant 0 : index
    %c0_51 = arith.constant 0 : index
    %61 = vector.load %arg1[%c2_48, %c1_49, %c0_50, %c0_51] : memref<4x8x2x32xf32, #tpu.memory_space<vmem>>, vector<1x1x2x32xf32>
    %62 = vector.shape_cast %61 : vector<1x1x2x32xf32> to vector<2x32xf32>
    %cst_52 = arith.constant dense<0.000000e+00> : vector<2x32xf32>
    %63 = tpu.matmul %49, %8, %cst_52 {dimension_numbers = #tpu.dot_dimension_numbers<[1], [0], [0], [1], [0, 0, 1, 1], [], []>} : vector<2x32xf32>, vector<32x32xf32>, vector<2x32xf32> -> vector<2x32xf32>
    %64 = arith.addf %62, %63 : vector<2x32xf32>
    %c3_53 = arith.constant 3 : index
    %c1_54 = arith.constant 1 : index
    %c0_55 = arith.constant 0 : index
    %c0_56 = arith.constant 0 : index
    %65 = vector.load %arg1[%c3_53, %c1_54, %c0_55, %c0_56] : memref<4x8x2x32xf32, #tpu.memory_space<vmem>>, vector<1x1x2x32xf32>
    %66 = vector.shape_cast %65 : vector<1x1x2x32xf32> to vector<2x32xf32>
    %cst_57 = arith.constant dense<0.000000e+00> : vector<2x32xf32>
    %67 = tpu.matmul %49, %10, %cst_57 {dimension_numbers = #tpu.dot_dimension_numbers<[1], [0], [0], [1], [0, 0, 1, 1], [], []>} : vector<2x32xf32>, vector<32x32xf32>, vector<2x32xf32> -> vector<2x32xf32>
    %68 = arith.addf %66, %67 : vector<2x32xf32>
    %69 = arith.negf %56 : vector<2x32xf32>
    %70 = math.exp %69 : vector<2x32xf32>
    %cst_58 = arith.constant 1.000000e+00 : f32
    %71 = vector.broadcast %cst_58 : f32 to vector<2x32xf32>
    %72 = arith.addf %71, %70 : vector<2x32xf32>
    %73 = arith.divf %71, %72 : vector<2x32xf32>
    %74 = arith.negf %60 : vector<2x32xf32>
    %75 = math.exp %74 : vector<2x32xf32>
    %cst_59 = arith.constant 1.000000e+00 : f32
    %76 = vector.broadcast %cst_59 : f32 to vector<2x32xf32>
    %77 = arith.addf %76, %75 : vector<2x32xf32>
    %78 = arith.divf %76, %77 : vector<2x32xf32>
    %79 = math.tanh %64 : vector<2x32xf32>
    %80 = arith.negf %68 : vector<2x32xf32>
    %81 = math.exp %80 : vector<2x32xf32>
    %cst_60 = arith.constant 1.000000e+00 : f32
    %82 = vector.broadcast %cst_60 : f32 to vector<2x32xf32>
    %83 = arith.addf %82, %81 : vector<2x32xf32>
    %84 = arith.divf %82, %83 : vector<2x32xf32>
    %85 = arith.mulf %78, %47 : vector<2x32xf32>
    %86 = arith.mulf %73, %79 : vector<2x32xf32>
    %87 = arith.addf %85, %86 : vector<2x32xf32>
    %88 = math.tanh %87 : vector<2x32xf32>
    %89 = arith.mulf %84, %88 : vector<2x32xf32>
    %c1_61 = arith.constant 1 : index
    %c0_62 = arith.constant 0 : index
    %c0_63 = arith.constant 0 : index
    %90 = vector.load %arg3[%c1_61, %c0_62, %c0_63] : memref<8x2x32xf32, #tpu.memory_space<vmem>>, vector<1x2x32xf32>
    %91 = vector.shape_cast %90 : vector<1x2x32xf32> to vector<2x32xf32>
    %92 = vector.shape_cast %89 : vector<2x32xf32> to vector<1x2x32xf32>
    tpu.vector_store %arg3[%c1_61, %c0_62, %c0_63], %92 {strides = array<i32>} : memref<8x2x32xf32, #tpu.memory_space<vmem>>, vector<1x2x32xf32>,
    %c0_64 = arith.constant 0 : index
    %c2_65 = arith.constant 2 : index
    %c0_66 = arith.constant 0 : index
    %c0_67 = arith.constant 0 : index
    %93 = vector.load %arg1[%c0_64, %c2_65, %c0_66, %c0_67] : memref<4x8x2x32xf32, #tpu.memory_space<vmem>>, vector<1x1x2x32xf32>
    %94 = vector.shape_cast %93 : vector<1x1x2x32xf32> to vector<2x32xf32>
    %cst_68 = arith.constant dense<0.000000e+00> : vector<2x32xf32>
    %95 = tpu.matmul %89, %4, %cst_68 {dimension_numbers = #tpu.dot_dimension_numbers<[1], [0], [0], [1], [0, 0, 1, 1], [], []>} : vector<2x32xf32>, vector<32x32xf32>, vector<2x32xf32> -> vector<2x32xf32>
    %96 = arith.addf %94, %95 : vector<2x32xf32>
    %c1_69 = arith.constant 1 : index
    %c2_70 = arith.constant 2 : index
    %c0_71 = arith.constant 0 : index
    %c0_72 = arith.constant 0 : index
    %97 = vector.load %arg1[%c1_69, %c2_70, %c0_71, %c0_72] : memref<4x8x2x32xf32, #tpu.memory_space<vmem>>, vector<1x1x2x32xf32>
    %98 = vector.shape_cast %97 : vector<1x1x2x32xf32> to vector<2x32xf32>
    %cst_73 = arith.constant dense<0.000000e+00> : vector<2x32xf32>
    %99 = tpu.matmul %89, %6, %cst_73 {dimension_numbers = #tpu.dot_dimension_numbers<[1], [0], [0], [1], [0, 0, 1, 1], [], []>} : vector<2x32xf32>, vector<32x32xf32>, vector<2x32xf32> -> vector<2x32xf32>
    %100 = arith.addf %98, %99 : vector<2x32xf32>
    %c2_74 = arith.constant 2 : index
    %c2_75 = arith.constant 2 : index
    %c0_76 = arith.constant 0 : index
    %c0_77 = arith.constant 0 : index
    %101 = vector.load %arg1[%c2_74, %c2_75, %c0_76, %c0_77] : memref<4x8x2x32xf32, #tpu.memory_space<vmem>>, vector<1x1x2x32xf32>
    %102 = vector.shape_cast %101 : vector<1x1x2x32xf32> to vector<2x32xf32>
    %cst_78 = arith.constant dense<0.000000e+00> : vector<2x32xf32>
    %103 = tpu.matmul %89, %8, %cst_78 {dimension_numbers = #tpu.dot_dimension_numbers<[1], [0], [0], [1], [0, 0, 1, 1], [], []>} : vector<2x32xf32>, vector<32x32xf32>, vector<2x32xf32> -> vector<2x32xf32>
    %104 = arith.addf %102, %103 : vector<2x32xf32>
    %c3_79 = arith.constant 3 : index
    %c2_80 = arith.constant 2 : index
    %c0_81 = arith.constant 0 : index
    %c0_82 = arith.constant 0 : index
    %105 = vector.load %arg1[%c3_79, %c2_80, %c0_81, %c0_82] : memref<4x8x2x32xf32, #tpu.memory_space<vmem>>, vector<1x1x2x32xf32>
    %106 = vector.shape_cast %105 : vector<1x1x2x32xf32> to vector<2x32xf32>
    %cst_83 = arith.constant dense<0.000000e+00> : vector<2x32xf32>
    %107 = tpu.matmul %89, %10, %cst_83 {dimension_numbers = #tpu.dot_dimension_numbers<[1], [0], [0], [1], [0, 0, 1, 1], [], []>} : vector<2x32xf32>, vector<32x32xf32>, vector<2x32xf32> -> vector<2x32xf32>
    %108 = arith.addf %106, %107 : vector<2x32xf32>
    %109 = arith.negf %96 : vector<2x32xf32>
    %110 = math.exp %109 : vector<2x32xf32>
    %cst_84 = arith.constant 1.000000e+00 : f32
    %111 = vector.broadcast %cst_84 : f32 to vector<2x32xf32>
    %112 = arith.addf %111, %110 : vector<2x32xf32>
    %113 = arith.divf %111, %112 : vector<2x32xf32>
    %114 = arith.negf %100 : vector<2x32xf32>
    %115 = math.exp %114 : vector<2x32xf32>
    %cst_85 = arith.constant 1.000000e+00 : f32
    %116 = vector.broadcast %cst_85 : f32 to vector<2x32xf32>
    %117 = arith.addf %116, %115 : vector<2x32xf32>
    %118 = arith.divf %116, %117 : vector<2x32xf32>
    %119 = math.tanh %104 : vector<2x32xf32>
    %120 = arith.negf %108 : vector<2x32xf32>
    %121 = math.exp %120 : vector<2x32xf32>
    %cst_86 = arith.constant 1.000000e+00 : f32
    %122 = vector.broadcast %cst_86 : f32 to vector<2x32xf32>
    %123 = arith.addf %122, %121 : vector<2x32xf32>
    %124 = arith.divf %122, %123 : vector<2x32xf32>
    %125 = arith.mulf %118, %87 : vector<2x32xf32>
    %126 = arith.mulf %113, %119 : vector<2x32xf32>
    %127 = arith.addf %125, %126 : vector<2x32xf32>
    %128 = math.tanh %127 : vector<2x32xf32>
    %129 = arith.mulf %124, %128 : vector<2x32xf32>
    %c2_87 = arith.constant 2 : index
    %c0_88 = arith.constant 0 : index
    %c0_89 = arith.constant 0 : index
    %130 = vector.load %arg3[%c2_87, %c0_88, %c0_89] : memref<8x2x32xf32, #tpu.memory_space<vmem>>, vector<1x2x32xf32>
    %131 = vector.shape_cast %130 : vector<1x2x32xf32> to vector<2x32xf32>
    %132 = vector.shape_cast %129 : vector<2x32xf32> to vector<1x2x32xf32>
    tpu.vector_store %arg3[%c2_87, %c0_88, %c0_89], %132 {strides = array<i32>} : memref<8x2x32xf32, #tpu.memory_space<vmem>>, vector<1x2x32xf32>,
    %c0_90 = arith.constant 0 : index
    %c3_91 = arith.constant 3 : index
    %c0_92 = arith.constant 0 : index
    %c0_93 = arith.constant 0 : index
    %133 = vector.load %arg1[%c0_90, %c3_91, %c0_92, %c0_93] : memref<4x8x2x32xf32, #tpu.memory_space<vmem>>, vector<1x1x2x32xf32>
    %134 = vector.shape_cast %133 : vector<1x1x2x32xf32> to vector<2x32xf32>
    %cst_94 = arith.constant dense<0.000000e+00> : vector<2x32xf32>
    %135 = tpu.matmul %129, %4, %cst_94 {dimension_numbers = #tpu.dot_dimension_numbers<[1], [0], [0], [1], [0, 0, 1, 1], [], []>} : vector<2x32xf32>, vector<32x32xf32>, vector<2x32xf32> -> vector<2x32xf32>
    %136 = arith.addf %134, %135 : vector<2x32xf32>
    %c1_95 = arith.constant 1 : index
    %c3_96 = arith.constant 3 : index
    %c0_97 = arith.constant 0 : index
    %c0_98 = arith.constant 0 : index
    %137 = vector.load %arg1[%c1_95, %c3_96, %c0_97, %c0_98] : memref<4x8x2x32xf32, #tpu.memory_space<vmem>>, vector<1x1x2x32xf32>
    %138 = vector.shape_cast %137 : vector<1x1x2x32xf32> to vector<2x32xf32>
    %cst_99 = arith.constant dense<0.000000e+00> : vector<2x32xf32>
    %139 = tpu.matmul %129, %6, %cst_99 {dimension_numbers = #tpu.dot_dimension_numbers<[1], [0], [0], [1], [0, 0, 1, 1], [], []>} : vector<2x32xf32>, vector<32x32xf32>, vector<2x32xf32> -> vector<2x32xf32>
    %140 = arith.addf %138, %139 : vector<2x32xf32>
    %c2_100 = arith.constant 2 : index
    %c3_101 = arith.constant 3 : index
    %c0_102 = arith.constant 0 : index
    %c0_103 = arith.constant 0 : index
    %141 = vector.load %arg1[%c2_100, %c3_101, %c0_102, %c0_103] : memref<4x8x2x32xf32, #tpu.memory_space<vmem>>, vector<1x1x2x32xf32>
    %142 = vector.shape_cast %141 : vector<1x1x2x32xf32> to vector<2x32xf32>
    %cst_104 = arith.constant dense<0.000000e+00> : vector<2x32xf32>
    %143 = tpu.matmul %129, %8, %cst_104 {dimension_numbers = #tpu.dot_dimension_numbers<[1], [0], [0], [1], [0, 0, 1, 1], [], []>} : vector<2x32xf32>, vector<32x32xf32>, vector<2x32xf32> -> vector<2x32xf32>
    %144 = arith.addf %142, %143 : vector<2x32xf32>
    %c3_105 = arith.constant 3 : index
    %c3_106 = arith.constant 3 : index
    %c0_107 = arith.constant 0 : index
    %c0_108 = arith.constant 0 : index
    %145 = vector.load %arg1[%c3_105, %c3_106, %c0_107, %c0_108] : memref<4x8x2x32xf32, #tpu.memory_space<vmem>>, vector<1x1x2x32xf32>
    %146 = vector.shape_cast %145 : vector<1x1x2x32xf32> to vector<2x32xf32>
    %cst_109 = arith.constant dense<0.000000e+00> : vector<2x32xf32>
    %147 = tpu.matmul %129, %10, %cst_109 {dimension_numbers = #tpu.dot_dimension_numbers<[1], [0], [0], [1], [0, 0, 1, 1], [], []>} : vector<2x32xf32>, vector<32x32xf32>, vector<2x32xf32> -> vector<2x32xf32>
    %148 = arith.addf %146, %147 : vector<2x32xf32>
    %149 = arith.negf %136 : vector<2x32xf32>
    %150 = math.exp %149 : vector<2x32xf32>
    %cst_110 = arith.constant 1.000000e+00 : f32
    %151 = vector.broadcast %cst_110 : f32 to vector<2x32xf32>
    %152 = arith.addf %151, %150 : vector<2x32xf32>
    %153 = arith.divf %151, %152 : vector<2x32xf32>
    %154 = arith.negf %140 : vector<2x32xf32>
    %155 = math.exp %154 : vector<2x32xf32>
    %cst_111 = arith.constant 1.000000e+00 : f32
    %156 = vector.broadcast %cst_111 : f32 to vector<2x32xf32>
    %157 = arith.addf %156, %155 : vector<2x32xf32>
    %158 = arith.divf %156, %157 : vector<2x32xf32>
    %159 = math.tanh %144 : vector<2x32xf32>
    %160 = arith.negf %148 : vector<2x32xf32>
    %161 = math.exp %160 : vector<2x32xf32>
    %cst_112 = arith.constant 1.000000e+00 : f32
    %162 = vector.broadcast %cst_112 : f32 to vector<2x32xf32>
    %163 = arith.addf %162, %161 : vector<2x32xf32>
    %164 = arith.divf %162, %163 : vector<2x32xf32>
    %165 = arith.mulf %158, %127 : vector<2x32xf32>
    %166 = arith.mulf %153, %159 : vector<2x32xf32>
    %167 = arith.addf %165, %166 : vector<2x32xf32>
    %168 = math.tanh %167 : vector<2x32xf32>
    %169 = arith.mulf %164, %168 : vector<2x32xf32>
    %c3_113 = arith.constant 3 : index
    %c0_114 = arith.constant 0 : index
    %c0_115 = arith.constant 0 : index
    %170 = vector.load %arg3[%c3_113, %c0_114, %c0_115] : memref<8x2x32xf32, #tpu.memory_space<vmem>>, vector<1x2x32xf32>
    %171 = vector.shape_cast %170 : vector<1x2x32xf32> to vector<2x32xf32>
    %172 = vector.shape_cast %169 : vector<2x32xf32> to vector<1x2x32xf32>
    tpu.vector_store %arg3[%c3_113, %c0_114, %c0_115], %172 {strides = array<i32>} : memref<8x2x32xf32, #tpu.memory_space<vmem>>, vector<1x2x32xf32>,
    %c0_116 = arith.constant 0 : index
    %c4 = arith.constant 4 : index
    %c0_117 = arith.constant 0 : index
    %c0_118 = arith.constant 0 : index
    %173 = vector.load %arg1[%c0_116, %c4, %c0_117, %c0_118] : memref<4x8x2x32xf32, #tpu.memory_space<vmem>>, vector<1x1x2x32xf32>
    %174 = vector.shape_cast %173 : vector<1x1x2x32xf32> to vector<2x32xf32>
    %cst_119 = arith.constant dense<0.000000e+00> : vector<2x32xf32>
    %175 = tpu.matmul %169, %4, %cst_119 {dimension_numbers = #tpu.dot_dimension_numbers<[1], [0], [0], [1], [0, 0, 1, 1], [], []>} : vector<2x32xf32>, vector<32x32xf32>, vector<2x32xf32> -> vector<2x32xf32>
    %176 = arith.addf %174, %175 : vector<2x32xf32>
    %c1_120 = arith.constant 1 : index
    %c4_121 = arith.constant 4 : index
    %c0_122 = arith.constant 0 : index
    %c0_123 = arith.constant 0 : index
    %177 = vector.load %arg1[%c1_120, %c4_121, %c0_122, %c0_123] : memref<4x8x2x32xf32, #tpu.memory_space<vmem>>, vector<1x1x2x32xf32>
    %178 = vector.shape_cast %177 : vector<1x1x2x32xf32> to vector<2x32xf32>
    %cst_124 = arith.constant dense<0.000000e+00> : vector<2x32xf32>
    %179 = tpu.matmul %169, %6, %cst_124 {dimension_numbers = #tpu.dot_dimension_numbers<[1], [0], [0], [1], [0, 0, 1, 1], [], []>} : vector<2x32xf32>, vector<32x32xf32>, vector<2x32xf32> -> vector<2x32xf32>
    %180 = arith.addf %178, %179 : vector<2x32xf32>
    %c2_125 = arith.constant 2 : index
    %c4_126 = arith.constant 4 : index
    %c0_127 = arith.constant 0 : index
    %c0_128 = arith.constant 0 : index
    %181 = vector.load %arg1[%c2_125, %c4_126, %c0_127, %c0_128] : memref<4x8x2x32xf32, #tpu.memory_space<vmem>>, vector<1x1x2x32xf32>
    %182 = vector.shape_cast %181 : vector<1x1x2x32xf32> to vector<2x32xf32>
    %cst_129 = arith.constant dense<0.000000e+00> : vector<2x32xf32>
    %183 = tpu.matmul %169, %8, %cst_129 {dimension_numbers = #tpu.dot_dimension_numbers<[1], [0], [0], [1], [0, 0, 1, 1], [], []>} : vector<2x32xf32>, vector<32x32xf32>, vector<2x32xf32> -> vector<2x32xf32>
    %184 = arith.addf %182, %183 : vector<2x32xf32>
    %c3_130 = arith.constant 3 : index
    %c4_131 = arith.constant 4 : index
    %c0_132 = arith.constant 0 : index
    %c0_133 = arith.constant 0 : index
    %185 = vector.load %arg1[%c3_130, %c4_131, %c0_132, %c0_133] : memref<4x8x2x32xf32, #tpu.memory_space<vmem>>, vector<1x1x2x32xf32>
    %186 = vector.shape_cast %185 : vector<1x1x2x32xf32> to vector<2x32xf32>
    %cst_134 = arith.constant dense<0.000000e+00> : vector<2x32xf32>
    %187 = tpu.matmul %169, %10, %cst_134 {dimension_numbers = #tpu.dot_dimension_numbers<[1], [0], [0], [1], [0, 0, 1, 1], [], []>} : vector<2x32xf32>, vector<32x32xf32>, vector<2x32xf32> -> vector<2x32xf32>
    %188 = arith.addf %186, %187 : vector<2x32xf32>
    %189 = arith.negf %176 : vector<2x32xf32>
    %190 = math.exp %189 : vector<2x32xf32>
    %cst_135 = arith.constant 1.000000e+00 : f32
    %191 = vector.broadcast %cst_135 : f32 to vector<2x32xf32>
    %192 = arith.addf %191, %190 : vector<2x32xf32>
    %193 = arith.divf %191, %192 : vector<2x32xf32>
    %194 = arith.negf %180 : vector<2x32xf32>
    %195 = math.exp %194 : vector<2x32xf32>
    %cst_136 = arith.constant 1.000000e+00 : f32
    %196 = vector.broadcast %cst_136 : f32 to vector<2x32xf32>
    %197 = arith.addf %196, %195 : vector<2x32xf32>
    %198 = arith.divf %196, %197 : vector<2x32xf32>
    %199 = math.tanh %184 : vector<2x32xf32>
    %200 = arith.negf %188 : vector<2x32xf32>
    %201 = math.exp %200 : vector<2x32xf32>
    %cst_137 = arith.constant 1.000000e+00 : f32
    %202 = vector.broadcast %cst_137 : f32 to vector<2x32xf32>
    %203 = arith.addf %202, %201 : vector<2x32xf32>
    %204 = arith.divf %202, %203 : vector<2x32xf32>
    %205 = arith.mulf %198, %167 : vector<2x32xf32>
    %206 = arith.mulf %193, %199 : vector<2x32xf32>
    %207 = arith.addf %205, %206 : vector<2x32xf32>
    %208 = math.tanh %207 : vector<2x32xf32>
    %209 = arith.mulf %204, %208 : vector<2x32xf32>
    %c4_138 = arith.constant 4 : index
    %c0_139 = arith.constant 0 : index
    %c0_140 = arith.constant 0 : index
    %210 = vector.load %arg3[%c4_138, %c0_139, %c0_140] : memref<8x2x32xf32, #tpu.memory_space<vmem>>, vector<1x2x32xf32>
    %211 = vector.shape_cast %210 : vector<1x2x32xf32> to vector<2x32xf32>
    %212 = vector.shape_cast %209 : vector<2x32xf32> to vector<1x2x32xf32>
    tpu.vector_store %arg3[%c4_138, %c0_139, %c0_140], %212 {strides = array<i32>} : memref<8x2x32xf32, #tpu.memory_space<vmem>>, vector<1x2x32xf32>,
    %c0_141 = arith.constant 0 : index
    %c5 = arith.constant 5 : index
    %c0_142 = arith.constant 0 : index
    %c0_143 = arith.constant 0 : index
    %213 = vector.load %arg1[%c0_141, %c5, %c0_142, %c0_143] : memref<4x8x2x32xf32, #tpu.memory_space<vmem>>, vector<1x1x2x32xf32>
    %214 = vector.shape_cast %213 : vector<1x1x2x32xf32> to vector<2x32xf32>
    %cst_144 = arith.constant dense<0.000000e+00> : vector<2x32xf32>
    %215 = tpu.matmul %209, %4, %cst_144 {dimension_numbers = #tpu.dot_dimension_numbers<[1], [0], [0], [1], [0, 0, 1, 1], [], []>} : vector<2x32xf32>, vector<32x32xf32>, vector<2x32xf32> -> vector<2x32xf32>
    %216 = arith.addf %214, %215 : vector<2x32xf32>
    %c1_145 = arith.constant 1 : index
    %c5_146 = arith.constant 5 : index
    %c0_147 = arith.constant 0 : index
    %c0_148 = arith.constant 0 : index
    %217 = vector.load %arg1[%c1_145, %c5_146, %c0_147, %c0_148] : memref<4x8x2x32xf32, #tpu.memory_space<vmem>>, vector<1x1x2x32xf32>
    %218 = vector.shape_cast %217 : vector<1x1x2x32xf32> to vector<2x32xf32>
    %cst_149 = arith.constant dense<0.000000e+00> : vector<2x32xf32>
    %219 = tpu.matmul %209, %6, %cst_149 {dimension_numbers = #tpu.dot_dimension_numbers<[1], [0], [0], [1], [0, 0, 1, 1], [], []>} : vector<2x32xf32>, vector<32x32xf32>, vector<2x32xf32> -> vector<2x32xf32>
    %220 = arith.addf %218, %219 : vector<2x32xf32>
    %c2_150 = arith.constant 2 : index
    %c5_151 = arith.constant 5 : index
    %c0_152 = arith.constant 0 : index
    %c0_153 = arith.constant 0 : index
    %221 = vector.load %arg1[%c2_150, %c5_151, %c0_152, %c0_153] : memref<4x8x2x32xf32, #tpu.memory_space<vmem>>, vector<1x1x2x32xf32>
    %222 = vector.shape_cast %221 : vector<1x1x2x32xf32> to vector<2x32xf32>
    %cst_154 = arith.constant dense<0.000000e+00> : vector<2x32xf32>
    %223 = tpu.matmul %209, %8, %cst_154 {dimension_numbers = #tpu.dot_dimension_numbers<[1], [0], [0], [1], [0, 0, 1, 1], [], []>} : vector<2x32xf32>, vector<32x32xf32>, vector<2x32xf32> -> vector<2x32xf32>
    %224 = arith.addf %222, %223 : vector<2x32xf32>
    %c3_155 = arith.constant 3 : index
    %c5_156 = arith.constant 5 : index
    %c0_157 = arith.constant 0 : index
    %c0_158 = arith.constant 0 : index
    %225 = vector.load %arg1[%c3_155, %c5_156, %c0_157, %c0_158] : memref<4x8x2x32xf32, #tpu.memory_space<vmem>>, vector<1x1x2x32xf32>
    %226 = vector.shape_cast %225 : vector<1x1x2x32xf32> to vector<2x32xf32>
    %cst_159 = arith.constant dense<0.000000e+00> : vector<2x32xf32>
    %227 = tpu.matmul %209, %10, %cst_159 {dimension_numbers = #tpu.dot_dimension_numbers<[1], [0], [0], [1], [0, 0, 1, 1], [], []>} : vector<2x32xf32>, vector<32x32xf32>, vector<2x32xf32> -> vector<2x32xf32>
    %228 = arith.addf %226, %227 : vector<2x32xf32>
    %229 = arith.negf %216 : vector<2x32xf32>
    %230 = math.exp %229 : vector<2x32xf32>
    %cst_160 = arith.constant 1.000000e+00 : f32
    %231 = vector.broadcast %cst_160 : f32 to vector<2x32xf32>
    %232 = arith.addf %231, %230 : vector<2x32xf32>
    %233 = arith.divf %231, %232 : vector<2x32xf32>
    %234 = arith.negf %220 : vector<2x32xf32>
    %235 = math.exp %234 : vector<2x32xf32>
    %cst_161 = arith.constant 1.000000e+00 : f32
    %236 = vector.broadcast %cst_161 : f32 to vector<2x32xf32>
    %237 = arith.addf %236, %235 : vector<2x32xf32>
    %238 = arith.divf %236, %237 : vector<2x32xf32>
    %239 = math.tanh %224 : vector<2x32xf32>
    %240 = arith.negf %228 : vector<2x32xf32>
    %241 = math.exp %240 : vector<2x32xf32>
    %cst_162 = arith.constant 1.000000e+00 : f32
    %242 = vector.broadcast %cst_162 : f32 to vector<2x32xf32>
    %243 = arith.addf %242, %241 : vector<2x32xf32>
    %244 = arith.divf %242, %243 : vector<2x32xf32>
    %245 = arith.mulf %238, %207 : vector<2x32xf32>
    %246 = arith.mulf %233, %239 : vector<2x32xf32>
    %247 = arith.addf %245, %246 : vector<2x32xf32>
    %248 = math.tanh %247 : vector<2x32xf32>
    %249 = arith.mulf %244, %248 : vector<2x32xf32>
    %c5_163 = arith.constant 5 : index
    %c0_164 = arith.constant 0 : index
    %c0_165 = arith.constant 0 : index
    %250 = vector.load %arg3[%c5_163, %c0_164, %c0_165] : memref<8x2x32xf32, #tpu.memory_space<vmem>>, vector<1x2x32xf32>
    %251 = vector.shape_cast %250 : vector<1x2x32xf32> to vector<2x32xf32>
    %252 = vector.shape_cast %249 : vector<2x32xf32> to vector<1x2x32xf32>
    tpu.vector_store %arg3[%c5_163, %c0_164, %c0_165], %252 {strides = array<i32>} : memref<8x2x32xf32, #tpu.memory_space<vmem>>, vector<1x2x32xf32>,
    %c0_166 = arith.constant 0 : index
    %c6 = arith.constant 6 : index
    %c0_167 = arith.constant 0 : index
    %c0_168 = arith.constant 0 : index
    %253 = vector.load %arg1[%c0_166, %c6, %c0_167, %c0_168] : memref<4x8x2x32xf32, #tpu.memory_space<vmem>>, vector<1x1x2x32xf32>
    %254 = vector.shape_cast %253 : vector<1x1x2x32xf32> to vector<2x32xf32>
    %cst_169 = arith.constant dense<0.000000e+00> : vector<2x32xf32>
    %255 = tpu.matmul %249, %4, %cst_169 {dimension_numbers = #tpu.dot_dimension_numbers<[1], [0], [0], [1], [0, 0, 1, 1], [], []>} : vector<2x32xf32>, vector<32x32xf32>, vector<2x32xf32> -> vector<2x32xf32>
    %256 = arith.addf %254, %255 : vector<2x32xf32>
    %c1_170 = arith.constant 1 : index
    %c6_171 = arith.constant 6 : index
    %c0_172 = arith.constant 0 : index
    %c0_173 = arith.constant 0 : index
    %257 = vector.load %arg1[%c1_170, %c6_171, %c0_172, %c0_173] : memref<4x8x2x32xf32, #tpu.memory_space<vmem>>, vector<1x1x2x32xf32>
    %258 = vector.shape_cast %257 : vector<1x1x2x32xf32> to vector<2x32xf32>
    %cst_174 = arith.constant dense<0.000000e+00> : vector<2x32xf32>
    %259 = tpu.matmul %249, %6, %cst_174 {dimension_numbers = #tpu.dot_dimension_numbers<[1], [0], [0], [1], [0, 0, 1, 1], [], []>} : vector<2x32xf32>, vector<32x32xf32>, vector<2x32xf32> -> vector<2x32xf32>
    %260 = arith.addf %258, %259 : vector<2x32xf32>
    %c2_175 = arith.constant 2 : index
    %c6_176 = arith.constant 6 : index
    %c0_177 = arith.constant 0 : index
    %c0_178 = arith.constant 0 : index
    %261 = vector.load %arg1[%c2_175, %c6_176, %c0_177, %c0_178] : memref<4x8x2x32xf32, #tpu.memory_space<vmem>>, vector<1x1x2x32xf32>
    %262 = vector.shape_cast %261 : vector<1x1x2x32xf32> to vector<2x32xf32>
    %cst_179 = arith.constant dense<0.000000e+00> : vector<2x32xf32>
    %263 = tpu.matmul %249, %8, %cst_179 {dimension_numbers = #tpu.dot_dimension_numbers<[1], [0], [0], [1], [0, 0, 1, 1], [], []>} : vector<2x32xf32>, vector<32x32xf32>, vector<2x32xf32> -> vector<2x32xf32>
    %264 = arith.addf %262, %263 : vector<2x32xf32>
    %c3_180 = arith.constant 3 : index
    %c6_181 = arith.constant 6 : index
    %c0_182 = arith.constant 0 : index
    %c0_183 = arith.constant 0 : index
    %265 = vector.load %arg1[%c3_180, %c6_181, %c0_182, %c0_183] : memref<4x8x2x32xf32, #tpu.memory_space<vmem>>, vector<1x1x2x32xf32>
    %266 = vector.shape_cast %265 : vector<1x1x2x32xf32> to vector<2x32xf32>
    %cst_184 = arith.constant dense<0.000000e+00> : vector<2x32xf32>
    %267 = tpu.matmul %249, %10, %cst_184 {dimension_numbers = #tpu.dot_dimension_numbers<[1], [0], [0], [1], [0, 0, 1, 1], [], []>} : vector<2x32xf32>, vector<32x32xf32>, vector<2x32xf32> -> vector<2x32xf32>
    %268 = arith.addf %266, %267 : vector<2x32xf32>
    %269 = arith.negf %256 : vector<2x32xf32>
    %270 = math.exp %269 : vector<2x32xf32>
    %cst_185 = arith.constant 1.000000e+00 : f32
    %271 = vector.broadcast %cst_185 : f32 to vector<2x32xf32>
    %272 = arith.addf %271, %270 : vector<2x32xf32>
    %273 = arith.divf %271, %272 : vector<2x32xf32>
    %274 = arith.negf %260 : vector<2x32xf32>
    %275 = math.exp %274 : vector<2x32xf32>
    %cst_186 = arith.constant 1.000000e+00 : f32
    %276 = vector.broadcast %cst_186 : f32 to vector<2x32xf32>
    %277 = arith.addf %276, %275 : vector<2x32xf32>
    %278 = arith.divf %276, %277 : vector<2x32xf32>
    %279 = math.tanh %264 : vector<2x32xf32>
    %280 = arith.negf %268 : vector<2x32xf32>
    %281 = math.exp %280 : vector<2x32xf32>
    %cst_187 = arith.constant 1.000000e+00 : f32
    %282 = vector.broadcast %cst_187 : f32 to vector<2x32xf32>
    %283 = arith.addf %282, %281 : vector<2x32xf32>
    %284 = arith.divf %282, %283 : vector<2x32xf32>
    %285 = arith.mulf %278, %247 : vector<2x32xf32>
    %286 = arith.mulf %273, %279 : vector<2x32xf32>
    %287 = arith.addf %285, %286 : vector<2x32xf32>
    %288 = math.tanh %287 : vector<2x32xf32>
    %289 = arith.mulf %284, %288 : vector<2x32xf32>
    %c6_188 = arith.constant 6 : index
    %c0_189 = arith.constant 0 : index
    %c0_190 = arith.constant 0 : index
    %290 = vector.load %arg3[%c6_188, %c0_189, %c0_190] : memref<8x2x32xf32, #tpu.memory_space<vmem>>, vector<1x2x32xf32>
    %291 = vector.shape_cast %290 : vector<1x2x32xf32> to vector<2x32xf32>
    %292 = vector.shape_cast %289 : vector<2x32xf32> to vector<1x2x32xf32>
    tpu.vector_store %arg3[%c6_188, %c0_189, %c0_190], %292 {strides = array<i32>} : memref<8x2x32xf32, #tpu.memory_space<vmem>>, vector<1x2x32xf32>,
    %c0_191 = arith.constant 0 : index
    %c7 = arith.constant 7 : index
    %c0_192 = arith.constant 0 : index
    %c0_193 = arith.constant 0 : index
    %293 = vector.load %arg1[%c0_191, %c7, %c0_192, %c0_193] : memref<4x8x2x32xf32, #tpu.memory_space<vmem>>, vector<1x1x2x32xf32>
    %294 = vector.shape_cast %293 : vector<1x1x2x32xf32> to vector<2x32xf32>
    %cst_194 = arith.constant dense<0.000000e+00> : vector<2x32xf32>
    %295 = tpu.matmul %289, %4, %cst_194 {dimension_numbers = #tpu.dot_dimension_numbers<[1], [0], [0], [1], [0, 0, 1, 1], [], []>} : vector<2x32xf32>, vector<32x32xf32>, vector<2x32xf32> -> vector<2x32xf32>
    %296 = arith.addf %294, %295 : vector<2x32xf32>
    %c1_195 = arith.constant 1 : index
    %c7_196 = arith.constant 7 : index
    %c0_197 = arith.constant 0 : index
    %c0_198 = arith.constant 0 : index
    %297 = vector.load %arg1[%c1_195, %c7_196, %c0_197, %c0_198] : memref<4x8x2x32xf32, #tpu.memory_space<vmem>>, vector<1x1x2x32xf32>
    %298 = vector.shape_cast %297 : vector<1x1x2x32xf32> to vector<2x32xf32>
    %cst_199 = arith.constant dense<0.000000e+00> : vector<2x32xf32>
    %299 = tpu.matmul %289, %6, %cst_199 {dimension_numbers = #tpu.dot_dimension_numbers<[1], [0], [0], [1], [0, 0, 1, 1], [], []>} : vector<2x32xf32>, vector<32x32xf32>, vector<2x32xf32> -> vector<2x32xf32>
    %300 = arith.addf %298, %299 : vector<2x32xf32>
    %c2_200 = arith.constant 2 : index
    %c7_201 = arith.constant 7 : index
    %c0_202 = arith.constant 0 : index
    %c0_203 = arith.constant 0 : index
    %301 = vector.load %arg1[%c2_200, %c7_201, %c0_202, %c0_203] : memref<4x8x2x32xf32, #tpu.memory_space<vmem>>, vector<1x1x2x32xf32>
    %302 = vector.shape_cast %301 : vector<1x1x2x32xf32> to vector<2x32xf32>
    %cst_204 = arith.constant dense<0.000000e+00> : vector<2x32xf32>
    %303 = tpu.matmul %289, %8, %cst_204 {dimension_numbers = #tpu.dot_dimension_numbers<[1], [0], [0], [1], [0, 0, 1, 1], [], []>} : vector<2x32xf32>, vector<32x32xf32>, vector<2x32xf32> -> vector<2x32xf32>
    %304 = arith.addf %302, %303 : vector<2x32xf32>
    %c3_205 = arith.constant 3 : index
    %c7_206 = arith.constant 7 : index
    %c0_207 = arith.constant 0 : index
    %c0_208 = arith.constant 0 : index
    %305 = vector.load %arg1[%c3_205, %c7_206, %c0_207, %c0_208] : memref<4x8x2x32xf32, #tpu.memory_space<vmem>>, vector<1x1x2x32xf32>
    %306 = vector.shape_cast %305 : vector<1x1x2x32xf32> to vector<2x32xf32>
    %cst_209 = arith.constant dense<0.000000e+00> : vector<2x32xf32>
    %307 = tpu.matmul %289, %10, %cst_209 {dimension_numbers = #tpu.dot_dimension_numbers<[1], [0], [0], [1], [0, 0, 1, 1], [], []>} : vector<2x32xf32>, vector<32x32xf32>, vector<2x32xf32> -> vector<2x32xf32>
    %308 = arith.addf %306, %307 : vector<2x32xf32>
    %309 = arith.negf %296 : vector<2x32xf32>
    %310 = math.exp %309 : vector<2x32xf32>
    %cst_210 = arith.constant 1.000000e+00 : f32
    %311 = vector.broadcast %cst_210 : f32 to vector<2x32xf32>
    %312 = arith.addf %311, %310 : vector<2x32xf32>
    %313 = arith.divf %311, %312 : vector<2x32xf32>
    %314 = arith.negf %300 : vector<2x32xf32>
    %315 = math.exp %314 : vector<2x32xf32>
    %cst_211 = arith.constant 1.000000e+00 : f32
    %316 = vector.broadcast %cst_211 : f32 to vector<2x32xf32>
    %317 = arith.addf %316, %315 : vector<2x32xf32>
    %318 = arith.divf %316, %317 : vector<2x32xf32>
    %319 = math.tanh %304 : vector<2x32xf32>
    %320 = arith.negf %308 : vector<2x32xf32>
    %321 = math.exp %320 : vector<2x32xf32>
    %cst_212 = arith.constant 1.000000e+00 : f32
    %322 = vector.broadcast %cst_212 : f32 to vector<2x32xf32>
    %323 = arith.addf %322, %321 : vector<2x32xf32>
    %324 = arith.divf %322, %323 : vector<2x32xf32>
    %325 = arith.mulf %318, %287 : vector<2x32xf32>
    %326 = arith.mulf %313, %319 : vector<2x32xf32>
    %327 = arith.addf %325, %326 : vector<2x32xf32>
    %328 = math.tanh %327 : vector<2x32xf32>
    %329 = arith.mulf %324, %328 : vector<2x32xf32>
    %c7_213 = arith.constant 7 : index
    %c0_214 = arith.constant 0 : index
    %c0_215 = arith.constant 0 : index
    %330 = vector.load %arg3[%c7_213, %c0_214, %c0_215] : memref<8x2x32xf32, #tpu.memory_space<vmem>>, vector<1x2x32xf32>
    %331 = vector.shape_cast %330 : vector<1x2x32xf32> to vector<2x32xf32>
    %332 = vector.shape_cast %329 : vector<2x32xf32> to vector<1x2x32xf32>
    tpu.vector_store %arg3[%c7_213, %c0_214, %c0_215], %332 {strides = array<i32>} : memref<8x2x32xf32, #tpu.memory_space<vmem>>, vector<1x2x32xf32>,
    %c0_216 = arith.constant 0 : index
    %c0_217 = arith.constant 0 : index
    %333 = vector.load %arg4[%c0_216, %c0_217] : memref<2x32xf32, #tpu.memory_space<vmem>>, vector<2x32xf32>
    tpu.vector_store %arg4[%c0_216, %c0_217], %329 {strides = array<i32>} : memref<2x32xf32, #tpu.memory_space<vmem>>, vector<2x32xf32>,
    %c0_218 = arith.constant 0 : index
    %c0_219 = arith.constant 0 : index
    %334 = vector.load %arg5[%c0_218, %c0_219] : memref<2x32xf32, #tpu.memory_space<vmem>>, vector<2x32xf32>
    tpu.vector_store %arg5[%c0_218, %c0_219], %327 {strides = array<i32>} : memref<2x32xf32, #tpu.memory_space<vmem>>, vector<2x32xf32>,
    return
  }
  func.func @transform_0(%arg0: i32) -> (i32, i32, i32, i32) {
    %c0_i32 = arith.constant 0 : i32
    %c0_i32_0 = arith.constant 0 : i32
    %c0_i32_1 = arith.constant 0 : i32
    %c0_i32_2 = arith.constant 0 : i32
    return %c0_i32, %arg0, %c0_i32_0, %c0_i32_1 : i32, i32, i32, i32
  }
  func.func @transform_1(%arg0: i32) -> (i32, i32, i32) {
    %c0_i32 = arith.constant 0 : i32
    %c0_i32_0 = arith.constant 0 : i32
    %c0_i32_1 = arith.constant 0 : i32
    %c0_i32_2 = arith.constant 0 : i32
    return %c0_i32, %c0_i32_0, %c0_i32_1 : i32, i32, i32
  }
  func.func @transform_2(%arg0: i32) -> (i32, i32, i32) {
    %c0_i32 = arith.constant 0 : i32
    %c0_i32_0 = arith.constant 0 : i32
    %c0_i32_1 = arith.constant 0 : i32
    return %arg0, %c0_i32, %c0_i32_0 : i32, i32, i32
  }
}

</mosaic_0001>

<llo_original>
// kernel: custom_sentence_encoder_forward.4
$region0: #{custom_sentence_encoder_forward.4}
  #allocation0 [shape = 'u32[]', space=smem, size = 0x4, offset = 0x4, fixed_abs, tag = 'smem constant byte address 0x4 - core index']
  #allocation1 [shape = 'u32[144,128]{1,0:T(1,128)}', space=vmem, size = 0x12000, scoped, tag = 'internal scratch']
  %s0 = inlined_call_operand.vmem [shape: f32[16,32], index: 0, kind: input, shape index: {}]
  %s1 = inlined_call_operand.vmem [shape: f32[4,32,32], index: 1, kind: input, shape index: {}]
  %s2 = inlined_call_operand.vmem [shape: f32[4,1,32], index: 2, kind: input, shape index: {}]
  %s3 = inlined_call_operand.vmem [shape: f32[4,16,32], index: 3, kind: output, shape index: {}]
  %s4 = sld [smem:[#allocation0]]
  $region22: #{custom_sentence_encoder_forward.4} parent=0
    _
  %s6 = ssub.s32 1, %s4
  %s7 = scalar_select 0, %s6, %s4
  // Predicated region
  $region2: #{custom_sentence_encoder_forward.4} parent=0 // pred_check
    _
  $region3: #{custom_sentence_encoder_forward.4} parent=0 // pred_check_branch
    %9 = sbr.rel (0) target = $region5
  $region4: #{custom_sentence_encoder_forward.4} parent=0 // pred_region
    _
  $region5: #{custom_sentence_encoder_forward.4} parent=0 // pred_fallthru
    _
  // Predicated region
  $region6: #{custom_sentence_encoder_forward.4} parent=0 // pred_check
    _
  $region7: #{custom_sentence_encoder_forward.4} parent=0 // pred_check_branch
    %11 = sbr.rel (0) target = $region9
  $region8: #{custom_sentence_encoder_forward.4} parent=0 // pred_region
    _
  $region9: #{custom_sentence_encoder_forward.4} parent=0 // pred_fallthru
    _
  // Predicated region
  $region10: #{custom_sentence_encoder_forward.4} parent=0 // pred_check
    _
  $region11: #{custom_sentence_encoder_forward.4} parent=0 // pred_check_branch
    %13 = sbr.rel (0) target = $region13
  $region12: #{custom_sentence_encoder_forward.4} parent=0 // pred_region
    _
  $region13: #{custom_sentence_encoder_forward.4} parent=0 // pred_fallthru
    _
  %v14 = vld [vmem:[%s0] sm:$0xff]
  %v15 = vld [vmem:[%s0 + $0x8] sm:$0xff]
  %v16 = vld [vmem:[%s1] sm:$0xff]
  %v17 = vld [vmem:[%s1 + $0x8] sm:$0xff]
  %v18 = vld [vmem:[%s1 + $0x10] sm:$0xff]
  %v19 = vld [vmem:[%s1 + $0x18] sm:$0xff]
  %v20 = vld [vmem:[%s2] sm:$0x1]
  %v22 = vlaneseq
  %v23 = vshrl.u32 %v22, 7
  %v24 = vsub.s32 0, %v23
  %v25 = vrot.slane %v20, %v24
  %vm27 = vcmask 261120
  %v29 = vsel %vm27, %v14, 0
  %v32 = vsel %vm27, %v15, 0
  %34 = vmatprep.subr.mxu0 0.0
  %35 = vmatpush1.msra.mxu0 %v16
  %36 = vmatprep.subr.mxu0 0.0
  %37 = vmatpush1.msra.mxu0 %v17
  %38 = vmatprep.subr.mxu0 0.0
  %39 = vmatpush1.msra.mxu0 %v18
  %40 = vmatprep.subr.mxu0 0.0
  %41 = vmatpush1.msra.mxu0 %v19
  %42 = vmatprep.subr.mxu0 0.0
  %43 = vmatpush1.msra.mxu0 0.0
  %44 = vmatprep.subr.mxu0 0.0
  %45 = vmatpush1.msra.mxu0 0.0
  %46 = vmatprep.subr.mxu0 0.0
  %47 = vmatpush1.msra.mxu0 0.0
  %48 = vmatprep.subr.mxu0 0.0
  %49 = vmatpush1.msra.mxu0 0.0
  %50 = vmatprep.subr.mxu0 0.0
  %51 = vmatpush1.msra.mxu0 0.0
  %52 = vmatprep.subr.mxu0 0.0
  %53 = vmatpush1.msra.mxu0 0.0
  %54 = vmatprep.subr.mxu0 0.0
  %55 = vmatpush1.msra.mxu0 0.0
  %56 = vmatprep.subr.mxu0 0.0
  %57 = vmatpush1.msra.mxu0 0.0
  %58 = vmatprep.subr.mxu0 0.0
  %59 = vmatpush1.msra.mxu0 0.0
  %60 = vmatprep.subr.mxu0 0.0
  %61 = vmatpush1.msra.mxu0 0.0
  %62 = vmatprep.subr.mxu0 0.0
  %63 = vmatpush1.msra.mxu0 0.0
  %64 = vmatprep.subr.mxu0 0.0
  %65 = vmatpush1.msra.mxu0 0.0
  %66 = vmatprep.subr.mxu0 0.0
  %67 = vmatpush1.msra.mxu0 0.0
  %68 = vmatprep.subr.mxu0 0.0
  %69 = vmatpush1.msra.mxu0 0.0
  %70 = vmatprep.subr.mxu0 0.0
  %71 = vmatpush1.msra.mxu0 0.0
  %72 = vmatprep.subr.mxu0 0.0
  %73 = vmatpush1.msra.mxu0 0.0
  %74 = vmatprep.subr.mxu0 0.0
  %75 = vmatpush1.msra.mxu0 0.0
  %76 = vmatprep.subr.mxu0 0.0
  %77 = vmatpush1.msra.mxu0 0.0
  %78 = vmatprep.subr.mxu0 0.0
  %79 = vmatpush1.msra.mxu0 0.0
  %80 = vmatprep.subr.mxu0 0.0
  %81 = vmatpush1.msra.mxu0 0.0
  %82 = vmatprep.subr.mxu0 0.0
  %83 = vmatpush1.msra.mxu0 0.0
  %84 = vmatprep.subr.mxu0 0.0
  %85 = vmatpush1.msra.mxu0 0.0
  %86 = vmatprep.subr.mxu0 0.0
  %87 = vmatpush1.msra.mxu0 0.0
  %88 = vmatprep.subr.mxu0 0.0
  %89 = vmatpush1.msra.mxu0 0.0
  %90 = vmatprep.subr.mxu0 0.0
  %91 = vmatpush1.msra.mxu0 0.0
  %92 = vmatprep.subr.mxu0 0.0
  %93 = vmatpush1.msra.mxu0 0.0
  %94 = vmatprep.subr.mxu0 0.0
  %95 = vmatpush1.msra.mxu0 0.0
  %96 = vmatprep.subr.mxu0 0.0
  %97 = vmatpush1.msra.mxu0 0.0
  %98 = vmatprep.mubr.f32.mxu0 0.0
  %99 = vmatmul.mubr.f32.gmra.mrb[0].mxu0 %v29
  %v100 = vpop.f32.mrb[0].mxu0
  %v101 = vadd.f32 %v25, %v100
  %v102 = vpop.f32.mrb[0].mxu0
  %103 = vmatprep.mubr.f32.mxu0 0.0
  %104 = vmatmul.mubr.f32.gmra.mrb[0].mxu0 %v32
  %v105 = vpop.f32.mrb[0].mxu0
  %v106 = vadd.f32 %v25, %v105
  %v107 = vpop.f32.mrb[0].mxu0
  %108 = vdwg.mxu0
  %109 = vst.msk [vmem:[%s3] sm:$0xff] %vm27, %v101
  %110 = vst.msk [vmem:[%s3 + $0x8] sm:$0xff] %vm27, %v106
  %s111 = scalar_lea.vmem %s1, 32
  %v112 = vld [vmem:[%s111] sm:$0xff]
  %v113 = vld [vmem:[%s111 + $0x8] sm:$0xff]
  %v114 = vld [vmem:[%s111 + $0x10] sm:$0xff]
  %v115 = vld [vmem:[%s111 + $0x18] sm:$0xff]
  %s116 = scalar_lea.vmem %s2, 1
  %v117 = vld [vmem:[%s116] sm:$0x1]
  %v119 = vlaneseq
  %v120 = vshrl.u32 %v119, 7
  %v121 = vsub.s32 0, %v120
  %v122 = vrot.slane %v117, %v121
  %124 = vmatprep.subr.mxu0 0.0
  %125 = vmatpush1.msra.mxu0 %v112
  %126 = vmatprep.subr.mxu0 0.0
  %127 = vmatpush1.msra.mxu0 %v113
  %128 = vmatprep.subr.mxu0 0.0
  %129 = vmatpush1.msra.mxu0 %v114
  %130 = vmatprep.subr.mxu0 0.0
  %131 = vmatpush1.msra.mxu0 %v115
  %132 = vmatprep.subr.mxu0 0.0
  %133 = vmatpush1.msra.mxu0 0.0
  %134 = vmatprep.subr.mxu0 0.0
  %135 = vmatpush1.msra.mxu0 0.0
  %136 = vmatprep.subr.mxu0 0.0
  %137 = vmatpush1.msra.mxu0 0.0
  %138 = vmatprep.subr.mxu0 0.0
  %139 = vmatpush1.msra.mxu0 0.0
  %140 = vmatprep.subr.mxu0 0.0
  %141 = vmatpush1.msra.mxu0 0.0
  %142 = vmatprep.subr.mxu0 0.0
  %143 = vmatpush1.msra.mxu0 0.0
  %144 = vmatprep.subr.mxu0 0.0
  %145 = vmatpush1.msra.mxu0 0.0
  %146 = vmatprep.subr.mxu0 0.0
  %147 = vmatpush1.msra.mxu0 0.0
  %148 = vmatprep.subr.mxu0 0.0
  %149 = vmatpush1.msra.mxu0 0.0
  %150 = vmatprep.subr.mxu0 0.0
  %151 = vmatpush1.msra.mxu0 0.0
  %152 = vmatprep.subr.mxu0 0.0
  %153 = vmatpush1.msra.mxu0 0.0
  %154 = vmatprep.subr.mxu0 0.0
  %155 = vmatpush1.msra.mxu0 0.0
  %156 = vmatprep.subr.mxu0 0.0
  %157 = vmatpush1.msra.mxu0 0.0
  %158 = vmatprep.subr.mxu0 0.0
  %159 = vmatpush1.msra.mxu0 0.0
  %160 = vmatprep.subr.mxu0 0.0
  %161 = vmatpush1.msra.mxu0 0.0
  %162 = vmatprep.subr.mxu0 0.0
  %163 = vmatpush1.msra.mxu0 0.0
  %164 = vmatprep.subr.mxu0 0.0
  %165 = vmatpush1.msra.mxu0 0.0
  %166 = vmatprep.subr.mxu0 0.0
  %167 = vmatpush1.msra.mxu0 0.0
  %168 = vmatprep.subr.mxu0 0.0
  %169 = vmatpush1.msra.mxu0 0.0
  %170 = vmatprep.subr.mxu0 0.0
  %171 = vmatpush1.msra.mxu0 0.0
  %172 = vmatprep.subr.mxu0 0.0
  %173 = vmatpush1.msra.mxu0 0.0
  %174 = vmatprep.subr.mxu0 0.0
  %175 = vmatpush1.msra.mxu0 0.0
  %176 = vmatprep.subr.mxu0 0.0
  %177 = vmatpush1.msra.mxu0 0.0
  %178 = vmatprep.subr.mxu0 0.0
  %179 = vmatpush1.msra.mxu0 0.0
  %180 = vmatprep.subr.mxu0 0.0
  %181 = vmatpush1.msra.mxu0 0.0
  %182 = vmatprep.subr.mxu0 0.0
  %183 = vmatpush1.msra.mxu0 0.0
  %184 = vmatprep.subr.mxu0 0.0
  %185 = vmatpush1.msra.mxu0 0.0
  %186 = vmatprep.subr.mxu0 0.0
  %187 = vmatpush1.msra.mxu0 0.0
  %188 = vmatprep.mubr.f32.mxu0 0.0
  %189 = vmatmul.mubr.f32.gmra.mrb[0].mxu0 %v29
  %v190 = vpop.f32.mrb[0].mxu0
  %v191 = vadd.f32 %v122, %v190
  %v192 = vpop.f32.mrb[0].mxu0
  %193 = vmatprep.mubr.f32.mxu0 0.0
  %194 = vmatmul.mubr.f32.gmra.mrb[0].mxu0 %v32
  %v195 = vpop.f32.mrb[0].mxu0
  %v196 = vadd.f32 %v122, %v195
  %v197 = vpop.f32.mrb[0].mxu0
  %198 = vdwg.mxu0
  %s199 = scalar_lea.vmem %s3, 16
  %200 = vst.msk [vmem:[%s199] sm:$0xff] %vm27, %v191
  %201 = vst.msk [vmem:[%s199 + $0x8] sm:$0xff] %vm27, %v196
  %s202 = scalar_lea.vmem %s1, 64
  %v203 = vld [vmem:[%s202] sm:$0xff]
  %v204 = vld [vmem:[%s202 + $0x8] sm:$0xff]
  %v205 = vld [vmem:[%s202 + $0x10] sm:$0xff]
  %v206 = vld [vmem:[%s202 + $0x18] sm:$0xff]
  %s207 = scalar_lea.vmem %s2, 2
  %v208 = vld [vmem:[%s207] sm:$0x1]
  %v210 = vlaneseq
  %v211 = vshrl.u32 %v210, 7
  %v212 = vsub.s32 0, %v211
  %v213 = vrot.slane %v208, %v212
  %215 = vmatprep.subr.mxu0 0.0
  %216 = vmatpush1.msra.mxu0 %v203
  %217 = vmatprep.subr.mxu0 0.0
  %218 = vmatpush1.msra.mxu0 %v204
  %219 = vmatprep.subr.mxu0 0.0
  %220 = vmatpush1.msra.mxu0 %v205
  %221 = vmatprep.subr.mxu0 0.0
  %222 = vmatpush1.msra.mxu0 %v206
  %223 = vmatprep.subr.mxu0 0.0
  %224 = vmatpush1.msra.mxu0 0.0
  %225 = vmatprep.subr.mxu0 0.0
  %226 = vmatpush1.msra.mxu0 0.0
  %227 = vmatprep.subr.mxu0 0.0
  %228 = vmatpush1.msra.mxu0 0.0
  %229 = vmatprep.subr.mxu0 0.0
  %230 = vmatpush1.msra.mxu0 0.0
  %231 = vmatprep.subr.mxu0 0.0
  %232 = vmatpush1.msra.mxu0 0.0
  %233 = vmatprep.subr.mxu0 0.0
  %234 = vmatpush1.msra.mxu0 0.0
  %235 = vmatprep.subr.mxu0 0.0
  %236 = vmatpush1.msra.mxu0 0.0
  %237 = vmatprep.subr.mxu0 0.0
  %238 = vmatpush1.msra.mxu0 0.0
  %239 = vmatprep.subr.mxu0 0.0
  %240 = vmatpush1.msra.mxu0 0.0
  %241 = vmatprep.subr.mxu0 0.0
  %242 = vmatpush1.msra.mxu0 0.0
  %243 = vmatprep.subr.mxu0 0.0
  %244 = vmatpush1.msra.mxu0 0.0
  %245 = vmatprep.subr.mxu0 0.0
  %246 = vmatpush1.msra.mxu0 0.0
  %247 = vmatprep.subr.mxu0 0.0
  %248 = vmatpush1.msra.mxu0 0.0
  %249 = vmatprep.subr.mxu0 0.0
  %250 = vmatpush1.msra.mxu0 0.0
  %251 = vmatprep.subr.mxu0 0.0
  %252 = vmatpush1.msra.mxu0 0.0
  %253 = vmatprep.subr.mxu0 0.0
  %254 = vmatpush1.msra.mxu0 0.0
  %255 = vmatprep.subr.mxu0 0.0
  %256 = vmatpush1.msra.mxu0 0.0
  %257 = vmatprep.subr.mxu0 0.0
  %258 = vmatpush1.msra.mxu0 0.0
  %259 = vmatprep.subr.mxu0 0.0
  %260 = vmatpush1.msra.mxu0 0.0
  %261 = vmatprep.subr.mxu0 0.0
  %262 = vmatpush1.msra.mxu0 0.0
  %263 = vmatprep.subr.mxu0 0.0
  %264 = vmatpush1.msra.mxu0 0.0
  %265 = vmatprep.subr.mxu0 0.0
  %266 = vmatpush1.msra.mxu0 0.0
  %267 = vmatprep.subr.mxu0 0.0
  %268 = vmatpush1.msra.mxu0 0.0
  %269 = vmatprep.subr.mxu0 0.0
  %270 = vmatpush1.msra.mxu0 0.0
  %271 = vmatprep.subr.mxu0 0.0
  %272 = vmatpush1.msra.mxu0 0.0
  %273 = vmatprep.subr.mxu0 0.0
  %274 = vmatpush1.msra.mxu0 0.0
  %275 = vmatprep.subr.mxu0 0.0
  %276 = vmatpush1.msra.mxu0 0.0
  %277 = vmatprep.subr.mxu0 0.0
  %278 = vmatpush1.msra.mxu0 0.0
  %279 = vmatprep.mubr.f32.mxu0 0.0
  %280 = vmatmul.mubr.f32.gmra.mrb[0].mxu0 %v29
  %v281 = vpop.f32.mrb[0].mxu0
  %v282 = vadd.f32 %v213, %v281
  %v283 = vpop.f32.mrb[0].mxu0
  %284 = vmatprep.mubr.f32.mxu0 0.0
  %285 = vmatmul.mubr.f32.gmra.mrb[0].mxu0 %v32
  %v286 = vpop.f32.mrb[0].mxu0
  %v287 = vadd.f32 %v213, %v286
  %v288 = vpop.f32.mrb[0].mxu0
  %289 = vdwg.mxu0
  %s290 = scalar_lea.vmem %s3, 32
  %291 = vst.msk [vmem:[%s290] sm:$0xff] %vm27, %v282
  %292 = vst.msk [vmem:[%s290 + $0x8] sm:$0xff] %vm27, %v287
  %s293 = scalar_lea.vmem %s1, 96
  %v294 = vld [vmem:[%s293] sm:$0xff]
  %v295 = vld [vmem:[%s293 + $0x8] sm:$0xff]
  %v296 = vld [vmem:[%s293 + $0x10] sm:$0xff]
  %v297 = vld [vmem:[%s293 + $0x18] sm:$0xff]
  %s298 = scalar_lea.vmem %s2, 3
  %v299 = vld [vmem:[%s298] sm:$0x1]
  %v301 = vlaneseq
  %v302 = vshrl.u32 %v301, 7
  %v303 = vsub.s32 0, %v302
  %v304 = vrot.slane %v299, %v303
  %306 = vmatprep.subr.mxu0 0.0
  %307 = vmatpush1.msra.mxu0 %v294
  %308 = vmatprep.subr.mxu0 0.0
  %309 = vmatpush1.msra.mxu0 %v295
  %310 = vmatprep.subr.mxu0 0.0
  %311 = vmatpush1.msra.mxu0 %v296
  %312 = vmatprep.subr.mxu0 0.0
  %313 = vmatpush1.msra.mxu0 %v297
  %314 = vmatprep.subr.mxu0 0.0
  %315 = vmatpush1.msra.mxu0 0.0
  %316 = vmatprep.subr.mxu0 0.0
  %317 = vmatpush1.msra.mxu0 0.0
  %318 = vmatprep.subr.mxu0 0.0
  %319 = vmatpush1.msra.mxu0 0.0
  %320 = vmatprep.subr.mxu0 0.0
  %321 = vmatpush1.msra.mxu0 0.0
  %322 = vmatprep.subr.mxu0 0.0
  %323 = vmatpush1.msra.mxu0 0.0
  %324 = vmatprep.subr.mxu0 0.0
  %325 = vmatpush1.msra.mxu0 0.0
  %326 = vmatprep.subr.mxu0 0.0
  %327 = vmatpush1.msra.mxu0 0.0
  %328 = vmatprep.subr.mxu0 0.0
  %329 = vmatpush1.msra.mxu0 0.0
  %330 = vmatprep.subr.mxu0 0.0
  %331 = vmatpush1.msra.mxu0 0.0
  %332 = vmatprep.subr.mxu0 0.0
  %333 = vmatpush1.msra.mxu0 0.0
  %334 = vmatprep.subr.mxu0 0.0
  %335 = vmatpush1.msra.mxu0 0.0
  %336 = vmatprep.subr.mxu0 0.0
  %337 = vmatpush1.msra.mxu0 0.0
  %338 = vmatprep.subr.mxu0 0.0
  %339 = vmatpush1.msra.mxu0 0.0
  %340 = vmatprep.subr.mxu0 0.0
  %341 = vmatpush1.msra.mxu0 0.0
  %342 = vmatprep.subr.mxu0 0.0
  %343 = vmatpush1.msra.mxu0 0.0
  %344 = vmatprep.subr.mxu0 0.0
  %345 = vmatpush1.msra.mxu0 0.0
  %346 = vmatprep.subr.mxu0 0.0
  %347 = vmatpush1.msra.mxu0 0.0
  %348 = vmatprep.subr.mxu0 0.0
  %349 = vmatpush1.msra.mxu0 0.0
  %350 = vmatprep.subr.mxu0 0.0
  %351 = vmatpush1.msra.mxu0 0.0
  %352 = vmatprep.subr.mxu0 0.0
  %353 = vmatpush1.msra.mxu0 0.0
  %354 = vmatprep.subr.mxu0 0.0
  %355 = vmatpush1.msra.mxu0 0.0
  %356 = vmatprep.subr.mxu0 0.0
  %357 = vmatpush1.msra.mxu0 0.0
  %358 = vmatprep.subr.mxu0 0.0
  %359 = vmatpush1.msra.mxu0 0.0
  %360 = vmatprep.subr.mxu0 0.0
  %361 = vmatpush1.msra.mxu0 0.0
  %362 = vmatprep.subr.mxu0 0.0
  %363 = vmatpush1.msra.mxu0 0.0
  %364 = vmatprep.subr.mxu0 0.0
  %365 = vmatpush1.msra.mxu0 0.0
  %366 = vmatprep.subr.mxu0 0.0
  %367 = vmatpush1.msra.mxu0 0.0
  %368 = vmatprep.subr.mxu0 0.0
  %369 = vmatpush1.msra.mxu0 0.0
  %370 = vmatprep.mubr.f32.mxu0 0.0
  %371 = vmatmul.mubr.f32.gmra.mrb[0].mxu0 %v29
  %v372 = vpop.f32.mrb[0].mxu0
  %v373 = vadd.f32 %v304, %v372
  %v374 = vpop.f32.mrb[0].mxu0
  %375 = vmatprep.mubr.f32.mxu0 0.0
  %376 = vmatmul.mubr.f32.gmra.mrb[0].mxu0 %v32
  %v377 = vpop.f32.mrb[0].mxu0
  %v378 = vadd.f32 %v304, %v377
  %v379 = vpop.f32.mrb[0].mxu0
  %380 = vdwg.mxu0
  %s381 = scalar_lea.vmem %s3, 48
  %382 = vst.msk [vmem:[%s381] sm:$0xff] %vm27, %v373
  %383 = vst.msk [vmem:[%s381 + $0x8] sm:$0xff] %vm27, %v378
  // Predicated region
  $region14: #{custom_sentence_encoder_forward.4} parent=0 // pred_check
    _
  $region15: #{custom_sentence_encoder_forward.4} parent=0 // pred_check_branch
    %385 = sbr.rel (0) target = $region17
  $region16: #{custom_sentence_encoder_forward.4} parent=0 // pred_region
    _
  $region17: #{custom_sentence_encoder_forward.4} parent=0 // pred_fallthru
    _
  // Predicated region
  $region18: #{custom_sentence_encoder_forward.4} parent=0 // pred_check
    _
  $region19: #{custom_sentence_encoder_forward.4} parent=0 // pred_check_branch
    %387 = sbr.rel (0) target = $region21
  $region20: #{custom_sentence_encoder_forward.4} parent=0 // pred_region
    _
  $region21: #{custom_sentence_encoder_forward.4} parent=0 // pred_fallthru
    _

// kernel: custom_sentence_encoder_forward.5
$region0: #{custom_sentence_encoder_forward.5}
  #allocation0 [shape = 'u32[]', space=smem, size = 0x4, offset = 0x4, fixed_abs, tag = 'smem constant byte address 0x4 - core index']
  #allocation1 [shape = 'u32[144,128]{1,0:T(1,128)}', space=vmem, size = 0x12000, scoped, tag = 'internal scratch']
  #allocation2 [shape = 'f32[2,32]{1,0:T(2,128)}', space=vmem, size = 0x400, scoped, tag = 'scratch operand']
  #allocation3 [shape = 'f32[2,32]{1,0:T(2,128)}', space=vmem, size = 0x400, scoped, tag = 'scratch operand']
  %s0 = inlined_call_operand.vmem [shape: f32[4,8,2,32], index: 0, kind: input, shape index: {}]
  %s1 = inlined_call_operand.vmem [shape: f32[4,32,32], index: 1, kind: input, shape index: {}]
  %s2 = inlined_call_operand.vmem [shape: f32[8,2,32], index: 2, kind: output, shape index: {}]
  %s3 = sld [smem:[#allocation0]]
  $region22: #{custom_sentence_encoder_forward.5} parent=0
    _
  %s5 = ssub.s32 1, %s3
  %s6 = scalar_select 0, %s5, %s3
  // Predicated region
  $region2: #{custom_sentence_encoder_forward.5} parent=0 // pred_check
    _
  $region3: #{custom_sentence_encoder_forward.5} parent=0 // pred_check_branch
    %8 = sbr.rel (0) target = $region5
  $region4: #{custom_sentence_encoder_forward.5} parent=0 // pred_region
    _
  $region5: #{custom_sentence_encoder_forward.5} parent=0 // pred_fallthru
    _
  // Predicated region
  $region6: #{custom_sentence_encoder_forward.5} parent=0 // pred_check
    _
  $region7: #{custom_sentence_encoder_forward.5} parent=0 // pred_check_branch
    %10 = sbr.rel (0) target = $region9
  $region8: #{custom_sentence_encoder_forward.5} parent=0 // pred_region
    _
  $region9: #{custom_sentence_encoder_forward.5} parent=0 // pred_fallthru
    _
  %p11 = scmp.eq.s32.totalorder 0, 0
  // Predicated region
  $region10: #{custom_sentence_encoder_forward.5} parent=0 // pred_check
    %p12 = pneg %p11
  $region11: #{custom_sentence_encoder_forward.5} parent=0 // pred_check_branch
    %14 = sbr.rel (%p12) target = $region13
  $region12: #{custom_sentence_encoder_forward.5} parent=0 // pred_region
    %vm15 = vcmask 254976
    %16 = vst.msk [vmem:[#allocation2] sm:$0x3] %vm15, 0.0
    %17 = vst.msk [vmem:[#allocation3] sm:$0x3] %vm15, 0.0
  $region13: #{custom_sentence_encoder_forward.5} parent=0 // pred_fallthru
    _
  %v18 = vld [vmem:[%s1] sm:$0xff]
  %v19 = vld [vmem:[%s1 + $0x8] sm:$0xff]
  %v20 = vld [vmem:[%s1 + $0x10] sm:$0xff]
  %v21 = vld [vmem:[%s1 + $0x18] sm:$0xff]
  %s22 = scalar_lea.vmem %s1, 32
  %v23 = vld [vmem:[%s22] sm:$0xff]
  %v24 = vld [vmem:[%s22 + $0x8] sm:$0xff]
  %v25 = vld [vmem:[%s22 + $0x10] sm:$0xff]
  %v26 = vld [vmem:[%s22 + $0x18] sm:$0xff]
  %s27 = scalar_lea.vmem %s1, 64
  %v28 = vld [vmem:[%s27] sm:$0xff]
  %v29 = vld [vmem:[%s27 + $0x8] sm:$0xff]
  %v30 = vld [vmem:[%s27 + $0x10] sm:$0xff]
  %v31 = vld [vmem:[%s27 + $0x18] sm:$0xff]
  %s32 = scalar_lea.vmem %s1, 96
  %v33 = vld [vmem:[%s32] sm:$0xff]
  %v34 = vld [vmem:[%s32 + $0x8] sm:$0xff]
  %v35 = vld [vmem:[%s32 + $0x10] sm:$0xff]
  %v36 = vld [vmem:[%s32 + $0x18] sm:$0xff]
  %v37 = vld [vmem:[#allocation2] sm:$0x3]
  %v38 = vld [vmem:[#allocation3] sm:$0x3]
  %v39 = vld [vmem:[%s0] sm:$0x3]
  %vm40 = vcmask 261120
  %v42 = vsel %vm40, %v37, 0
  %44 = vmatprep.subr.mxu0 0.0
  %45 = vmatpush1.msra.mxu0 %v18
  %46 = vmatprep.subr.mxu0 0.0
  %47 = vmatpush1.msra.mxu0 %v19
  %48 = vmatprep.subr.mxu0 0.0
  %49 = vmatpush1.msra.mxu0 %v20
  %50 = vmatprep.subr.mxu0 0.0
  %51 = vmatpush1.msra.mxu0 %v21
  %52 = vmatprep.subr.mxu0 0.0
  %53 = vmatpush1.msra.mxu0 0.0
  %54 = vmatprep.subr.mxu0 0.0
  %55 = vmatpush1.msra.mxu0 0.0
  %56 = vmatprep.subr.mxu0 0.0
  %57 = vmatpush1.msra.mxu0 0.0
  %58 = vmatprep.subr.mxu0 0.0
  %59 = vmatpush1.msra.mxu0 0.0
  %60 = vmatprep.subr.mxu0 0.0
  %61 = vmatpush1.msra.mxu0 0.0
  %62 = vmatprep.subr.mxu0 0.0
  %63 = vmatpush1.msra.mxu0 0.0
  %64 = vmatprep.subr.mxu0 0.0
  %65 = vmatpush1.msra.mxu0 0.0
  %66 = vmatprep.subr.mxu0 0.0
  %67 = vmatpush1.msra.mxu0 0.0
  %68 = vmatprep.subr.mxu0 0.0
  %69 = vmatpush1.msra.mxu0 0.0
  %70 = vmatprep.subr.mxu0 0.0
  %71 = vmatpush1.msra.mxu0 0.0
  %72 = vmatprep.subr.mxu0 0.0
  %73 = vmatpush1.msra.mxu0 0.0
  %74 = vmatprep.subr.mxu0 0.0
  %75 = vmatpush1.msra.mxu0 0.0
  %76 = vmatprep.subr.mxu0 0.0
  %77 = vmatpush1.msra.mxu0 0.0
  %78 = vmatprep.subr.mxu0 0.0
  %79 = vmatpush1.msra.mxu0 0.0
  %80 = vmatprep.subr.mxu0 0.0
  %81 = vmatpush1.msra.mxu0 0.0
  %82 = vmatprep.subr.mxu0 0.0
  %83 = vmatpush1.msra.mxu0 0.0
  %84 = vmatprep.subr.mxu0 0.0
  %85 = vmatpush1.msra.mxu0 0.0
  %86 = vmatprep.subr.mxu0 0.0
  %87 = vmatpush1.msra.mxu0 0.0
  %88 = vmatprep.subr.mxu0 0.0
  %89 = vmatpush1.msra.mxu0 0.0
  %90 = vmatprep.subr.mxu0 0.0
  %91 = vmatpush1.msra.mxu0 0.0
  %92 = vmatprep.subr.mxu0 0.0
  %93 = vmatpush1.msra.mxu0 0.0
  %94 = vmatprep.subr.mxu0 0.0
  %95 = vmatpush1.msra.mxu0 0.0
  %96 = vmatprep.subr.mxu0 0.0
  %97 = vmatpush1.msra.mxu0 0.0
  %98 = vmatprep.subr.mxu0 0.0
  %99 = vmatpush1.msra.mxu0 0.0
  %100 = vmatprep.subr.mxu0 0.0
  %101 = vmatpush1.msra.mxu0 0.0
  %102 = vmatprep.subr.mxu0 0.0
  %103 = vmatpush1.msra.mxu0 0.0
  %104 = vmatprep.subr.mxu0 0.0
  %105 = vmatpush1.msra.mxu0 0.0
  %106 = vmatprep.subr.mxu0 0.0
  %107 = vmatpush1.msra.mxu0 0.0
  %108 = vmatprep.mubr.f32.mxu0 0.0
  %109 = vmatmul.mubr.f32.gmra.mrb[0].mxu0 %v42
  %v110 = vpop.f32.mrb[0].mxu0
  %v111 = vadd.f32 0.0, %v110
  %v112 = vpop.f32.mrb[0].mxu0
  %113 = vdwg.mxu0
  %v114 = vadd.f32 %v39, %v111
  %s115 = scalar_lea.vmem %s0, 16
  %v116 = vld [vmem:[%s115] sm:$0x3]
  %117 = vmatprep.subr.mxu0 0.0
  %118 = vmatpush1.msra.mxu0 %v23
  %119 = vmatprep.subr.mxu0 0.0
  %120 = vmatpush1.msra.mxu0 %v24
  %121 = vmatprep.subr.mxu0 0.0
  %122 = vmatpush1.msra.mxu0 %v25
  %123 = vmatprep.subr.mxu0 0.0
  %124 = vmatpush1.msra.mxu0 %v26
  %125 = vmatprep.subr.mxu0 0.0
  %126 = vmatpush1.msra.mxu0 0.0
  %127 = vmatprep.subr.mxu0 0.0
  %128 = vmatpush1.msra.mxu0 0.0
  %129 = vmatprep.subr.mxu0 0.0
  %130 = vmatpush1.msra.mxu0 0.0
  %131 = vmatprep.subr.mxu0 0.0
  %132 = vmatpush1.msra.mxu0 0.0
  %133 = vmatprep.subr.mxu0 0.0
  %134 = vmatpush1.msra.mxu0 0.0
  %135 = vmatprep.subr.mxu0 0.0
  %136 = vmatpush1.msra.mxu0 0.0
  %137 = vmatprep.subr.mxu0 0.0
  %138 = vmatpush1.msra.mxu0 0.0
  %139 = vmatprep.subr.mxu0 0.0
  %140 = vmatpush1.msra.mxu0 0.0
  %141 = vmatprep.subr.mxu0 0.0
  %142 = vmatpush1.msra.mxu0 0.0
  %143 = vmatprep.subr.mxu0 0.0
  %144 = vmatpush1.msra.mxu0 0.0
  %145 = vmatprep.subr.mxu0 0.0
  %146 = vmatpush1.msra.mxu0 0.0
  %147 = vmatprep.subr.mxu0 0.0
  %148 = vmatpush1.msra.mxu0 0.0
  %149 = vmatprep.subr.mxu0 0.0
  %150 = vmatpush1.msra.mxu0 0.0
  %151 = vmatprep.subr.mxu0 0.0
  %152 = vmatpush1.msra.mxu0 0.0
  %153 = vmatprep.subr.mxu0 0.0
  %154 = vmatpush1.msra.mxu0 0.0
  %155 = vmatprep.subr.mxu0 0.0
  %156 = vmatpush1.msra.mxu0 0.0
  %157 = vmatprep.subr.mxu0 0.0
  %158 = vmatpush1.msra.mxu0 0.0
  %159 = vmatprep.subr.mxu0 0.0
  %160 = vmatpush1.msra.mxu0 0.0
  %161 = vmatprep.subr.mxu0 0.0
  %162 = vmatpush1.msra.mxu0 0.0
  %163 = vmatprep.subr.mxu0 0.0
  %164 = vmatpush1.msra.mxu0 0.0
  %165 = vmatprep.subr.mxu0 0.0
  %166 = vmatpush1.msra.mxu0 0.0
  %167 = vmatprep.subr.mxu0 0.0
  %168 = vmatpush1.msra.mxu0 0.0
  %169 = vmatprep.subr.mxu0 0.0
  %170 = vmatpush1.msra.mxu0 0.0
  %171 = vmatprep.subr.mxu0 0.0
  %172 = vmatpush1.msra.mxu0 0.0
  %173 = vmatprep.subr.mxu0 0.0
  %174 = vmatpush1.msra.mxu0 0.0
  %175 = vmatprep.subr.mxu0 0.0
  %176 = vmatpush1.msra.mxu0 0.0
  %177 = vmatprep.subr.mxu0 0.0
  %178 = vmatpush1.msra.mxu0 0.0
  %179 = vmatprep.subr.mxu0 0.0
  %180 = vmatpush1.msra.mxu0 0.0
  %181 = vmatprep.mubr.f32.mxu0 0.0
  %182 = vmatmul.mubr.f32.gmra.mrb[0].mxu0 %v42
  %v183 = vpop.f32.mrb[0].mxu0
  %v184 = vadd.f32 0.0, %v183
  %v185 = vpop.f32.mrb[0].mxu0
  %186 = vdwg.mxu0
  %v187 = vadd.f32 %v116, %v184
  %s188 = scalar_lea.vmem %s0, 32
  %v189 = vld [vmem:[%s188] sm:$0x3]
  %190 = vmatprep.subr.mxu0 0.0
  %191 = vmatpush1.msra.mxu0 %v28
  %192 = vmatprep.subr.mxu0 0.0
  %193 = vmatpush1.msra.mxu0 %v29
  %194 = vmatprep.subr.mxu0 0.0
  %195 = vmatpush1.msra.mxu0 %v30
  %196 = vmatprep.subr.mxu0 0.0
  %197 = vmatpush1.msra.mxu0 %v31
  %198 = vmatprep.subr.mxu0 0.0
  %199 = vmatpush1.msra.mxu0 0.0
  %200 = vmatprep.subr.mxu0 0.0
  %201 = vmatpush1.msra.mxu0 0.0
  %202 = vmatprep.subr.mxu0 0.0
  %203 = vmatpush1.msra.mxu0 0.0
  %204 = vmatprep.subr.mxu0 0.0
  %205 = vmatpush1.msra.mxu0 0.0
  %206 = vmatprep.subr.mxu0 0.0
  %207 = vmatpush1.msra.mxu0 0.0
  %208 = vmatprep.subr.mxu0 0.0
  %209 = vmatpush1.msra.mxu0 0.0
  %210 = vmatprep.subr.mxu0 0.0
  %211 = vmatpush1.msra.mxu0 0.0
  %212 = vmatprep.subr.mxu0 0.0
  %213 = vmatpush1.msra.mxu0 0.0
  %214 = vmatprep.subr.mxu0 0.0
  %215 = vmatpush1.msra.mxu0 0.0
  %216 = vmatprep.subr.mxu0 0.0
  %217 = vmatpush1.msra.mxu0 0.0
  %218 = vmatprep.subr.mxu0 0.0
  %219 = vmatpush1.msra.mxu0 0.0
  %220 = vmatprep.subr.mxu0 0.0
  %221 = vmatpush1.msra.mxu0 0.0
  %222 = vmatprep.subr.mxu0 0.0
  %223 = vmatpush1.msra.mxu0 0.0
  %224 = vmatprep.subr.mxu0 0.0
  %225 = vmatpush1.msra.mxu0 0.0
  %226 = vmatprep.subr.mxu0 0.0
  %227 = vmatpush1.msra.mxu0 0.0
  %228 = vmatprep.subr.mxu0 0.0
  %229 = vmatpush1.msra.mxu0 0.0
  %230 = vmatprep.subr.mxu0 0.0
  %231 = vmatpush1.msra.mxu0 0.0
  %232 = vmatprep.subr.mxu0 0.0
  %233 = vmatpush1.msra.mxu0 0.0
  %234 = vmatprep.subr.mxu0 0.0
  %235 = vmatpush1.msra.mxu0 0.0
  %236 = vmatprep.subr.mxu0 0.0
  %237 = vmatpush1.msra.mxu0 0.0
  %238 = vmatprep.subr.mxu0 0.0
  %239 = vmatpush1.msra.mxu0 0.0
  %240 = vmatprep.subr.mxu0 0.0
  %241 = vmatpush1.msra.mxu0 0.0
  %242 = vmatprep.subr.mxu0 0.0
  %243 = vmatpush1.msra.mxu0 0.0
  %244 = vmatprep.subr.mxu0 0.0
  %245 = vmatpush1.msra.mxu0 0.0
  %246 = vmatprep.subr.mxu0 0.0
  %247 = vmatpush1.msra.mxu0 0.0
  %248 = vmatprep.subr.mxu0 0.0
  %249 = vmatpush1.msra.mxu0 0.0
  %250 = vmatprep.subr.mxu0 0.0
  %251 = vmatpush1.msra.mxu0 0.0
  %252 = vmatprep.subr.mxu0 0.0
  %253 = vmatpush1.msra.mxu0 0.0
  %254 = vmatprep.mubr.f32.mxu0 0.0
  %255 = vmatmul.mubr.f32.gmra.mrb[0].mxu0 %v42
  %v256 = vpop.f32.mrb[0].mxu0
  %v257 = vadd.f32 0.0, %v256
  %v258 = vpop.f32.mrb[0].mxu0
  %259 = vdwg.mxu0
  %v260 = vadd.f32 %v189, %v257
  %s261 = scalar_lea.vmem %s0, 48
  %v262 = vld [vmem:[%s261] sm:$0x3]
  %263 = vmatprep.subr.mxu0 0.0
  %264 = vmatpush1.msra.mxu0 %v33
  %265 = vmatprep.subr.mxu0 0.0
  %266 = vmatpush1.msra.mxu0 %v34
  %267 = vmatprep.subr.mxu0 0.0
  %268 = vmatpush1.msra.mxu0 %v35
  %269 = vmatprep.subr.mxu0 0.0
  %270 = vmatpush1.msra.mxu0 %v36
  %271 = vmatprep.subr.mxu0 0.0
  %272 = vmatpush1.msra.mxu0 0.0
  %273 = vmatprep.subr.mxu0 0.0
  %274 = vmatpush1.msra.mxu0 0.0
  %275 = vmatprep.subr.mxu0 0.0
  %276 = vmatpush1.msra.mxu0 0.0
  %277 = vmatprep.subr.mxu0 0.0
  %278 = vmatpush1.msra.mxu0 0.0
  %279 = vmatprep.subr.mxu0 0.0
  %280 = vmatpush1.msra.mxu0 0.0
  %281 = vmatprep.subr.mxu0 0.0
  %282 = vmatpush1.msra.mxu0 0.0
  %283 = vmatprep.subr.mxu0 0.0
  %284 = vmatpush1.msra.mxu0 0.0
  %285 = vmatprep.subr.mxu0 0.0
  %286 = vmatpush1.msra.mxu0 0.0
  %287 = vmatprep.subr.mxu0 0.0
  %288 = vmatpush1.msra.mxu0 0.0
  %289 = vmatprep.subr.mxu0 0.0
  %290 = vmatpush1.msra.mxu0 0.0
  %291 = vmatprep.subr.mxu0 0.0
  %292 = vmatpush1.msra.mxu0 0.0
  %293 = vmatprep.subr.mxu0 0.0
  %294 = vmatpush1.msra.mxu0 0.0
  %295 = vmatprep.subr.mxu0 0.0
  %296 = vmatpush1.msra.mxu0 0.0
  %297 = vmatprep.subr.mxu0 0.0
  %298 = vmatpush1.msra.mxu0 0.0
  %299 = vmatprep.subr.mxu0 0.0
  %300 = vmatpush1.msra.mxu0 0.0
  %301 = vmatprep.subr.mxu0 0.0
  %302 = vmatpush1.msra.mxu0 0.0
  %303 = vmatprep.subr.mxu0 0.0
  %304 = vmatpush1.msra.mxu0 0.0
  %305 = vmatprep.subr.mxu0 0.0
  %306 = vmatpush1.msra.mxu0 0.0
  %307 = vmatprep.subr.mxu0 0.0
  %308 = vmatpush1.msra.mxu0 0.0
  %309 = vmatprep.subr.mxu0 0.0
  %310 = vmatpush1.msra.mxu0 0.0
  %311 = vmatprep.subr.mxu0 0.0
  %312 = vmatpush1.msra.mxu0 0.0
  %313 = vmatprep.subr.mxu0 0.0
  %314 = vmatpush1.msra.mxu0 0.0
  %315 = vmatprep.subr.mxu0 0.0
  %316 = vmatpush1.msra.mxu0 0.0
  %317 = vmatprep.subr.mxu0 0.0
  %318 = vmatpush1.msra.mxu0 0.0
  %319 = vmatprep.subr.mxu0 0.0
  %320 = vmatpush1.msra.mxu0 0.0
  %321 = vmatprep.subr.mxu0 0.0
  %322 = vmatpush1.msra.mxu0 0.0
  %323 = vmatprep.subr.mxu0 0.0
  %324 = vmatpush1.msra.mxu0 0.0
  %325 = vmatprep.subr.mxu0 0.0
  %326 = vmatpush1.msra.mxu0 0.0
  %327 = vmatprep.mubr.f32.mxu0 0.0
  %328 = vmatmul.mubr.f32.gmra.mrb[0].mxu0 %v42
  %v329 = vpop.f32.mrb[0].mxu0
  %v330 = vadd.f32 0.0, %v329
  %v331 = vpop.f32.mrb[0].mxu0
  %332 = vdwg.mxu0
  %v333 = vadd.f32 %v262, %v330
  %v334 = vxor.u32 %v114, 2147483648
  %v335 = vmul.f32 %v334, 1.442695
  %v336 = vpow.pop %v335
  %v337 = vadd.f32 %v336, 1.0
  %v338 = vrcp.pop %v337
  %v339 = vmul.f32 1.0, %v338
  %v340 = vxor.u32 %v187, 2147483648
  %v341 = vmul.f32 %v340, 1.442695
  %v342 = vpow.pop %v341
  %v343 = vadd.f32 %v342, 1.0
  %v344 = vrcp.pop %v343
  %v345 = vmul.f32 1.0, %v344
  %v346 = vtanh.pop %v260
  %v347 = vxor.u32 %v333, 2147483648
  %v348 = vmul.f32 %v347, 1.442695
  %v349 = vpow.pop %v348
  %v350 = vadd.f32 %v349, 1.0
  %v351 = vrcp.pop %v350
  %v352 = vmul.f32 1.0, %v351
  %v353 = vmul.f32 %v345, %v38
  %v354 = vmul.f32 %v339, %v346
  %v355 = vadd.f32 %v353, %v354
  %v356 = vtanh.pop %v355
  %v357 = vmul.f32 %v352, %v356
  %vm358 = vcmask 254976
  %359 = vst.msk [vmem:[%s2] sm:$0x3] %vm358, %v357
  %s360 = scalar_lea.vmem %s0, 2
  %v361 = vld [vmem:[%s360] sm:$0x3]
  %v363 = vsel %vm40, %v357, 0
  %365 = vmatprep.subr.mxu0 0.0
  %366 = vmatpush1.msra.mxu0 %v18
  %367 = vmatprep.subr.mxu0 0.0
  %368 = vmatpush1.msra.mxu0 %v19
  %369 = vmatprep.subr.mxu0 0.0
  %370 = vmatpush1.msra.mxu0 %v20
  %371 = vmatprep.subr.mxu0 0.0
  %372 = vmatpush1.msra.mxu0 %v21
  %373 = vmatprep.subr.mxu0 0.0
  %374 = vmatpush1.msra.mxu0 0.0
  %375 = vmatprep.subr.mxu0 0.0
  %376 = vmatpush1.msra.mxu0 0.0
  %377 = vmatprep.subr.mxu0 0.0
  %378 = vmatpush1.msra.mxu0 0.0
  %379 = vmatprep.subr.mxu0 0.0
  %380 = vmatpush1.msra.mxu0 0.0
  %381 = vmatprep.subr.mxu0 0.0
  %382 = vmatpush1.msra.mxu0 0.0
  %383 = vmatprep.subr.mxu0 0.0
  %384 = vmatpush1.msra.mxu0 0.0
  %385 = vmatprep.subr.mxu0 0.0
  %386 = vmatpush1.msra.mxu0 0.0
  %387 = vmatprep.subr.mxu0 0.0
  %388 = vmatpush1.msra.mxu0 0.0
  %389 = vmatprep.subr.mxu0 0.0
  %390 = vmatpush1.msra.mxu0 0.0
  %391 = vmatprep.subr.mxu0 0.0
  %392 = vmatpush1.msra.mxu0 0.0
  %393 = vmatprep.subr.mxu0 0.0
  %394 = vmatpush1.msra.mxu0 0.0
  %395 = vmatprep.subr.mxu0 0.0
  %396 = vmatpush1.msra.mxu0 0.0
  %397 = vmatprep.subr.mxu0 0.0
  %398 = vmatpush1.msra.mxu0 0.0
  %399 = vmatprep.subr.mxu0 0.0
  %400 = vmatpush1.msra.mxu0 0.0
  %401 = vmatprep.subr.mxu0 0.0
  %402 = vmatpush1.msra.mxu0 0.0
  %403 = vmatprep.subr.mxu0 0.0
  %404 = vmatpush1.msra.mxu0 0.0
  %405 = vmatprep.subr.mxu0 0.0
  %406 = vmatpush1.msra.mxu0 0.0
  %407 = vmatprep.subr.mxu0 0.0
  %408 = vmatpush1.msra.mxu0 0.0
  %409 = vmatprep.subr.mxu0 0.0
  %410 = vmatpush1.msra.mxu0 0.0
  %411 = vmatprep.subr.mxu0 0.0
  %412 = vmatpush1.msra.mxu0 0.0
  %413 = vmatprep.subr.mxu0 0.0
  %414 = vmatpush1.msra.mxu0 0.0
  %415 = vmatprep.subr.mxu0 0.0
  %416 = vmatpush1.msra.mxu0 0.0
  %417 = vmatprep.subr.mxu0 0.0
  %418 = vmatpush1.msra.mxu0 0.0
  %419 = vmatprep.subr.mxu0 0.0
  %420 = vmatpush1.msra.mxu0 0.0
  %421 = vmatprep.subr.mxu0 0.0
  %422 = vmatpush1.msra.mxu0 0.0
  %423 = vmatprep.subr.mxu0 0.0
  %424 = vmatpush1.msra.mxu0 0.0
  %425 = vmatprep.subr.mxu0 0.0
  %426 = vmatpush1.msra.mxu0 0.0
  %427 = vmatprep.subr.mxu0 0.0
  %428 = vmatpush1.msra.mxu0 0.0
  %429 = vmatprep.mubr.f32.mxu0 0.0
  %430 = vmatmul.mubr.f32.gmra.mrb[0].mxu0 %v363
  %v431 = vpop.f32.mrb[0].mxu0
  %v432 = vadd.f32 0.0, %v431
  %v433 = vpop.f32.mrb[0].mxu0
  %434 = vdwg.mxu0
  %v435 = vadd.f32 %v361, %v432
  %s436 = scalar_lea.vmem %s0, 18
  %v437 = vld [vmem:[%s436] sm:$0x3]
  %438 = vmatprep.subr.mxu0 0.0
  %439 = vmatpush1.msra.mxu0 %v23
  %440 = vmatprep.subr.mxu0 0.0
  %441 = vmatpush1.msra.mxu0 %v24
  %442 = vmatprep.subr.mxu0 0.0
  %443 = vmatpush1.msra.mxu0 %v25
  %444 = vmatprep.subr.mxu0 0.0
  %445 = vmatpush1.msra.mxu0 %v26
  %446 = vmatprep.subr.mxu0 0.0
  %447 = vmatpush1.msra.mxu0 0.0
  %448 = vmatprep.subr.mxu0 0.0
  %449 = vmatpush1.msra.mxu0 0.0
  %450 = vmatprep.subr.mxu0 0.0
  %451 = vmatpush1.msra.mxu0 0.0
  %452 = vmatprep.subr.mxu0 0.0
  %453 = vmatpush1.msra.mxu0 0.0
  %454 = vmatprep.subr.mxu0 0.0
  %455 = vmatpush1.msra.mxu0 0.0
  %456 = vmatprep.subr.mxu0 0.0
  %457 = vmatpush1.msra.mxu0 0.0
  %458 = vmatprep.subr.mxu0 0.0
  %459 = vmatpush1.msra.mxu0 0.0
  %460 = vmatprep.subr.mxu0 0.0
  %461 = vmatpush1.msra.mxu0 0.0
  %462 = vmatprep.subr.mxu0 0.0
  %463 = vmatpush1.msra.mxu0 0.0
  %464 = vmatprep.subr.mxu0 0.0
  %465 = vmatpush1.msra.mxu0 0.0
  %466 = vmatprep.subr.mxu0 0.0
  %467 = vmatpush1.msra.mxu0 0.0
  %468 = vmatprep.subr.mxu0 0.0
  %469 = vmatpush1.msra.mxu0 0.0
  %470 = vmatprep.subr.mxu0 0.0
  %471 = vmatpush1.msra.mxu0 0.0
  %472 = vmatprep.subr.mxu0 0.0
  %473 = vmatpush1.msra.mxu0 0.0
  %474 = vmatprep.subr.mxu0 0.0
  %475 = vmatpush1.msra.mxu0 0.0
  %476 = vmatprep.subr.mxu0 0.0
  %477 = vmatpush1.msra.mxu0 0.0
  %478 = vmatprep.subr.mxu0 0.0
  %479 = vmatpush1.msra.mxu0 0.0
  %480 = vmatprep.subr.mxu0 0.0
  %481 = vmatpush1.msra.mxu0 0.0
  %482 = vmatprep.subr.mxu0 0.0
  %483 = vmatpush1.msra.mxu0 0.0
  %484 = vmatprep.subr.mxu0 0.0
  %485 = vmatpush1.msra.mxu0 0.0
  %486 = vmatprep.subr.mxu0 0.0
  %487 = vmatpush1.msra.mxu0 0.0
  %488 = vmatprep.subr.mxu0 0.0
  %489 = vmatpush1.msra.mxu0 0.0
  %490 = vmatprep.subr.mxu0 0.0
  %491 = vmatpush1.msra.mxu0 0.0
  %492 = vmatprep.subr.mxu0 0.0
  %493 = vmatpush1.msra.mxu0 0.0
  %494 = vmatprep.subr.mxu0 0.0
  %495 = vmatpush1.msra.mxu0 0.0
  %496 = vmatprep.subr.mxu0 0.0
  %497 = vmatpush1.msra.mxu0 0.0
  %498 = vmatprep.subr.mxu0 0.0
  %499 = vmatpush1.msra.mxu0 0.0
  %500 = vmatprep.subr.mxu0 0.0
  %501 = vmatpush1.msra.mxu0 0.0
  %502 = vmatprep.mubr.f32.mxu0 0.0
  %503 = vmatmul.mubr.f32.gmra.mrb[0].mxu0 %v363
  %v504 = vpop.f32.mrb[0].mxu0
  %v505 = vadd.f32 0.0, %v504
  %v506 = vpop.f32.mrb[0].mxu0
  %507 = vdwg.mxu0
  %v508 = vadd.f32 %v437, %v505
  %s509 = scalar_lea.vmem %s0, 34
  %v510 = vld [vmem:[%s509] sm:$0x3]
  %511 = vmatprep.subr.mxu0 0.0
  %512 = vmatpush1.msra.mxu0 %v28
  %513 = vmatprep.subr.mxu0 0.0
  %514 = vmatpush1.msra.mxu0 %v29
  %515 = vmatprep.subr.mxu0 0.0
  %516 = vmatpush1.msra.mxu0 %v30
  %517 = vmatprep.subr.mxu0 0.0
  %518 = vmatpush1.msra.mxu0 %v31
  %519 = vmatprep.subr.mxu0 0.0
  %520 = vmatpush1.msra.mxu0 0.0
  %521 = vmatprep.subr.mxu0 0.0
  %522 = vmatpush1.msra.mxu0 0.0
  %523 = vmatprep.subr.mxu0 0.0
  %524 = vmatpush1.msra.mxu0 0.0
  %525 = vmatprep.subr.mxu0 0.0
  %526 = vmatpush1.msra.mxu0 0.0
  %527 = vmatprep.subr.mxu0 0.0
  %528 = vmatpush1.msra.mxu0 0.0
  %529 = vmatprep.subr.mxu0 0.0
  %530 = vmatpush1.msra.mxu0 0.0
  %531 = vmatprep.subr.mxu0 0.0
  %532 = vmatpush1.msra.mxu0 0.0
  %533 = vmatprep.subr.mxu0 0.0
  %534 = vmatpush1.msra.mxu0 0.0
  %535 = vmatprep.subr.mxu0 0.0
  %536 = vmatpush1.msra.mxu0 0.0
  %537 = vmatprep.subr.mxu0 0.0
  %538 = vmatpush1.msra.mxu0 0.0
  %539 = vmatprep.subr.mxu0 0.0
  %540 = vmatpush1.msra.mxu0 0.0
  %541 = vmatprep.subr.mxu0 0.0
  %542 = vmatpush1.msra.mxu0 0.0
  %543 = vmatprep.subr.mxu0 0.0
  %544 = vmatpush1.msra.mxu0 0.0
  %545 = vmatprep.subr.mxu0 0.0
  %546 = vmatpush1.msra.mxu0 0.0
  %547 = vmatprep.subr.mxu0 0.0
  %548 = vmatpush1.msra.mxu0 0.0
  %549 = vmatprep.subr.mxu0 0.0
  %550 = vmatpush1.msra.mxu0 0.0
  %551 = vmatprep.subr.mxu0 0.0
  %552 = vmatpush1.msra.mxu0 0.0
  %553 = vmatprep.subr.mxu0 0.0
  %554 = vmatpush1.msra.mxu0 0.0
  %555 = vmatprep.subr.mxu0 0.0
  %556 = vmatpush1.msra.mxu0 0.0
  %557 = vmatprep.subr.mxu0 0.0
  %558 = vmatpush1.msra.mxu0 0.0
  %559 = vmatprep.subr.mxu0 0.0
  %560 = vmatpush1.msra.mxu0 0.0
  %561 = vmatprep.subr.mxu0 0.0
  %562 = vmatpush1.msra.mxu0 0.0
  %563 = vmatprep.subr.mxu0 0.0
  %564 = vmatpush1.msra.mxu0 0.0
  %565 = vmatprep.subr.mxu0 0.0
  %566 = vmatpush1.msra.mxu0 0.0
  %567 = vmatprep.subr.mxu0 0.0
  %568 = vmatpush1.msra.mxu0 0.0
  %569 = vmatprep.subr.mxu0 0.0
  %570 = vmatpush1.msra.mxu0 0.0
  %571 = vmatprep.subr.mxu0 0.0
  %572 = vmatpush1.msra.mxu0 0.0
  %573 = vmatprep.subr.mxu0 0.0
  %574 = vmatpush1.msra.mxu0 0.0
  %575 = vmatprep.mubr.f32.mxu0 0.0
  %576 = vmatmul.mubr.f32.gmra.mrb[0].mxu0 %v363
  %v577 = vpop.f32.mrb[0].mxu0
  %v578 = vadd.f32 0.0, %v577
  %v579 = vpop.f32.mrb[0].mxu0
  %580 = vdwg.mxu0
  %v581 = vadd.f32 %v510, %v578
  %s582 = scalar_lea.vmem %s0, 50
  %v583 = vld [vmem:[%s582] sm:$0x3]
  %584 = vmatprep.subr.mxu0 0.0
  %585 = vmatpush1.msra.mxu0 %v33
  %586 = vmatprep.subr.mxu0 0.0
  %587 = vmatpush1.msra.mxu0 %v34
  %588 = vmatprep.subr.mxu0 0.0
  %589 = vmatpush1.msra.mxu0 %v35
  %590 = vmatprep.subr.mxu0 0.0
  %591 = vmatpush1.msra.mxu0 %v36
  %592 = vmatprep.subr.mxu0 0.0
  %593 = vmatpush1.msra.mxu0 0.0
  %594 = vmatprep.subr.mxu0 0.0
  %595 = vmatpush1.msra.mxu0 0.0
  %596 = vmatprep.subr.mxu0 0.0
  %597 = vmatpush1.msra.mxu0 0.0
  %598 = vmatprep.subr.mxu0 0.0
  %599 = vmatpush1.msra.mxu0 0.0
  %600 = vmatprep.subr.mxu0 0.0
  %601 = vmatpush1.msra.mxu0 0.0
  %602 = vmatprep.subr.mxu0 0.0
  %603 = vmatpush1.msra.mxu0 0.0
  %604 = vmatprep.subr.mxu0 0.0
  %605 = vmatpush1.msra.mxu0 0.0
  %606 = vmatprep.subr.mxu0 0.0
  %607 = vmatpush1.msra.mxu0 0.0
  %608 = vmatprep.subr.mxu0 0.0
  %609 = vmatpush1.msra.mxu0 0.0
  %610 = vmatprep.subr.mxu0 0.0
  %611 = vmatpush1.msra.mxu0 0.0
  %612 = vmatprep.subr.mxu0 0.0
  %613 = vmatpush1.msra.mxu0 0.0
  %614 = vmatprep.subr.mxu0 0.0
  %615 = vmatpush1.msra.mxu0 0.0
  %616 = vmatprep.subr.mxu0 0.0
  %617 = vmatpush1.msra.mxu0 0.0
  %618 = vmatprep.subr.mxu0 0.0
  %619 = vmatpush1.msra.mxu0 0.0
  %620 = vmatprep.subr.mxu0 0.0
  %621 = vmatpush1.msra.mxu0 0.0
  %622 = vmatprep.subr.mxu0 0.0
  %623 = vmatpush1.msra.mxu0 0.0
  %624 = vmatprep.subr.mxu0 0.0
  %625 = vmatpush1.msra.mxu0 0.0
  %626 = vmatprep.subr.mxu0 0.0
  %627 = vmatpush1.msra.mxu0 0.0
  %628 = vmatprep.subr.mxu0 0.0
  %629 = vmatpush1.msra.mxu0 0.0
  %630 = vmatprep.subr.mxu0 0.0
  %631 = vmatpush1.msra.mxu0 0.0
  %632 = vmatprep.subr.mxu0 0.0
  %633 = vmatpush1.msra.mxu0 0.0
  %634 = vmatprep.subr.mxu0 0.0
  %635 = vmatpush1.msra.mxu0 0.0
  %636 = vmatprep.subr.mxu0 0.0
  %637 = vmatpush1.msra.mxu0 0.0
  %638 = vmatprep.subr.mxu0 0.0
  %639 = vmatpush1.msra.mxu0 0.0
  %640 = vmatprep.subr.mxu0 0.0
  %641 = vmatpush1.msra.mxu0 0.0
  %642 = vmatprep.subr.mxu0 0.0
  %643 = vmatpush1.msra.mxu0 0.0
  %644 = vmatprep.subr.mxu0 0.0
  %645 = vmatpush1.msra.mxu0 0.0
  %646 = vmatprep.subr.mxu0 0.0
  %647 = vmatpush1.msra.mxu0 0.0
  %648 = vmatprep.mubr.f32.mxu0 0.0
  %649 = vmatmul.mubr.f32.gmra.mrb[0].mxu0 %v363
  %v650 = vpop.f32.mrb[0].mxu0
  %v651 = vadd.f32 0.0, %v650
  %v652 = vpop.f32.mrb[0].mxu0
  %653 = vdwg.mxu0
  %v654 = vadd.f32 %v583, %v651
  %v655 = vxor.u32 %v435, 2147483648
  %v656 = vmul.f32 %v655, 1.442695
  %v657 = vpow.pop %v656
  %v658 = vadd.f32 %v657, 1.0
  %v659 = vrcp.pop %v658
  %v660 = vmul.f32 1.0, %v659
  %v661 = vxor.u32 %v508, 2147483648
  %v662 = vmul.f32 %v661, 1.442695
  %v663 = vpow.pop %v662
  %v664 = vadd.f32 %v663, 1.0
  %v665 = vrcp.pop %v664
  %v666 = vmul.f32 1.0, %v665
  %v667 = vtanh.pop %v581
  %v668 = vxor.u32 %v654, 2147483648
  %v669 = vmul.f32 %v668, 1.442695
  %v670 = vpow.pop %v669
  %v671 = vadd.f32 %v670, 1.0
  %v672 = vrcp.pop %v671
  %v673 = vmul.f32 1.0, %v672
  %v674 = vmul.f32 %v666, %v355
  %v675 = vmul.f32 %v660, %v667
  %v676 = vadd.f32 %v674, %v675
  %v677 = vtanh.pop %v676
  %v678 = vmul.f32 %v673, %v677
  %s679 = scalar_lea.vmem %s2, 2
  %680 = vst.msk [vmem:[%s679] sm:$0x3] %vm358, %v678
  %s681 = scalar_lea.vmem %s0, 4
  %v682 = vld [vmem:[%s681] sm:$0x3]
  %v684 = vsel %vm40, %v678, 0
  %686 = vmatprep.subr.mxu0 0.0
  %687 = vmatpush1.msra.mxu0 %v18
  %688 = vmatprep.subr.mxu0 0.0
  %689 = vmatpush1.msra.mxu0 %v19
  %690 = vmatprep.subr.mxu0 0.0
  %691 = vmatpush1.msra.mxu0 %v20
  %692 = vmatprep.subr.mxu0 0.0
  %693 = vmatpush1.msra.mxu0 %v21
  %694 = vmatprep.subr.mxu0 0.0
  %695 = vmatpush1.msra.mxu0 0.0
  %696 = vmatprep.subr.mxu0 0.0
  %697 = vmatpush1.msra.mxu0 0.0
  %698 = vmatprep.subr.mxu0 0.0
  %699 = vmatpush1.msra.mxu0 0.0
  %700 = vmatprep.subr.mxu0 0.0
  %701 = vmatpush1.msra.mxu0 0.0
  %702 = vmatprep.subr.mxu0 0.0
  %703 = vmatpush1.msra.mxu0 0.0
  %704 = vmatprep.subr.mxu0 0.0
  %705 = vmatpush1.msra.mxu0 0.0
  %706 = vmatprep.subr.mxu0 0.0
  %707 = vmatpush1.msra.mxu0 0.0
  %708 = vmatprep.subr.mxu0 0.0
  %709 = vmatpush1.msra.mxu0 0.0
  %710 = vmatprep.subr.mxu0 0.0
  %711 = vmatpush1.msra.mxu0 0.0
  %712 = vmatprep.subr.mxu0 0.0
  %713 = vmatpush1.msra.mxu0 0.0
  %714 = vmatprep.subr.mxu0 0.0
  %715 = vmatpush1.msra.mxu0 0.0
  %716 = vmatprep.subr.mxu0 0.0
  %717 = vmatpush1.msra.mxu0 0.0
  %718 = vmatprep.subr.mxu0 0.0
  %719 = vmatpush1.msra.mxu0 0.0
  %720 = vmatprep.subr.mxu0 0.0
  %721 = vmatpush1.msra.mxu0 0.0
  %722 = vmatprep.subr.mxu0 0.0
  %723 = vmatpush1.msra.mxu0 0.0
  %724 = vmatprep.subr.mxu0 0.0
  %725 = vmatpush1.msra.mxu0 0.0
  %726 = vmatprep.subr.mxu0 0.0
  %727 = vmatpush1.msra.mxu0 0.0
  %728 = vmatprep.subr.mxu0 0.0
  %729 = vmatpush1.msra.mxu0 0.0
  %730 = vmatprep.subr.mxu0 0.0
  %731 = vmatpush1.msra.mxu0 0.0
  %732 = vmatprep.subr.mxu0 0.0
  %733 = vmatpush1.msra.mxu0 0.0
  %734 = vmatprep.subr.mxu0 0.0
  %735 = vmatpush1.msra.mxu0 0.0
  %736 = vmatprep.subr.mxu0 0.0
  %737 = vmatpush1.msra.mxu0 0.0
  %738 = vmatprep.subr.mxu0 0.0
  %739 = vmatpush1.msra.mxu0 0.0
  %740 = vmatprep.subr.mxu0 0.0
  %741 = vmatpush1.msra.mxu0 0.0
  %742 = vmatprep.subr.mxu0 0.0
  %743 = vmatpush1.msra.mxu0 0.0
  %744 = vmatprep.subr.mxu0 0.0
  %745 = vmatpush1.msra.mxu0 0.0
  %746 = vmatprep.subr.mxu0 0.0
  %747 = vmatpush1.msra.mxu0 0.0
  %748 = vmatprep.subr.mxu0 0.0
  %749 = vmatpush1.msra.mxu0 0.0
  %750 = vmatprep.mubr.f32.mxu0 0.0
  %751 = vmatmul.mubr.f32.gmra.mrb[0].mxu0 %v684
  %v752 = vpop.f32.mrb[0].mxu0
  %v753 = vadd.f32 0.0, %v752
  %v754 = vpop.f32.mrb[0].mxu0
  %755 = vdwg.mxu0
  %v756 = vadd.f32 %v682, %v753
  %s757 = scalar_lea.vmem %s0, 20
  %v758 = vld [vmem:[%s757] sm:$0x3]
  %759 = vmatprep.subr.mxu0 0.0
  %760 = vmatpush1.msra.mxu0 %v23
  %761 = vmatprep.subr.mxu0 0.0
  %762 = vmatpush1.msra.mxu0 %v24
  %763 = vmatprep.subr.mxu0 0.0
  %764 = vmatpush1.msra.mxu0 %v25
  %765 = vmatprep.subr.mxu0 0.0
  %766 = vmatpush1.msra.mxu0 %v26
  %767 = vmatprep.subr.mxu0 0.0
  %768 = vmatpush1.msra.mxu0 0.0
  %769 = vmatprep.subr.mxu0 0.0
  %770 = vmatpush1.msra.mxu0 0.0
  %771 = vmatprep.subr.mxu0 0.0
  %772 = vmatpush1.msra.mxu0 0.0
  %773 = vmatprep.subr.mxu0 0.0
  %774 = vmatpush1.msra.mxu0 0.0
  %775 = vmatprep.subr.mxu0 0.0
  %776 = vmatpush1.msra.mxu0 0.0
  %777 = vmatprep.subr.mxu0 0.0
  %778 = vmatpush1.msra.mxu0 0.0
  %779 = vmatprep.subr.mxu0 0.0
  %780 = vmatpush1.msra.mxu0 0.0
  %781 = vmatprep.subr.mxu0 0.0
  %782 = vmatpush1.msra.mxu0 0.0
  %783 = vmatprep.subr.mxu0 0.0
  %784 = vmatpush1.msra.mxu0 0.0
  %785 = vmatprep.subr.mxu0 0.0
  %786 = vmatpush1.msra.mxu0 0.0
  %787 = vmatprep.subr.mxu0 0.0
  %788 = vmatpush1.msra.mxu0 0.0
  %789 = vmatprep.subr.mxu0 0.0
  %790 = vmatpush1.msra.mxu0 0.0
  %791 = vmatprep.subr.mxu0 0.0
  %792 = vmatpush1.msra.mxu0 0.0
  %793 = vmatprep.subr.mxu0 0.0
  %794 = vmatpush1.msra.mxu0 0.0
  %795 = vmatprep.subr.mxu0 0.0
  %796 = vmatpush1.msra.mxu0 0.0
  %797 = vmatprep.subr.mxu0 0.0
  %798 = vmatpush1.msra.mxu0 0.0
  %799 = vmatprep.subr.mxu0 0.0
  %800 = vmatpush1.msra.mxu0 0.0
  %801 = vmatprep.subr.mxu0 0.0
  %802 = vmatpush1.msra.mxu0 0.0
  %803 = vmatprep.subr.mxu0 0.0
  %804 = vmatpush1.msra.mxu0 0.0
  %805 = vmatprep.subr.mxu0 0.0
  %806 = vmatpush1.msra.mxu0 0.0
  %807 = vmatprep.subr.mxu0 0.0
  %808 = vmatpush1.msra.mxu0 0.0
  %809 = vmatprep.subr.mxu0 0.0
  %810 = vmatpush1.msra.mxu0 0.0
  %811 = vmatprep.subr.mxu0 0.0
  %812 = vmatpush1.msra.mxu0 0.0
  %813 = vmatprep.subr.mxu0 0.0
  %814 = vmatpush1.msra.mxu0 0.0
  %815 = vmatprep.subr.mxu0 0.0
  %816 = vmatpush1.msra.mxu0 0.0
  %817 = vmatprep.subr.mxu0 0.0
  %818 = vmatpush1.msra.mxu0 0.0
  %819 = vmatprep.subr.mxu0 0.0
  %820 = vmatpush1.msra.mxu0 0.0
  %821 = vmatprep.subr.mxu0 0.0
  %822 = vmatpush1.msra.mxu0 0.0
  %823 = vmatprep.mubr.f32.mxu0 0.0
  %824 = vmatmul.mubr.f32.gmra.mrb[0].mxu0 %v684
  %v825 = vpop.f32.mrb[0].mxu0
  %v826 = vadd.f32 0.0, %v825
  %v827 = vpop.f32.mrb[0].mxu0
  %828 = vdwg.mxu0
  %v829 = vadd.f32 %v758, %v826
  %s830 = scalar_lea.vmem %s0, 36
  %v831 = vld [vmem:[%s830] sm:$0x3]
  %832 = vmatprep.subr.mxu0 0.0
  %833 = vmatpush1.msra.mxu0 %v28
  %834 = vmatprep.subr.mxu0 0.0
  %835 = vmatpush1.msra.mxu0 %v29
  %836 = vmatprep.subr.mxu0 0.0
  %837 = vmatpush1.msra.mxu0 %v30
  %838 = vmatprep.subr.mxu0 0.0
  %839 = vmatpush1.msra.mxu0 %v31
  %840 = vmatprep.subr.mxu0 0.0
  %841 = vmatpush1.msra.mxu0 0.0
  %842 = vmatprep.subr.mxu0 0.0
  %843 = vmatpush1.msra.mxu0 0.0
  %844 = vmatprep.subr.mxu0 0.0
  %845 = vmatpush1.msra.mxu0 0.0
  %846 = vmatprep.subr.mxu0 0.0
  %847 = vmatpush1.msra.mxu0 0.0
  %848 = vmatprep.subr.mxu0 0.0
  %849 = vmatpush1.msra.mxu0 0.0
  %850 = vmatprep.subr.mxu0 0.0
  %851 = vmatpush1.msra.mxu0 0.0
  %852 = vmatprep.subr.mxu0 0.0
  %853 = vmatpush1.msra.mxu0 0.0
  %854 = vmatprep.subr.mxu0 0.0
  %855 = vmatpush1.msra.mxu0 0.0
  %856 = vmatprep.subr.mxu0 0.0
  %857 = vmatpush1.msra.mxu0 0.0
  %858 = vmatprep.subr.mxu0 0.0
  %859 = vmatpush1.msra.mxu0 0.0
  %860 = vmatprep.subr.mxu0 0.0
  %861 = vmatpush1.msra.mxu0 0.0
  %862 = vmatprep.subr.mxu0 0.0
  %863 = vmatpush1.msra.mxu0 0.0
  %864 = vmatprep.subr.mxu0 0.0
  %865 = vmatpush1.msra.mxu0 0.0
  %866 = vmatprep.subr.mxu0 0.0
  %867 = vmatpush1.msra.mxu0 0.0
  %868 = vmatprep.subr.mxu0 0.0
  %869 = vmatpush1.msra.mxu0 0.0
  %870 = vmatprep.subr.mxu0 0.0
  %871 = vmatpush1.msra.mxu0 0.0
  %872 = vmatprep.subr.mxu0 0.0
  %873 = vmatpush1.msra.mxu0 0.0
  %874 = vmatprep.subr.mxu0 0.0
  %875 = vmatpush1.msra.mxu0 0.0
  %876 = vmatprep.subr.mxu0 0.0
  %877 = vmatpush1.msra.mxu0 0.0
  %878 = vmatprep.subr.mxu0 0.0
  %879 = vmatpush1.msra.mxu0 0.0
  %880 = vmatprep.subr.mxu0 0.0
  %881 = vmatpush1.msra.mxu0 0.0
  %882 = vmatprep.subr.mxu0 0.0
  %883 = vmatpush1.msra.mxu0 0.0
  %884 = vmatprep.subr.mxu0 0.0
  %885 = vmatpush1.msra.mxu0 0.0
  %886 = vmatprep.subr.mxu0 0.0
  %887 = vmatpush1.msra.mxu0 0.0
  %888 = vmatprep.subr.mxu0 0.0
  %889 = vmatpush1.msra.mxu0 0.0
  %890 = vmatprep.subr.mxu0 0.0
  %891 = vmatpush1.msra.mxu0 0.0
  %892 = vmatprep.subr.mxu0 0.0
  %893 = vmatpush1.msra.mxu0 0.0
  %894 = vmatprep.subr.mxu0 0.0
  %895 = vmatpush1.msra.mxu0 0.0
  %896 = vmatprep.mubr.f32.mxu0 0.0
  %897 = vmatmul.mubr.f32.gmra.mrb[0].mxu0 %v684
  %v898 = vpop.f32.mrb[0].mxu0
  %v899 = vadd.f32 0.0, %v898
  %v900 = vpop.f32.mrb[0].mxu0
  %901 = vdwg.mxu0
  %v902 = vadd.f32 %v831, %v899
  %s903 = scalar_lea.vmem %s0, 52
  %v904 = vld [vmem:[%s903] sm:$0x3]
  %905 = vmatprep.subr.mxu0 0.0
  %906 = vmatpush1.msra.mxu0 %v33
  %907 = vmatprep.subr.mxu0 0.0
  %908 = vmatpush1.msra.mxu0 %v34
  %909 = vmatprep.subr.mxu0 0.0
  %910 = vmatpush1.msra.mxu0 %v35
  %911 = vmatprep.subr.mxu0 0.0
  %912 = vmatpush1.msra.mxu0 %v36
  %913 = vmatprep.subr.mxu0 0.0
  %914 = vmatpush1.msra.mxu0 0.0
  %915 = vmatprep.subr.mxu0 0.0
  %916 = vmatpush1.msra.mxu0 0.0
  %917 = vmatprep.subr.mxu0 0.0
  %918 = vmatpush1.msra.mxu0 0.0
  %919 = vmatprep.subr.mxu0 0.0
  %920 = vmatpush1.msra.mxu0 0.0
  %921 = vmatprep.subr.mxu0 0.0
  %922 = vmatpush1.msra.mxu0 0.0
  %923 = vmatprep.subr.mxu0 0.0
  %924 = vmatpush1.msra.mxu0 0.0
  %925 = vmatprep.subr.mxu0 0.0
  %926 = vmatpush1.msra.mxu0 0.0
  %927 = vmatprep.subr.mxu0 0.0
  %928 = vmatpush1.msra.mxu0 0.0
  %929 = vmatprep.subr.mxu0 0.0
  %930 = vmatpush1.msra.mxu0 0.0
  %931 = vmatprep.subr.mxu0 0.0
  %932 = vmatpush1.msra.mxu0 0.0
  %933 = vmatprep.subr.mxu0 0.0
  %934 = vmatpush1.msra.mxu0 0.0
  %935 = vmatprep.subr.mxu0 0.0
  %936 = vmatpush1.msra.mxu0 0.0
  %937 = vmatprep.subr.mxu0 0.0
  %938 = vmatpush1.msra.mxu0 0.0
  %939 = vmatprep.subr.mxu0 0.0
  %940 = vmatpush1.msra.mxu0 0.0
  %941 = vmatprep.subr.mxu0 0.0
  %942 = vmatpush1.msra.mxu0 0.0
  %943 = vmatprep.subr.mxu0 0.0
  %944 = vmatpush1.msra.mxu0 0.0
  %945 = vmatprep.subr.mxu0 0.0
  %946 = vmatpush1.msra.mxu0 0.0
  %947 = vmatprep.subr.mxu0 0.0
  %948 = vmatpush1.msra.mxu0 0.0
  %949 = vmatprep.subr.mxu0 0.0
  %950 = vmatpush1.msra.mxu0 0.0
  %951 = vmatprep.subr.mxu0 0.0
  %952 = vmatpush1.msra.mxu0 0.0
  %953 = vmatprep.subr.mxu0 0.0
  %954 = vmatpush1.msra.mxu0 0.0
  %955 = vmatprep.subr.mxu0 0.0
  %956 = vmatpush1.msra.mxu0 0.0
  %957 = vmatprep.subr.mxu0 0.0
  %958 = vmatpush1.msra.mxu0 0.0
  %959 = vmatprep.subr.mxu0 0.0
  %960 = vmatpush1.msra.mxu0 0.0
  %961 = vmatprep.subr.mxu0 0.0
  %962 = vmatpush1.msra.mxu0 0.0
  %963 = vmatprep.subr.mxu0 0.0
  %964 = vmatpush1.msra.mxu0 0.0
  %965 = vmatprep.subr.mxu0 0.0
  %966 = vmatpush1.msra.mxu0 0.0
  %967 = vmatprep.subr.mxu0 0.0
  %968 = vmatpush1.msra.mxu0 0.0
  %969 = vmatprep.mubr.f32.mxu0 0.0
  %970 = vmatmul.mubr.f32.gmra.mrb[0].mxu0 %v684
  %v971 = vpop.f32.mrb[0].mxu0
  %v972 = vadd.f32 0.0, %v971
  %v973 = vpop.f32.mrb[0].mxu0
  %974 = vdwg.mxu0
  %v975 = vadd.f32 %v904, %v972
  %v976 = vxor.u32 %v756, 2147483648
  %v977 = vmul.f32 %v976, 1.442695
  %v978 = vpow.pop %v977
  %v979 = vadd.f32 %v978, 1.0
  %v980 = vrcp.pop %v979
  %v981 = vmul.f32 1.0, %v980
  %v982 = vxor.u32 %v829, 2147483648
  %v983 = vmul.f32 %v982, 1.442695
  %v984 = vpow.pop %v983
  %v985 = vadd.f32 %v984, 1.0
  %v986 = vrcp.pop %v985
  %v987 = vmul.f32 1.0, %v986
  %v988 = vtanh.pop %v902
  %v989 = vxor.u32 %v975, 2147483648
  %v990 = vmul.f32 %v989, 1.442695
  %v991 = vpow.pop %v990
  %v992 = vadd.f32 %v991, 1.0
  %v993 = vrcp.pop %v992
  %v994 = vmul.f32 1.0, %v993
  %v995 = vmul.f32 %v987, %v676
  %v996 = vmul.f32 %v981, %v988
  %v997 = vadd.f32 %v995, %v996
  %v998 = vtanh.pop %v997
  %v999 = vmul.f32 %v994, %v998
  %s1000 = scalar_lea.vmem %s2, 4
  %1001 = vst.msk [vmem:[%s1000] sm:$0x3] %vm358, %v999
  %s1002 = scalar_lea.vmem %s0, 6
  %v1003 = vld [vmem:[%s1002] sm:$0x3]
  %v1005 = vsel %vm40, %v999, 0
  %1007 = vmatprep.subr.mxu0 0.0
  %1008 = vmatpush1.msra.mxu0 %v18
  %1009 = vmatprep.subr.mxu0 0.0
  %1010 = vmatpush1.msra.mxu0 %v19
  %1011 = vmatprep.subr.mxu0 0.0
  %1012 = vmatpush1.msra.mxu0 %v20
  %1013 = vmatprep.subr.mxu0 0.0
  %1014 = vmatpush1.msra.mxu0 %v21
  %1015 = vmatprep.subr.mxu0 0.0
  %1016 = vmatpush1.msra.mxu0 0.0
  %1017 = vmatprep.subr.mxu0 0.0
  %1018 = vmatpush1.msra.mxu0 0.0
  %1019 = vmatprep.subr.mxu0 0.0
  %1020 = vmatpush1.msra.mxu0 0.0
  %1021 = vmatprep.subr.mxu0 0.0
  %1022 = vmatpush1.msra.mxu0 0.0
  %1023 = vmatprep.subr.mxu0 0.0
  %1024 = vmatpush1.msra.mxu0 0.0
  %1025 = vmatprep.subr.mxu0 0.0
  %1026 = vmatpush1.msra.mxu0 0.0
  %1027 = vmatprep.subr.mxu0 0.0
  %1028 = vmatpush1.msra.mxu0 0.0
  %1029 = vmatprep.subr.mxu0 0.0
  %1030 = vmatpush1.msra.mxu0 0.0
  %1031 = vmatprep.subr.mxu0 0.0
  %1032 = vmatpush1.msra.mxu0 0.0
  %1033 = vmatprep.subr.mxu0 0.0
  %1034 = vmatpush1.msra.mxu0 0.0
  %1035 = vmatprep.subr.mxu0 0.0
  %1036 = vmatpush1.msra.mxu0 0.0
  %1037 = vmatprep.subr.mxu0 0.0
  %1038 = vmatpush1.msra.mxu0 0.0
  %1039 = vmatprep.subr.mxu0 0.0
  %1040 = vmatpush1.msra.mxu0 0.0
  %1041 = vmatprep.subr.mxu0 0.0
  %1042 = vmatpush1.msra.mxu0 0.0
  %1043 = vmatprep.subr.mxu0 0.0
  %1044 = vmatpush1.msra.mxu0 0.0
  %1045 = vmatprep.subr.mxu0 0.0
  %1046 = vmatpush1.msra.mxu0 0.0
  %1047 = vmatprep.subr.mxu0 0.0
  %1048 = vmatpush1.msra.mxu0 0.0
  %1049 = vmatprep.subr.mxu0 0.0
  %1050 = vmatpush1.msra.mxu0 0.0
  %1051 = vmatprep.subr.mxu0 0.0
  %1052 = vmatpush1.msra.mxu0 0.0
  %1053 = vmatprep.subr.mxu0 0.0
  %1054 = vmatpush1.msra.mxu0 0.0
  %1055 = vmatprep.subr.mxu0 0.0
  %1056 = vmatpush1.msra.mxu0 0.0
  %1057 = vmatprep.subr.mxu0 0.0
  %1058 = vmatpush1.msra.mxu0 0.0
  %1059 = vmatprep.subr.mxu0 0.0
  %1060 = vmatpush1.msra.mxu0 0.0
  %1061 = vmatprep.subr.mxu0 0.0
  %1062 = vmatpush1.msra.mxu0 0.0
  %1063 = vmatprep.subr.mxu0 0.0
  %1064 = vmatpush1.msra.mxu0 0.0
  %1065 = vmatprep.subr.mxu0 0.0
  %1066 = vmatpush1.msra.mxu0 0.0
  %1067 = vmatprep.subr.mxu0 0.0
  %1068 = vmatpush1.msra.mxu0 0.0
  %1069 = vmatprep.subr.mxu0 0.0
  %1070 = vmatpush1.msra.mxu0 0.0
  %1071 = vmatprep.mubr.f32.mxu0 0.0
  %1072 = vmatmul.mubr.f32.gmra.mrb[0].mxu0 %v1005
  %v1073 = vpop.f32.mrb[0].mxu0
  %v1074 = vadd.f32 0.0, %v1073
  %v1075 = vpop.f32.mrb[0].mxu0
  %1076 = vdwg.mxu0
  %v1077 = vadd.f32 %v1003, %v1074
  %s1078 = scalar_lea.vmem %s0, 22
  %v1079 = vld [vmem:[%s1078] sm:$0x3]
  %1080 = vmatprep.subr.mxu0 0.0
  %1081 = vmatpush1.msra.mxu0 %v23
  %1082 = vmatprep.subr.mxu0 0.0
  %1083 = vmatpush1.msra.mxu0 %v24
  %1084 = vmatprep.subr.mxu0 0.0
  %1085 = vmatpush1.msra.mxu0 %v25
  %1086 = vmatprep.subr.mxu0 0.0
  %1087 = vmatpush1.msra.mxu0 %v26
  %1088 = vmatprep.subr.mxu0 0.0
  %1089 = vmatpush1.msra.mxu0 0.0
  %1090 = vmatprep.subr.mxu0 0.0
  %1091 = vmatpush1.msra.mxu0 0.0
  %1092 = vmatprep.subr.mxu0 0.0
  %1093 = vmatpush1.msra.mxu0 0.0
  %1094 = vmatprep.subr.mxu0 0.0
  %1095 = vmatpush1.msra.mxu0 0.0
  %1096 = vmatprep.subr.mxu0 0.0
  %1097 = vmatpush1.msra.mxu0 0.0
  %1098 = vmatprep.subr.mxu0 0.0
  %1099 = vmatpush1.msra.mxu0 0.0
  %1100 = vmatprep.subr.mxu0 0.0
  %1101 = vmatpush1.msra.mxu0 0.0
  %1102 = vmatprep.subr.mxu0 0.0
  %1103 = vmatpush1.msra.mxu0 0.0
  %1104 = vmatprep.subr.mxu0 0.0
  %1105 = vmatpush1.msra.mxu0 0.0
  %1106 = vmatprep.subr.mxu0 0.0
  %1107 = vmatpush1.msra.mxu0 0.0
  %1108 = vmatprep.subr.mxu0 0.0
  %1109 = vmatpush1.msra.mxu0 0.0
  %1110 = vmatprep.subr.mxu0 0.0
  %1111 = vmatpush1.msra.mxu0 0.0
  %1112 = vmatprep.subr.mxu0 0.0
  %1113 = vmatpush1.msra.mxu0 0.0
  %1114 = vmatprep.subr.mxu0 0.0
  %1115 = vmatpush1.msra.mxu0 0.0
  %1116 = vmatprep.subr.mxu0 0.0
  %1117 = vmatpush1.msra.mxu0 0.0
  %1118 = vmatprep.subr.mxu0 0.0
  %1119 = vmatpush1.msra.mxu0 0.0
  %1120 = vmatprep.subr.mxu0 0.0
  %1121 = vmatpush1.msra.mxu0 0.0
  %1122 = vmatprep.subr.mxu0 0.0
  %1123 = vmatpush1.msra.mxu0 0.0
  %1124 = vmatprep.subr.mxu0 0.0
  %1125 = vmatpush1.msra.mxu0 0.0
  %1126 = vmatprep.subr.mxu0 0.0
  %1127 = vmatpush1.msra.mxu0 0.0
  %1128 = vmatprep.subr.mxu0 0.0
  %1129 = vmatpush1.msra.mxu0 0.0
  %1130 = vmatprep.subr.mxu0 0.0
  %1131 = vmatpush1.msra.mxu0 0.0
  %1132 = vmatprep.subr.mxu0 0.0
  %1133 = vmatpush1.msra.mxu0 0.0
  %1134 = vmatprep.subr.mxu0 0.0
  %1135 = vmatpush1.msra.mxu0 0.0
  %1136 = vmatprep.subr.mxu0 0.0
  %1137 = vmatpush1.msra.mxu0 0.0
  %1138 = vmatprep.subr.mxu0 0.0
  %1139 = vmatpush1.msra.mxu0 0.0
  %1140 = vmatprep.subr.mxu0 0.0
  %1141 = vmatpush1.msra.mxu0 0.0
  %1142 = vmatprep.subr.mxu0 0.0
  %1143 = vmatpush1.msra.mxu0 0.0
  %1144 = vmatprep.mubr.f32.mxu0 0.0
  %1145 = vmatmul.mubr.f32.gmra.mrb[0].mxu0 %v1005
  %v1146 = vpop.f32.mrb[0].mxu0
  %v1147 = vadd.f32 0.0, %v1146
  %v1148 = vpop.f32.mrb[0].mxu0
  %1149 = vdwg.mxu0
  %v1150 = vadd.f32 %v1079, %v1147
  %s1151 = scalar_lea.vmem %s0, 38
  %v1152 = vld [vmem:[%s1151] sm:$0x3]
  %1153 = vmatprep.subr.mxu0 0.0
  %1154 = vmatpush1.msra.mxu0 %v28
  %1155 = vmatprep.subr.mxu0 0.0
  %1156 = vmatpush1.msra.mxu0 %v29
  %1157 = vmatprep.subr.mxu0 0.0
  %1158 = vmatpush1.msra.mxu0 %v30
  %1159 = vmatprep.subr.mxu0 0.0
  %1160 = vmatpush1.msra.mxu0 %v31
  %1161 = vmatprep.subr.mxu0 0.0
  %1162 = vmatpush1.msra.mxu0 0.0
  %1163 = vmatprep.subr.mxu0 0.0
  %1164 = vmatpush1.msra.mxu0 0.0
  %1165 = vmatprep.subr.mxu0 0.0
  %1166 = vmatpush1.msra.mxu0 0.0
  %1167 = vmatprep.subr.mxu0 0.0
  %1168 = vmatpush1.msra.mxu0 0.0
  %1169 = vmatprep.subr.mxu0 0.0
  %1170 = vmatpush1.msra.mxu0 0.0
  %1171 = vmatprep.subr.mxu0 0.0
  %1172 = vmatpush1.msra.mxu0 0.0
  %1173 = vmatprep.subr.mxu0 0.0
  %1174 = vmatpush1.msra.mxu0 0.0
  %1175 = vmatprep.subr.mxu0 0.0
  %1176 = vmatpush1.msra.mxu0 0.0
  %1177 = vmatprep.subr.mxu0 0.0
  %1178 = vmatpush1.msra.mxu0 0.0
  %1179 = vmatprep.subr.mxu0 0.0
  %1180 = vmatpush1.msra.mxu0 0.0
  %1181 = vmatprep.subr.mxu0 0.0
  %1182 = vmatpush1.msra.mxu0 0.0
  %1183 = vmatprep.subr.mxu0 0.0
  %1184 = vmatpush1.msra.mxu0 0.0
  %1185 = vmatprep.subr.mxu0 0.0
  %1186 = vmatpush1.msra.mxu0 0.0
  %1187 = vmatprep.subr.mxu0 0.0
  %1188 = vmatpush1.msra.mxu0 0.0
  %1189 = vmatprep.subr.mxu0 0.0
  %1190 = vmatpush1.msra.mxu0 0.0
  %1191 = vmatprep.subr.mxu0 0.0
  %1192 = vmatpush1.msra.mxu0 0.0
  %1193 = vmatprep.subr.mxu0 0.0
  %1194 = vmatpush1.msra.mxu0 0.0
  %1195 = vmatprep.subr.mxu0 0.0
  %1196 = vmatpush1.msra.mxu0 0.0
  %1197 = vmatprep.subr.mxu0 0.0
  %1198 = vmatpush1.msra.mxu0 0.0
  %1199 = vmatprep.subr.mxu0 0.0
  %1200 = vmatpush1.msra.mxu0 0.0
  %1201 = vmatprep.subr.mxu0 0.0
  %1202 = vmatpush1.msra.mxu0 0.0
  %1203 = vmatprep.subr.mxu0 0.0
  %1204 = vmatpush1.msra.mxu0 0.0
  %1205 = vmatprep.subr.mxu0 0.0
  %1206 = vmatpush1.msra.mxu0 0.0
  %1207 = vmatprep.subr.mxu0 0.0
  %1208 = vmatpush1.msra.mxu0 0.0
  %1209 = vmatprep.subr.mxu0 0.0
  %1210 = vmatpush1.msra.mxu0 0.0
  %1211 = vmatprep.subr.mxu0 0.0
  %1212 = vmatpush1.msra.mxu0 0.0
  %1213 = vmatprep.subr.mxu0 0.0
  %1214 = vmatpush1.msra.mxu0 0.0
  %1215 = vmatprep.subr.mxu0 0.0
  %1216 = vmatpush1.msra.mxu0 0.0
  %1217 = vmatprep.mubr.f32.mxu0 0.0
  %1218 = vmatmul.mubr.f32.gmra.mrb[0].mxu0 %v1005
  %v1219 = vpop.f32.mrb[0].mxu0
  %v1220 = vadd.f32 0.0, %v1219
  %v1221 = vpop.f32.mrb[0].mxu0
  %1222 = vdwg.mxu0
  %v1223 = vadd.f32 %v1152, %v1220
  %s1224 = scalar_lea.vmem %s0, 54
  %v1225 = vld [vmem:[%s1224] sm:$0x3]
  %1226 = vmatprep.subr.mxu0 0.0
  %1227 = vmatpush1.msra.mxu0 %v33
  %1228 = vmatprep.subr.mxu0 0.0
  %1229 = vmatpush1.msra.mxu0 %v34
  %1230 = vmatprep.subr.mxu0 0.0
  %1231 = vmatpush1.msra.mxu0 %v35
  %1232 = vmatprep.subr.mxu0 0.0
  %1233 = vmatpush1.msra.mxu0 %v36
  %1234 = vmatprep.subr.mxu0 0.0
  %1235 = vmatpush1.msra.mxu0 0.0
  %1236 = vmatprep.subr.mxu0 0.0
  %1237 = vmatpush1.msra.mxu0 0.0
  %1238 = vmatprep.subr.mxu0 0.0
  %1239 = vmatpush1.msra.mxu0 0.0
  %1240 = vmatprep.subr.mxu0 0.0
  %1241 = vmatpush1.msra.mxu0 0.0
  %1242 = vmatprep.subr.mxu0 0.0
  %1243 = vmatpush1.msra.mxu0 0.0
  %1244 = vmatprep.subr.mxu0 0.0
  %1245 = vmatpush1.msra.mxu0 0.0
  %1246 = vmatprep.subr.mxu0 0.0
  %1247 = vmatpush1.msra.mxu0 0.0
  %1248 = vmatprep.subr.mxu0 0.0
  %1249 = vmatpush1.msra.mxu0 0.0
  %1250 = vmatprep.subr.mxu0 0.0
  %1251 = vmatpush1.msra.mxu0 0.0
  %1252 = vmatprep.subr.mxu0 0.0
  %1253 = vmatpush1.msra.mxu0 0.0
  %1254 = vmatprep.subr.mxu0 0.0
  %1255 = vmatpush1.msra.mxu0 0.0
  %1256 = vmatprep.subr.mxu0 0.0
  %1257 = vmatpush1.msra.mxu0 0.0
  %1258 = vmatprep.subr.mxu0 0.0
  %1259 = vmatpush1.msra.mxu0 0.0
  %1260 = vmatprep.subr.mxu0 0.0
  %1261 = vmatpush1.msra.mxu0 0.0
  %1262 = vmatprep.subr.mxu0 0.0
  %1263 = vmatpush1.msra.mxu0 0.0
  %1264 = vmatprep.subr.mxu0 0.0
  %1265 = vmatpush1.msra.mxu0 0.0
  %1266 = vmatprep.subr.mxu0 0.0
  %1267 = vmatpush1.msra.mxu0 0.0
  %1268 = vmatprep.subr.mxu0 0.0
  %1269 = vmatpush1.msra.mxu0 0.0
  %1270 = vmatprep.subr.mxu0 0.0
  %1271 = vmatpush1.msra.mxu0 0.0
  %1272 = vmatprep.subr.mxu0 0.0
  %1273 = vmatpush1.msra.mxu0 0.0
  %1274 = vmatprep.subr.mxu0 0.0
  %1275 = vmatpush1.msra.mxu0 0.0
  %1276 = vmatprep.subr.mxu0 0.0
  %1277 = vmatpush1.msra.mxu0 0.0
  %1278 = vmatprep.subr.mxu0 0.0
  %1279 = vmatpush1.msra.mxu0 0.0
  %1280 = vmatprep.subr.mxu0 0.0
  %1281 = vmatpush1.msra.mxu0 0.0
  %1282 = vmatprep.subr.mxu0 0.0
  %1283 = vmatpush1.msra.mxu0 0.0
  %1284 = vmatprep.subr.mxu0 0.0
  %1285 = vmatpush1.msra.mxu0 0.0
  %1286 = vmatprep.subr.mxu0 0.0
  %1287 = vmatpush1.msra.mxu0 0.0
  %1288 = vmatprep.subr.mxu0 0.0
  %1289 = vmatpush1.msra.mxu0 0.0
  %1290 = vmatprep.mubr.f32.mxu0 0.0
  %1291 = vmatmul.mubr.f32.gmra.mrb[0].mxu0 %v1005
  %v1292 = vpop.f32.mrb[0].mxu0
  %v1293 = vadd.f32 0.0, %v1292
  %v1294 = vpop.f32.mrb[0].mxu0
  %1295 = vdwg.mxu0
  %v1296 = vadd.f32 %v1225, %v1293
  %v1297 = vxor.u32 %v1077, 2147483648
  %v1298 = vmul.f32 %v1297, 1.442695
  %v1299 = vpow.pop %v1298
  %v1300 = vadd.f32 %v1299, 1.0
  %v1301 = vrcp.pop %v1300
  %v1302 = vmul.f32 1.0, %v1301
  %v1303 = vxor.u32 %v1150, 2147483648
  %v1304 = vmul.f32 %v1303, 1.442695
  %v1305 = vpow.pop %v1304
  %v1306 = vadd.f32 %v1305, 1.0
  %v1307 = vrcp.pop %v1306
  %v1308 = vmul.f32 1.0, %v1307
  %v1309 = vtanh.pop %v1223
  %v1310 = vxor.u32 %v1296, 2147483648
  %v1311 = vmul.f32 %v1310, 1.442695
  %v1312 = vpow.pop %v1311
  %v1313 = vadd.f32 %v1312, 1.0
  %v1314 = vrcp.pop %v1313
  %v1315 = vmul.f32 1.0, %v1314
  %v1316 = vmul.f32 %v1308, %v997
  %v1317 = vmul.f32 %v1302, %v1309
  %v1318 = vadd.f32 %v1316, %v1317
  %v1319 = vtanh.pop %v1318
  %v1320 = vmul.f32 %v1315, %v1319
  %s1321 = scalar_lea.vmem %s2, 6
  %1322 = vst.msk [vmem:[%s1321] sm:$0x3] %vm358, %v1320
  %s1323 = scalar_lea.vmem %s0, 8
  %v1324 = vld [vmem:[%s1323] sm:$0x3]
  %v1326 = vsel %vm40, %v1320, 0
  %1328 = vmatprep.subr.mxu0 0.0
  %1329 = vmatpush1.msra.mxu0 %v18
  %1330 = vmatprep.subr.mxu0 0.0
  %1331 = vmatpush1.msra.mxu0 %v19
  %1332 = vmatprep.subr.mxu0 0.0
  %1333 = vmatpush1.msra.mxu0 %v20
  %1334 = vmatprep.subr.mxu0 0.0
  %1335 = vmatpush1.msra.mxu0 %v21
  %1336 = vmatprep.subr.mxu0 0.0
  %1337 = vmatpush1.msra.mxu0 0.0
  %1338 = vmatprep.subr.mxu0 0.0
  %1339 = vmatpush1.msra.mxu0 0.0
  %1340 = vmatprep.subr.mxu0 0.0
  %1341 = vmatpush1.msra.mxu0 0.0
  %1342 = vmatprep.subr.mxu0 0.0
  %1343 = vmatpush1.msra.mxu0 0.0
  %1344 = vmatprep.subr.mxu0 0.0
  %1345 = vmatpush1.msra.mxu0 0.0
  %1346 = vmatprep.subr.mxu0 0.0
  %1347 = vmatpush1.msra.mxu0 0.0
  %1348 = vmatprep.subr.mxu0 0.0
  %1349 = vmatpush1.msra.mxu0 0.0
  %1350 = vmatprep.subr.mxu0 0.0
  %1351 = vmatpush1.msra.mxu0 0.0
  %1352 = vmatprep.subr.mxu0 0.0
  %1353 = vmatpush1.msra.mxu0 0.0
  %1354 = vmatprep.subr.mxu0 0.0
  %1355 = vmatpush1.msra.mxu0 0.0
  %1356 = vmatprep.subr.mxu0 0.0
  %1357 = vmatpush1.msra.mxu0 0.0
  %1358 = vmatprep.subr.mxu0 0.0
  %1359 = vmatpush1.msra.mxu0 0.0
  %1360 = vmatprep.subr.mxu0 0.0
  %1361 = vmatpush1.msra.mxu0 0.0
  %1362 = vmatprep.subr.mxu0 0.0
  %1363 = vmatpush1.msra.mxu0 0.0
  %1364 = vmatprep.subr.mxu0 0.0
  %1365 = vmatpush1.msra.mxu0 0.0
  %1366 = vmatprep.subr.mxu0 0.0
  %1367 = vmatpush1.msra.mxu0 0.0
  %1368 = vmatprep.subr.mxu0 0.0
  %1369 = vmatpush1.msra.mxu0 0.0
  %1370 = vmatprep.subr.mxu0 0.0
  %1371 = vmatpush1.msra.mxu0 0.0
  %1372 = vmatprep.subr.mxu0 0.0
  %1373 = vmatpush1.msra.mxu0 0.0
  %1374 = vmatprep.subr.mxu0 0.0
  %1375 = vmatpush1.msra.mxu0 0.0
  %1376 = vmatprep.subr.mxu0 0.0
  %1377 = vmatpush1.msra.mxu0 0.0
  %1378 = vmatprep.subr.mxu0 0.0
  %1379 = vmatpush1.msra.mxu0 0.0
  %1380 = vmatprep.subr.mxu0 0.0
  %1381 = vmatpush1.msra.mxu0 0.0
  %1382 = vmatprep.subr.mxu0 0.0
  %1383 = vmatpush1.msra.mxu0 0.0
  %1384 = vmatprep.subr.mxu0 0.0
  %1385 = vmatpush1.msra.mxu0 0.0
  %1386 = vmatprep.subr.mxu0 0.0
  %1387 = vmatpush1.msra.mxu0 0.0
  %1388 = vmatprep.subr.mxu0 0.0
  %1389 = vmatpush1.msra.mxu0 0.0
  %1390 = vmatprep.subr.mxu0 0.0
  %1391 = vmatpush1.msra.mxu0 0.0
  %1392 = vmatprep.mubr.f32.mxu0 0.0
  %1393 = vmatmul.mubr.f32.gmra.mrb[0].mxu0 %v1326
  %v1394 = vpop.f32.mrb[0].mxu0
  %v1395 = vadd.f32 0.0, %v1394
  %v1396 = vpop.f32.mrb[0].mxu0
  %1397 = vdwg.mxu0
  %v1398 = vadd.f32 %v1324, %v1395
  %s1399 = scalar_lea.vmem %s0, 24
  %v1400 = vld [vmem:[%s1399] sm:$0x3]
  %1401 = vmatprep.subr.mxu0 0.0
  %1402 = vmatpush1.msra.mxu0 %v23
  %1403 = vmatprep.subr.mxu0 0.0
  %1404 = vmatpush1.msra.mxu0 %v24
  %1405 = vmatprep.subr.mxu0 0.0
  %1406 = vmatpush1.msra.mxu0 %v25
  %1407 = vmatprep.subr.mxu0 0.0
  %1408 = vmatpush1.msra.mxu0 %v26
  %1409 = vmatprep.subr.mxu0 0.0
  %1410 = vmatpush1.msra.mxu0 0.0
  %1411 = vmatprep.subr.mxu0 0.0
  %1412 = vmatpush1.msra.mxu0 0.0
  %1413 = vmatprep.subr.mxu0 0.0
  %1414 = vmatpush1.msra.mxu0 0.0
  %1415 = vmatprep.subr.mxu0 0.0
  %1416 = vmatpush1.msra.mxu0 0.0
  %1417 = vmatprep.subr.mxu0 0.0
  %1418 = vmatpush1.msra.mxu0 0.0
  %1419 = vmatprep.subr.mxu0 0.0
  %1420 = vmatpush1.msra.mxu0 0.0
  %1421 = vmatprep.subr.mxu0 0.0
  %1422 = vmatpush1.msra.mxu0 0.0
  %1423 = vmatprep.subr.mxu0 0.0
  %1424 = vmatpush1.msra.mxu0 0.0
  %1425 = vmatprep.subr.mxu0 0.0
  %1426 = vmatpush1.msra.mxu0 0.0
  %1427 = vmatprep.subr.mxu0 0.0
  %1428 = vmatpush1.msra.mxu0 0.0
  %1429 = vmatprep.subr.mxu0 0.0
  %1430 = vmatpush1.msra.mxu0 0.0
  %1431 = vmatprep.subr.mxu0 0.0
  %1432 = vmatpush1.msra.mxu0 0.0
  %1433 = vmatprep.subr.mxu0 0.0
  %1434 = vmatpush1.msra.mxu0 0.0
  %1435 = vmatprep.subr.mxu0 0.0
  %1436 = vmatpush1.msra.mxu0 0.0
  %1437 = vmatprep.subr.mxu0 0.0
  %1438 = vmatpush1.msra.mxu0 0.0
  %1439 = vmatprep.subr.mxu0 0.0
  %1440 = vmatpush1.msra.mxu0 0.0
  %1441 = vmatprep.subr.mxu0 0.0
  %1442 = vmatpush1.msra.mxu0 0.0
  %1443 = vmatprep.subr.mxu0 0.0
  %1444 = vmatpush1.msra.mxu0 0.0
  %1445 = vmatprep.subr.mxu0 0.0
  %1446 = vmatpush1.msra.mxu0 0.0
  %1447 = vmatprep.subr.mxu0 0.0
  %1448 = vmatpush1.msra.mxu0 0.0
  %1449 = vmatprep.subr.mxu0 0.0
  %1450 = vmatpush1.msra.mxu0 0.0
  %1451 = vmatprep.subr.mxu0 0.0
  %1452 = vmatpush1.msra.mxu0 0.0
  %1453 = vmatprep.subr.mxu0 0.0
  %1454 = vmatpush1.msra.mxu0 0.0
  %1455 = vmatprep.subr.mxu0 0.0
  %1456 = vmatpush1.msra.mxu0 0.0
  %1457 = vmatprep.subr.mxu0 0.0
  %1458 = vmatpush1.msra.mxu0 0.0
  %1459 = vmatprep.subr.mxu0 0.0
  %1460 = vmatpush1.msra.mxu0 0.0
  %1461 = vmatprep.subr.mxu0 0.0
  %1462 = vmatpush1.msra.mxu0 0.0
  %1463 = vmatprep.subr.mxu0 0.0
  %1464 = vmatpush1.msra.mxu0 0.0
  %1465 = vmatprep.mubr.f32.mxu0 0.0
  %1466 = vmatmul.mubr.f32.gmra.mrb[0].mxu0 %v1326
  %v1467 = vpop.f32.mrb[0].mxu0
  %v1468 = vadd.f32 0.0, %v1467
  %v1469 = vpop.f32.mrb[0].mxu0
  %1470 = vdwg.mxu0
  %v1471 = vadd.f32 %v1400, %v1468
  %s1472 = scalar_lea.vmem %s0, 40
  %v1473 = vld [vmem:[%s1472] sm:$0x3]
  %1474 = vmatprep.subr.mxu0 0.0
  %1475 = vmatpush1.msra.mxu0 %v28
  %1476 = vmatprep.subr.mxu0 0.0
  %1477 = vmatpush1.msra.mxu0 %v29
  %1478 = vmatprep.subr.mxu0 0.0
  %1479 = vmatpush1.msra.mxu0 %v30
  %1480 = vmatprep.subr.mxu0 0.0
  %1481 = vmatpush1.msra.mxu0 %v31
  %1482 = vmatprep.subr.mxu0 0.0
  %1483 = vmatpush1.msra.mxu0 0.0
  %1484 = vmatprep.subr.mxu0 0.0
  %1485 = vmatpush1.msra.mxu0 0.0
  %1486 = vmatprep.subr.mxu0 0.0
  %1487 = vmatpush1.msra.mxu0 0.0
  %1488 = vmatprep.subr.mxu0 0.0
  %1489 = vmatpush1.msra.mxu0 0.0
  %1490 = vmatprep.subr.mxu0 0.0
  %1491 = vmatpush1.msra.mxu0 0.0
  %1492 = vmatprep.subr.mxu0 0.0
  %1493 = vmatpush1.msra.mxu0 0.0
  %1494 = vmatprep.subr.mxu0 0.0
  %1495 = vmatpush1.msra.mxu0 0.0
  %1496 = vmatprep.subr.mxu0 0.0
  %1497 = vmatpush1.msra.mxu0 0.0
  %1498 = vmatprep.subr.mxu0 0.0
  %1499 = vmatpush1.msra.mxu0 0.0
  %1500 = vmatprep.subr.mxu0 0.0
  %1501 = vmatpush1.msra.mxu0 0.0
  %1502 = vmatprep.subr.mxu0 0.0
  %1503 = vmatpush1.msra.mxu0 0.0
  %1504 = vmatprep.subr.mxu0 0.0
  %1505 = vmatpush1.msra.mxu0 0.0
  %1506 = vmatprep.subr.mxu0 0.0
  %1507 = vmatpush1.msra.mxu0 0.0
  %1508 = vmatprep.subr.mxu0 0.0
  %1509 = vmatpush1.msra.mxu0 0.0
  %1510 = vmatprep.subr.mxu0 0.0
  %1511 = vmatpush1.msra.mxu0 0.0
  %1512 = vmatprep.subr.mxu0 0.0
  %1513 = vmatpush1.msra.mxu0 0.0
  %1514 = vmatprep.subr.mxu0 0.0
  %1515 = vmatpush1.msra.mxu0 0.0
  %1516 = vmatprep.subr.mxu0 0.0
  %1517 = vmatpush1.msra.mxu0 0.0
  %1518 = vmatprep.subr.mxu0 0.0
  %1519 = vmatpush1.msra.mxu0 0.0
  %1520 = vmatprep.subr.mxu0 0.0
  %1521 = vmatpush1.msra.mxu0 0.0
  %1522 = vmatprep.subr.mxu0 0.0
  %1523 = vmatpush1.msra.mxu0 0.0
  %1524 = vmatprep.subr.mxu0 0.0
  %1525 = vmatpush1.msra.mxu0 0.0
  %1526 = vmatprep.subr.mxu0 0.0
  %1527 = vmatpush1.msra.mxu0 0.0
  %1528 = vmatprep.subr.mxu0 0.0
  %1529 = vmatpush1.msra.mxu0 0.0
  %1530 = vmatprep.subr.mxu0 0.0
  %1531 = vmatpush1.msra.mxu0 0.0
  %1532 = vmatprep.subr.mxu0 0.0
  %1533 = vmatpush1.msra.mxu0 0.0
  %1534 = vmatprep.subr.mxu0 0.0
  %1535 = vmatpush1.msra.mxu0 0.0
  %1536 = vmatprep.subr.mxu0 0.0
  %1537 = vmatpush1.msra.mxu0 0.0
  %1538 = vmatprep.mubr.f32.mxu0 0.0
  %1539 = vmatmul.mubr.f32.gmra.mrb[0].mxu0 %v1326
  %v1540 = vpop.f32.mrb[0].mxu0
  %v1541 = vadd.f32 0.0, %v1540
  %v1542 = vpop.f32.mrb[0].mxu0
  %1543 = vdwg.mxu0
  %v1544 = vadd.f32 %v1473, %v1541
  %s1545 = scalar_lea.vmem %s0, 56
  %v1546 = vld [vmem:[%s1545] sm:$0x3]
  %1547 = vmatprep.subr.mxu0 0.0
  %1548 = vmatpush1.msra.mxu0 %v33
  %1549 = vmatprep.subr.mxu0 0.0
  %1550 = vmatpush1.msra.mxu0 %v34
  %1551 = vmatprep.subr.mxu0 0.0
  %1552 = vmatpush1.msra.mxu0 %v35
  %1553 = vmatprep.subr.mxu0 0.0
  %1554 = vmatpush1.msra.mxu0 %v36
  %1555 = vmatprep.subr.mxu0 0.0
  %1556 = vmatpush1.msra.mxu0 0.0
  %1557 = vmatprep.subr.mxu0 0.0
  %1558 = vmatpush1.msra.mxu0 0.0
  %1559 = vmatprep.subr.mxu0 0.0
  %1560 = vmatpush1.msra.mxu0 0.0
  %1561 = vmatprep.subr.mxu0 0.0
  %1562 = vmatpush1.msra.mxu0 0.0
  %1563 = vmatprep.subr.mxu0 0.0
  %1564 = vmatpush1.msra.mxu0 0.0
  %1565 = vmatprep.subr.mxu0 0.0
  %1566 = vmatpush1.msra.mxu0 0.0
  %1567 = vmatprep.subr.mxu0 0.0
  %1568 = vmatpush1.msra.mxu0 0.0
  %1569 = vmatprep.subr.mxu0 0.0
  %1570 = vmatpush1.msra.mxu0 0.0
  %1571 = vmatprep.subr.mxu0 0.0
  %1572 = vmatpush1.msra.mxu0 0.0
  %1573 = vmatprep.subr.mxu0 0.0
  %1574 = vmatpush1.msra.mxu0 0.0
  %1575 = vmatprep.subr.mxu0 0.0
  %1576 = vmatpush1.msra.mxu0 0.0
  %1577 = vmatprep.subr.mxu0 0.0
  %1578 = vmatpush1.msra.mxu0 0.0
  %1579 = vmatprep.subr.mxu0 0.0
  %1580 = vmatpush1.msra.mxu0 0.0
  %1581 = vmatprep.subr.mxu0 0.0
  %1582 = vmatpush1.msra.mxu0 0.0
  %1583 = vmatprep.subr.mxu0 0.0
  %1584 = vmatpush1.msra.mxu0 0.0
  %1585 = vmatprep.subr.mxu0 0.0
  %1586 = vmatpush1.msra.mxu0 0.0
  %1587 = vmatprep.subr.mxu0 0.0
  %1588 = vmatpush1.msra.mxu0 0.0
  %1589 = vmatprep.subr.mxu0 0.0
  %1590 = vmatpush1.msra.mxu0 0.0
  %1591 = vmatprep.subr.mxu0 0.0
  %1592 = vmatpush1.msra.mxu0 0.0
  %1593 = vmatprep.subr.mxu0 0.0
  %1594 = vmatpush1.msra.mxu0 0.0
  %1595 = vmatprep.subr.mxu0 0.0
  %1596 = vmatpush1.msra.mxu0 0.0
  %1597 = vmatprep.subr.mxu0 0.0
  %1598 = vmatpush1.msra.mxu0 0.0
  %1599 = vmatprep.subr.mxu0 0.0
  %1600 = vmatpush1.msra.mxu0 0.0
  %1601 = vmatprep.subr.mxu0 0.0
  %1602 = vmatpush1.msra.mxu0 0.0
  %1603 = vmatprep.subr.mxu0 0.0
  %1604 = vmatpush1.msra.mxu0 0.0
  %1605 = vmatprep.subr.mxu0 0.0
  %1606 = vmatpush1.msra.mxu0 0.0
  %1607 = vmatprep.subr.mxu0 0.0
  %1608 = vmatpush1.msra.mxu0 0.0
  %1609 = vmatprep.subr.mxu0 0.0
  %1610 = vmatpush1.msra.mxu0 0.0
  %1611 = vmatprep.mubr.f32.mxu0 0.0
  %1612 = vmatmul.mubr.f32.gmra.mrb[0].mxu0 %v1326
  %v1613 = vpop.f32.mrb[0].mxu0
  %v1614 = vadd.f32 0.0, %v1613
  %v1615 = vpop.f32.mrb[0].mxu0
  %1616 = vdwg.mxu0
  %v1617 = vadd.f32 %v1546, %v1614
  %v1618 = vxor.u32 %v1398, 2147483648
  %v1619 = vmul.f32 %v1618, 1.442695
  %v1620 = vpow.pop %v1619
  %v1621 = vadd.f32 %v1620, 1.0
  %v1622 = vrcp.pop %v1621
  %v1623 = vmul.f32 1.0, %v1622
  %v1624 = vxor.u32 %v1471, 2147483648
  %v1625 = vmul.f32 %v1624, 1.442695
  %v1626 = vpow.pop %v1625
  %v1627 = vadd.f32 %v1626, 1.0
  %v1628 = vrcp.pop %v1627
  %v1629 = vmul.f32 1.0, %v1628
  %v1630 = vtanh.pop %v1544
  %v1631 = vxor.u32 %v1617, 2147483648
  %v1632 = vmul.f32 %v1631, 1.442695
  %v1633 = vpow.pop %v1632
  %v1634 = vadd.f32 %v1633, 1.0
  %v1635 = vrcp.pop %v1634
  %v1636 = vmul.f32 1.0, %v1635
  %v1637 = vmul.f32 %v1629, %v1318
  %v1638 = vmul.f32 %v1623, %v1630
  %v1639 = vadd.f32 %v1637, %v1638
  %v1640 = vtanh.pop %v1639
  %v1641 = vmul.f32 %v1636, %v1640
  %s1642 = scalar_lea.vmem %s2, 8
  %1643 = vst.msk [vmem:[%s1642] sm:$0x3] %vm358, %v1641
  %s1644 = scalar_lea.vmem %s0, 10
  %v1645 = vld [vmem:[%s1644] sm:$0x3]
  %v1647 = vsel %vm40, %v1641, 0
  %1649 = vmatprep.subr.mxu0 0.0
  %1650 = vmatpush1.msra.mxu0 %v18
  %1651 = vmatprep.subr.mxu0 0.0
  %1652 = vmatpush1.msra.mxu0 %v19
  %1653 = vmatprep.subr.mxu0 0.0
  %1654 = vmatpush1.msra.mxu0 %v20
  %1655 = vmatprep.subr.mxu0 0.0
  %1656 = vmatpush1.msra.mxu0 %v21
  %1657 = vmatprep.subr.mxu0 0.0
  %1658 = vmatpush1.msra.mxu0 0.0
  %1659 = vmatprep.subr.mxu0 0.0
  %1660 = vmatpush1.msra.mxu0 0.0
  %1661 = vmatprep.subr.mxu0 0.0
  %1662 = vmatpush1.msra.mxu0 0.0
  %1663 = vmatprep.subr.mxu0 0.0
  %1664 = vmatpush1.msra.mxu0 0.0
  %1665 = vmatprep.subr.mxu0 0.0
  %1666 = vmatpush1.msra.mxu0 0.0
  %1667 = vmatprep.subr.mxu0 0.0
  %1668 = vmatpush1.msra.mxu0 0.0
  %1669 = vmatprep.subr.mxu0 0.0
  %1670 = vmatpush1.msra.mxu0 0.0
  %1671 = vmatprep.subr.mxu0 0.0
  %1672 = vmatpush1.msra.mxu0 0.0
  %1673 = vmatprep.subr.mxu0 0.0
  %1674 = vmatpush1.msra.mxu0 0.0
  %1675 = vmatprep.subr.mxu0 0.0
  %1676 = vmatpush1.msra.mxu0 0.0
  %1677 = vmatprep.subr.mxu0 0.0
  %1678 = vmatpush1.msra.mxu0 0.0
  %1679 = vmatprep.subr.mxu0 0.0
  %1680 = vmatpush1.msra.mxu0 0.0
  %1681 = vmatprep.subr.mxu0 0.0
  %1682 = vmatpush1.msra.mxu0 0.0
  %1683 = vmatprep.subr.mxu0 0.0
  %1684 = vmatpush1.msra.mxu0 0.0
  %1685 = vmatprep.subr.mxu0 0.0
  %1686 = vmatpush1.msra.mxu0 0.0
  %1687 = vmatprep.subr.mxu0 0.0
  %1688 = vmatpush1.msra.mxu0 0.0
  %1689 = vmatprep.subr.mxu0 0.0
  %1690 = vmatpush1.msra.mxu0 0.0
  %1691 = vmatprep.subr.mxu0 0.0
  %1692 = vmatpush1.msra.mxu0 0.0
  %1693 = vmatprep.subr.mxu0 0.0
  %1694 = vmatpush1.msra.mxu0 0.0
  %1695 = vmatprep.subr.mxu0 0.0
  %1696 = vmatpush1.msra.mxu0 0.0
  %1697 = vmatprep.subr.mxu0 0.0
  %1698 = vmatpush1.msra.mxu0 0.0
  %1699 = vmatprep.subr.mxu0 0.0
  %1700 = vmatpush1.msra.mxu0 0.0
  %1701 = vmatprep.subr.mxu0 0.0
  %1702 = vmatpush1.msra.mxu0 0.0
  %1703 = vmatprep.subr.mxu0 0.0
  %1704 = vmatpush1.msra.mxu0 0.0
  %1705 = vmatprep.subr.mxu0 0.0
  %1706 = vmatpush1.msra.mxu0 0.0
  %1707 = vmatprep.subr.mxu0 0.0
  %1708 = vmatpush1.msra.mxu0 0.0
  %1709 = vmatprep.subr.mxu0 0.0
  %1710 = vmatpush1.msra.mxu0 0.0
  %1711 = vmatprep.subr.mxu0 0.0
  %1712 = vmatpush1.msra.mxu0 0.0
  %1713 = vmatprep.mubr.f32.mxu0 0.0
  %1714 = vmatmul.mubr.f32.gmra.mrb[0].mxu0 %v1647
  %v1715 = vpop.f32.mrb[0].mxu0
  %v1716 = vadd.f32 0.0, %v1715
  %v1717 = vpop.f32.mrb[0].mxu0
  %1718 = vdwg.mxu0
  %v1719 = vadd.f32 %v1645, %v1716
  %s1720 = scalar_lea.vmem %s0, 26
  %v1721 = vld [vmem:[%s1720] sm:$0x3]
  %1722 = vmatprep.subr.mxu0 0.0
  %1723 = vmatpush1.msra.mxu0 %v23
  %1724 = vmatprep.subr.mxu0 0.0
  %1725 = vmatpush1.msra.mxu0 %v24
  %1726 = vmatprep.subr.mxu0 0.0
  %1727 = vmatpush1.msra.mxu0 %v25
  %1728 = vmatprep.subr.mxu0 0.0
  %1729 = vmatpush1.msra.mxu0 %v26
  %1730 = vmatprep.subr.mxu0 0.0
  %1731 = vmatpush1.msra.mxu0 0.0
  %1732 = vmatprep.subr.mxu0 0.0
  %1733 = vmatpush1.msra.mxu0 0.0
  %1734 = vmatprep.subr.mxu0 0.0
  %1735 = vmatpush1.msra.mxu0 0.0
  %1736 = vmatprep.subr.mxu0 0.0
  %1737 = vmatpush1.msra.mxu0 0.0
  %1738 = vmatprep.subr.mxu0 0.0
  %1739 = vmatpush1.msra.mxu0 0.0
  %1740 = vmatprep.subr.mxu0 0.0
  %1741 = vmatpush1.msra.mxu0 0.0
  %1742 = vmatprep.subr.mxu0 0.0
  %1743 = vmatpush1.msra.mxu0 0.0
  %1744 = vmatprep.subr.mxu0 0.0
  %1745 = vmatpush1.msra.mxu0 0.0
  %1746 = vmatprep.subr.mxu0 0.0
  %1747 = vmatpush1.msra.mxu0 0.0
  %1748 = vmatprep.subr.mxu0 0.0
  %1749 = vmatpush1.msra.mxu0 0.0
  %1750 = vmatprep.subr.mxu0 0.0
  %1751 = vmatpush1.msra.mxu0 0.0
  %1752 = vmatprep.subr.mxu0 0.0
  %1753 = vmatpush1.msra.mxu0 0.0
  %1754 = vmatprep.subr.mxu0 0.0
  %1755 = vmatpush1.msra.mxu0 0.0
  %1756 = vmatprep.subr.mxu0 0.0
  %1757 = vmatpush1.msra.mxu0 0.0
  %1758 = vmatprep.subr.mxu0 0.0
  %1759 = vmatpush1.msra.mxu0 0.0
  %1760 = vmatprep.subr.mxu0 0.0
  %1761 = vmatpush1.msra.mxu0 0.0
  %1762 = vmatprep.subr.mxu0 0.0
  %1763 = vmatpush1.msra.mxu0 0.0
  %1764 = vmatprep.subr.mxu0 0.0
  %1765 = vmatpush1.msra.mxu0 0.0
  %1766 = vmatprep.subr.mxu0 0.0
  %1767 = vmatpush1.msra.mxu0 0.0
  %1768 = vmatprep.subr.mxu0 0.0
  %1769 = vmatpush1.msra.mxu0 0.0
  %1770 = vmatprep.subr.mxu0 0.0
  %1771 = vmatpush1.msra.mxu0 0.0
  %1772 = vmatprep.subr.mxu0 0.0
  %1773 = vmatpush1.msra.mxu0 0.0
  %1774 = vmatprep.subr.mxu0 0.0
  %1775 = vmatpush1.msra.mxu0 0.0
  %1776 = vmatprep.subr.mxu0 0.0
  %1777 = vmatpush1.msra.mxu0 0.0
  %1778 = vmatprep.subr.mxu0 0.0
  %1779 = vmatpush1.msra.mxu0 0.0
  %1780 = vmatprep.subr.mxu0 0.0
  %1781 = vmatpush1.msra.mxu0 0.0
  %1782 = vmatprep.subr.mxu0 0.0
  %1783 = vmatpush1.msra.mxu0 0.0
  %1784 = vmatprep.subr.mxu0 0.0
  %1785 = vmatpush1.msra.mxu0 0.0
  %1786 = vmatprep.mubr.f32.mxu0 0.0
  %1787 = vmatmul.mubr.f32.gmra.mrb[0].mxu0 %v1647
  %v1788 = vpop.f32.mrb[0].mxu0
  %v1789 = vadd.f32 0.0, %v1788
  %v1790 = vpop.f32.mrb[0].mxu0
  %1791 = vdwg.mxu0
  %v1792 = vadd.f32 %v1721, %v1789
  %s1793 = scalar_lea.vmem %s0, 42
  %v1794 = vld [vmem:[%s1793] sm:$0x3]
  %1795 = vmatprep.subr.mxu0 0.0
  %1796 = vmatpush1.msra.mxu0 %v28
  %1797 = vmatprep.subr.mxu0 0.0
  %1798 = vmatpush1.msra.mxu0 %v29
  %1799 = vmatprep.subr.mxu0 0.0
  %1800 = vmatpush1.msra.mxu0 %v30
  %1801 = vmatprep.subr.mxu0 0.0
  %1802 = vmatpush1.msra.mxu0 %v31
  %1803 = vmatprep.subr.mxu0 0.0
  %1804 = vmatpush1.msra.mxu0 0.0
  %1805 = vmatprep.subr.mxu0 0.0
  %1806 = vmatpush1.msra.mxu0 0.0
  %1807 = vmatprep.subr.mxu0 0.0
  %1808 = vmatpush1.msra.mxu0 0.0
  %1809 = vmatprep.subr.mxu0 0.0
  %1810 = vmatpush1.msra.mxu0 0.0
  %1811 = vmatprep.subr.mxu0 0.0
  %1812 = vmatpush1.msra.mxu0 0.0
  %1813 = vmatprep.subr.mxu0 0.0
  %1814 = vmatpush1.msra.mxu0 0.0
  %1815 = vmatprep.subr.mxu0 0.0
  %1816 = vmatpush1.msra.mxu0 0.0
  %1817 = vmatprep.subr.mxu0 0.0
  %1818 = vmatpush1.msra.mxu0 0.0
  %1819 = vmatprep.subr.mxu0 0.0
  %1820 = vmatpush1.msra.mxu0 0.0
  %1821 = vmatprep.subr.mxu0 0.0
  %1822 = vmatpush1.msra.mxu0 0.0
  %1823 = vmatprep.subr.mxu0 0.0
  %1824 = vmatpush1.msra.mxu0 0.0
  %1825 = vmatprep.subr.mxu0 0.0
  %1826 = vmatpush1.msra.mxu0 0.0
  %1827 = vmatprep.subr.mxu0 0.0
  %1828 = vmatpush1.msra.mxu0 0.0
  %1829 = vmatprep.subr.mxu0 0.0
  %1830 = vmatpush1.msra.mxu0 0.0
  %1831 = vmatprep.subr.mxu0 0.0
  %1832 = vmatpush1.msra.mxu0 0.0
  %1833 = vmatprep.subr.mxu0 0.0
  %1834 = vmatpush1.msra.mxu0 0.0
  %1835 = vmatprep.subr.mxu0 0.0
  %1836 = vmatpush1.msra.mxu0 0.0
  %1837 = vmatprep.subr.mxu0 0.0
  %1838 = vmatpush1.msra.mxu0 0.0
  %1839 = vmatprep.subr.mxu0 0.0
  %1840 = vmatpush1.msra.mxu0 0.0
  %1841 = vmatprep.subr.mxu0 0.0
  %1842 = vmatpush1.msra.mxu0 0.0
  %1843 = vmatprep.subr.mxu0 0.0
  %1844 = vmatpush1.msra.mxu0 0.0
  %1845 = vmatprep.subr.mxu0 0.0
  %1846 = vmatpush1.msra.mxu0 0.0
  %1847 = vmatprep.subr.mxu0 0.0
  %1848 = vmatpush1.msra.mxu0 0.0
  %1849 = vmatprep.subr.mxu0 0.0
  %1850 = vmatpush1.msra.mxu0 0.0
  %1851 = vmatprep.subr.mxu0 0.0
  %1852 = vmatpush1.msra.mxu0 0.0
  %1853 = vmatprep.subr.mxu0 0.0
  %1854 = vmatpush1.msra.mxu0 0.0
  %1855 = vmatprep.subr.mxu0 0.0
  %1856 = vmatpush1.msra.mxu0 0.0
  %1857 = vmatprep.subr.mxu0 0.0
  %1858 = vmatpush1.msra.mxu0 0.0
  %1859 = vmatprep.mubr.f32.mxu0 0.0
  %1860 = vmatmul.mubr.f32.gmra.mrb[0].mxu0 %v1647
  %v1861 = vpop.f32.mrb[0].mxu0
  %v1862 = vadd.f32 0.0, %v1861
  %v1863 = vpop.f32.mrb[0].mxu0
  %1864 = vdwg.mxu0
  %v1865 = vadd.f32 %v1794, %v1862
  %s1866 = scalar_lea.vmem %s0, 58
  %v1867 = vld [vmem:[%s1866] sm:$0x3]
  %1868 = vmatprep.subr.mxu0 0.0
  %1869 = vmatpush1.msra.mxu0 %v33
  %1870 = vmatprep.subr.mxu0 0.0
  %1871 = vmatpush1.msra.mxu0 %v34
  %1872 = vmatprep.subr.mxu0 0.0
  %1873 = vmatpush1.msra.mxu0 %v35
  %1874 = vmatprep.subr.mxu0 0.0
  %1875 = vmatpush1.msra.mxu0 %v36
  %1876 = vmatprep.subr.mxu0 0.0
  %1877 = vmatpush1.msra.mxu0 0.0
  %1878 = vmatprep.subr.mxu0 0.0
  %1879 = vmatpush1.msra.mxu0 0.0
  %1880 = vmatprep.subr.mxu0 0.0
  %1881 = vmatpush1.msra.mxu0 0.0
  %1882 = vmatprep.subr.mxu0 0.0
  %1883 = vmatpush1.msra.mxu0 0.0
  %1884 = vmatprep.subr.mxu0 0.0
  %1885 = vmatpush1.msra.mxu0 0.0
  %1886 = vmatprep.subr.mxu0 0.0
  %1887 = vmatpush1.msra.mxu0 0.0
  %1888 = vmatprep.subr.mxu0 0.0
  %1889 = vmatpush1.msra.mxu0 0.0
  %1890 = vmatprep.subr.mxu0 0.0
  %1891 = vmatpush1.msra.mxu0 0.0
  %1892 = vmatprep.subr.mxu0 0.0
  %1893 = vmatpush1.msra.mxu0 0.0
  %1894 = vmatprep.subr.mxu0 0.0
  %1895 = vmatpush1.msra.mxu0 0.0
  %1896 = vmatprep.subr.mxu0 0.0
  %1897 = vmatpush1.msra.mxu0 0.0
  %1898 = vmatprep.subr.mxu0 0.0
  %1899 = vmatpush1.msra.mxu0 0.0
  %1900 = vmatprep.subr.mxu0 0.0
  %1901 = vmatpush1.msra.mxu0 0.0
  %1902 = vmatprep.subr.mxu0 0.0
  %1903 = vmatpush1.msra.mxu0 0.0
  %1904 = vmatprep.subr.mxu0 0.0
  %1905 = vmatpush1.msra.mxu0 0.0
  %1906 = vmatprep.subr.mxu0 0.0
  %1907 = vmatpush1.msra.mxu0 0.0
  %1908 = vmatprep.subr.mxu0 0.0
  %1909 = vmatpush1.msra.mxu0 0.0
  %1910 = vmatprep.subr.mxu0 0.0
  %1911 = vmatpush1.msra.mxu0 0.0
  %1912 = vmatprep.subr.mxu0 0.0
  %1913 = vmatpush1.msra.mxu0 0.0
  %1914 = vmatprep.subr.mxu0 0.0
  %1915 = vmatpush1.msra.mxu0 0.0
  %1916 = vmatprep.subr.mxu0 0.0
  %1917 = vmatpush1.msra.mxu0 0.0
  %1918 = vmatprep.subr.mxu0 0.0
  %1919 = vmatpush1.msra.mxu0 0.0
  %1920 = vmatprep.subr.mxu0 0.0
  %1921 = vmatpush1.msra.mxu0 0.0
  %1922 = vmatprep.subr.mxu0 0.0
  %1923 = vmatpush1.msra.mxu0 0.0
  %1924 = vmatprep.subr.mxu0 0.0
  %1925 = vmatpush1.msra.mxu0 0.0
  %1926 = vmatprep.subr.mxu0 0.0
  %1927 = vmatpush1.msra.mxu0 0.0
  %1928 = vmatprep.subr.mxu0 0.0
  %1929 = vmatpush1.msra.mxu0 0.0
  %1930 = vmatprep.subr.mxu0 0.0
  %1931 = vmatpush1.msra.mxu0 0.0
  %1932 = vmatprep.mubr.f32.mxu0 0.0
  %1933 = vmatmul.mubr.f32.gmra.mrb[0].mxu0 %v1647
  %v1934 = vpop.f32.mrb[0].mxu0
  %v1935 = vadd.f32 0.0, %v1934
  %v1936 = vpop.f32.mrb[0].mxu0
  %1937 = vdwg.mxu0
  %v1938 = vadd.f32 %v1867, %v1935
  %v1939 = vxor.u32 %v1719, 2147483648
  %v1940 = vmul.f32 %v1939, 1.442695
  %v1941 = vpow.pop %v1940
  %v1942 = vadd.f32 %v1941, 1.0
  %v1943 = vrcp.pop %v1942
  %v1944 = vmul.f32 1.0, %v1943
  %v1945 = vxor.u32 %v1792, 2147483648
  %v1946 = vmul.f32 %v1945, 1.442695
  %v1947 = vpow.pop %v1946
  %v1948 = vadd.f32 %v1947, 1.0
  %v1949 = vrcp.pop %v1948
  %v1950 = vmul.f32 1.0, %v1949
  %v1951 = vtanh.pop %v1865
  %v1952 = vxor.u32 %v1938, 2147483648
  %v1953 = vmul.f32 %v1952, 1.442695
  %v1954 = vpow.pop %v1953
  %v1955 = vadd.f32 %v1954, 1.0
  %v1956 = vrcp.pop %v1955
  %v1957 = vmul.f32 1.0, %v1956
  %v1958 = vmul.f32 %v1950, %v1639
  %v1959 = vmul.f32 %v1944, %v1951
  %v1960 = vadd.f32 %v1958, %v1959
  %v1961 = vtanh.pop %v1960
  %v1962 = vmul.f32 %v1957, %v1961
  %s1963 = scalar_lea.vmem %s2, 10
  %1964 = vst.msk [vmem:[%s1963] sm:$0x3] %vm358, %v1962
  %s1965 = scalar_lea.vmem %s0, 12
  %v1966 = vld [vmem:[%s1965] sm:$0x3]
  %v1968 = vsel %vm40, %v1962, 0
  %1970 = vmatprep.subr.mxu0 0.0
  %1971 = vmatpush1.msra.mxu0 %v18
  %1972 = vmatprep.subr.mxu0 0.0
  %1973 = vmatpush1.msra.mxu0 %v19
  %1974 = vmatprep.subr.mxu0 0.0
  %1975 = vmatpush1.msra.mxu0 %v20
  %1976 = vmatprep.subr.mxu0 0.0
  %1977 = vmatpush1.msra.mxu0 %v21
  %1978 = vmatprep.subr.mxu0 0.0
  %1979 = vmatpush1.msra.mxu0 0.0
  %1980 = vmatprep.subr.mxu0 0.0
  %1981 = vmatpush1.msra.mxu0 0.0
  %1982 = vmatprep.subr.mxu0 0.0
  %1983 = vmatpush1.msra.mxu0 0.0
  %1984 = vmatprep.subr.mxu0 0.0
  %1985 = vmatpush1.msra.mxu0 0.0
  %1986 = vmatprep.subr.mxu0 0.0
  %1987 = vmatpush1.msra.mxu0 0.0
  %1988 = vmatprep.subr.mxu0 0.0
  %1989 = vmatpush1.msra.mxu0 0.0
  %1990 = vmatprep.subr.mxu0 0.0
  %1991 = vmatpush1.msra.mxu0 0.0
  %1992 = vmatprep.subr.mxu0 0.0
  %1993 = vmatpush1.msra.mxu0 0.0
  %1994 = vmatprep.subr.mxu0 0.0
  %1995 = vmatpush1.msra.mxu0 0.0
  %1996 = vmatprep.subr.mxu0 0.0
  %1997 = vmatpush1.msra.mxu0 0.0
  %1998 = vmatprep.subr.mxu0 0.0
  %1999 = vmatpush1.msra.mxu0 0.0
  %2000 = vmatprep.subr.mxu0 0.0
  %2001 = vmatpush1.msra.mxu0 0.0
  %2002 = vmatprep.subr.mxu0 0.0
  %2003 = vmatpush1.msra.mxu0 0.0
  %2004 = vmatprep.subr.mxu0 0.0
  %2005 = vmatpush1.msra.mxu0 0.0
  %2006 = vmatprep.subr.mxu0 0.0
  %2007 = vmatpush1.msra.mxu0 0.0
  %2008 = vmatprep.subr.mxu0 0.0
  %2009 = vmatpush1.msra.mxu0 0.0
  %2010 = vmatprep.subr.mxu0 0.0
  %2011 = vmatpush1.msra.mxu0 0.0
  %2012 = vmatprep.subr.mxu0 0.0
  %2013 = vmatpush1.msra.mxu0 0.0
  %2014 = vmatprep.subr.mxu0 0.0
  %2015 = vmatpush1.msra.mxu0 0.0
  %2016 = vmatprep.subr.mxu0 0.0
  %2017 = vmatpush1.msra.mxu0 0.0
  %2018 = vmatprep.subr.mxu0 0.0
  %2019 = vmatpush1.msra.mxu0 0.0
  %2020 = vmatprep.subr.mxu0 0.0
  %2021 = vmatpush1.msra.mxu0 0.0
  %2022 = vmatprep.subr.mxu0 0.0
  %2023 = vmatpush1.msra.mxu0 0.0
  %2024 = vmatprep.subr.mxu0 0.0
  %2025 = vmatpush1.msra.mxu0 0.0
  %2026 = vmatprep.subr.mxu0 0.0
  %2027 = vmatpush1.msra.mxu0 0.0
  %2028 = vmatprep.subr.mxu0 0.0
  %2029 = vmatpush1.msra.mxu0 0.0
  %2030 = vmatprep.subr.mxu0 0.0
  %2031 = vmatpush1.msra.mxu0 0.0
  %2032 = vmatprep.subr.mxu0 0.0
  %2033 = vmatpush1.msra.mxu0 0.0
  %2034 = vmatprep.mubr.f32.mxu0 0.0
  %2035 = vmatmul.mubr.f32.gmra.mrb[0].mxu0 %v1968
  %v2036 = vpop.f32.mrb[0].mxu0
  %v2037 = vadd.f32 0.0, %v2036
  %v2038 = vpop.f32.mrb[0].mxu0
  %2039 = vdwg.mxu0
  %v2040 = vadd.f32 %v1966, %v2037
  %s2041 = scalar_lea.vmem %s0, 28
  %v2042 = vld [vmem:[%s2041] sm:$0x3]
  %2043 = vmatprep.subr.mxu0 0.0
  %2044 = vmatpush1.msra.mxu0 %v23
  %2045 = vmatprep.subr.mxu0 0.0
  %2046 = vmatpush1.msra.mxu0 %v24
  %2047 = vmatprep.subr.mxu0 0.0
  %2048 = vmatpush1.msra.mxu0 %v25
  %2049 = vmatprep.subr.mxu0 0.0
  %2050 = vmatpush1.msra.mxu0 %v26
  %2051 = vmatprep.subr.mxu0 0.0
  %2052 = vmatpush1.msra.mxu0 0.0
  %2053 = vmatprep.subr.mxu0 0.0
  %2054 = vmatpush1.msra.mxu0 0.0
  %2055 = vmatprep.subr.mxu0 0.0
  %2056 = vmatpush1.msra.mxu0 0.0
  %2057 = vmatprep.subr.mxu0 0.0
  %2058 = vmatpush1.msra.mxu0 0.0
  %2059 = vmatprep.subr.mxu0 0.0
  %2060 = vmatpush1.msra.mxu0 0.0
  %2061 = vmatprep.subr.mxu0 0.0
  %2062 = vmatpush1.msra.mxu0 0.0
  %2063 = vmatprep.subr.mxu0 0.0
  %2064 = vmatpush1.msra.mxu0 0.0
  %2065 = vmatprep.subr.mxu0 0.0
  %2066 = vmatpush1.msra.mxu0 0.0
  %2067 = vmatprep.subr.mxu0 0.0
  %2068 = vmatpush1.msra.mxu0 0.0
  %2069 = vmatprep.subr.mxu0 0.0
  %2070 = vmatpush1.msra.mxu0 0.0
  %2071 = vmatprep.subr.mxu0 0.0
  %2072 = vmatpush1.msra.mxu0 0.0
  %2073 = vmatprep.subr.mxu0 0.0
  %2074 = vmatpush1.msra.mxu0 0.0
  %2075 = vmatprep.subr.mxu0 0.0
  %2076 = vmatpush1.msra.mxu0 0.0
  %2077 = vmatprep.subr.mxu0 0.0
  %2078 = vmatpush1.msra.mxu0 0.0
  %2079 = vmatprep.subr.mxu0 0.0
  %2080 = vmatpush1.msra.mxu0 0.0
  %2081 = vmatprep.subr.mxu0 0.0
  %2082 = vmatpush1.msra.mxu0 0.0
  %2083 = vmatprep.subr.mxu0 0.0
  %2084 = vmatpush1.msra.mxu0 0.0
  %2085 = vmatprep.subr.mxu0 0.0
  %2086 = vmatpush1.msra.mxu0 0.0
  %2087 = vmatprep.subr.mxu0 0.0
  %2088 = vmatpush1.msra.mxu0 0.0
  %2089 = vmatprep.subr.mxu0 0.0
  %2090 = vmatpush1.msra.mxu0 0.0
  %2091 = vmatprep.subr.mxu0 0.0
  %2092 = vmatpush1.msra.mxu0 0.0
  %2093 = vmatprep.subr.mxu0 0.0
  %2094 = vmatpush1.msra.mxu0 0.0
  %2095 = vmatprep.subr.mxu0 0.0
  %2096 = vmatpush1.msra.mxu0 0.0
  %2097 = vmatprep.subr.mxu0 0.0
  %2098 = vmatpush1.msra.mxu0 0.0
  %2099 = vmatprep.subr.mxu0 0.0
  %2100 = vmatpush1.msra.mxu0 0.0
  %2101 = vmatprep.subr.mxu0 0.0
  %2102 = vmatpush1.msra.mxu0 0.0
  %2103 = vmatprep.subr.mxu0 0.0
  %2104 = vmatpush1.msra.mxu0 0.0
  %2105 = vmatprep.subr.mxu0 0.0
  %2106 = vmatpush1.msra.mxu0 0.0
  %2107 = vmatprep.mubr.f32.mxu0 0.0
  %2108 = vmatmul.mubr.f32.gmra.mrb[0].mxu0 %v1968
  %v2109 = vpop.f32.mrb[0].mxu0
  %v2110 = vadd.f32 0.0, %v2109
  %v2111 = vpop.f32.mrb[0].mxu0
  %2112 = vdwg.mxu0
  %v2113 = vadd.f32 %v2042, %v2110
  %s2114 = scalar_lea.vmem %s0, 44
  %v2115 = vld [vmem:[%s2114] sm:$0x3]
  %2116 = vmatprep.subr.mxu0 0.0
  %2117 = vmatpush1.msra.mxu0 %v28
  %2118 = vmatprep.subr.mxu0 0.0
  %2119 = vmatpush1.msra.mxu0 %v29
  %2120 = vmatprep.subr.mxu0 0.0
  %2121 = vmatpush1.msra.mxu0 %v30
  %2122 = vmatprep.subr.mxu0 0.0
  %2123 = vmatpush1.msra.mxu0 %v31
  %2124 = vmatprep.subr.mxu0 0.0
  %2125 = vmatpush1.msra.mxu0 0.0
  %2126 = vmatprep.subr.mxu0 0.0
  %2127 = vmatpush1.msra.mxu0 0.0
  %2128 = vmatprep.subr.mxu0 0.0
  %2129 = vmatpush1.msra.mxu0 0.0
  %2130 = vmatprep.subr.mxu0 0.0
  %2131 = vmatpush1.msra.mxu0 0.0
  %2132 = vmatprep.subr.mxu0 0.0
  %2133 = vmatpush1.msra.mxu0 0.0
  %2134 = vmatprep.subr.mxu0 0.0
  %2135 = vmatpush1.msra.mxu0 0.0
  %2136 = vmatprep.subr.mxu0 0.0
  %2137 = vmatpush1.msra.mxu0 0.0
  %2138 = vmatprep.subr.mxu0 0.0
  %2139 = vmatpush1.msra.mxu0 0.0
  %2140 = vmatprep.subr.mxu0 0.0
  %2141 = vmatpush1.msra.mxu0 0.0
  %2142 = vmatprep.subr.mxu0 0.0
  %2143 = vmatpush1.msra.mxu0 0.0
  %2144 = vmatprep.subr.mxu0 0.0
  %2145 = vmatpush1.msra.mxu0 0.0
  %2146 = vmatprep.subr.mxu0 0.0
  %2147 = vmatpush1.msra.mxu0 0.0
  %2148 = vmatprep.subr.mxu0 0.0
  %2149 = vmatpush1.msra.mxu0 0.0
  %2150 = vmatprep.subr.mxu0 0.0
  %2151 = vmatpush1.msra.mxu0 0.0
  %2152 = vmatprep.subr.mxu0 0.0
  %2153 = vmatpush1.msra.mxu0 0.0
  %2154 = vmatprep.subr.mxu0 0.0
  %2155 = vmatpush1.msra.mxu0 0.0
  %2156 = vmatprep.subr.mxu0 0.0
  %2157 = vmatpush1.msra.mxu0 0.0
  %2158 = vmatprep.subr.mxu0 0.0
  %2159 = vmatpush1.msra.mxu0 0.0
  %2160 = vmatprep.subr.mxu0 0.0
  %2161 = vmatpush1.msra.mxu0 0.0
  %2162 = vmatprep.subr.mxu0 0.0
  %2163 = vmatpush1.msra.mxu0 0.0
  %2164 = vmatprep.subr.mxu0 0.0
  %2165 = vmatpush1.msra.mxu0 0.0
  %2166 = vmatprep.subr.mxu0 0.0
  %2167 = vmatpush1.msra.mxu0 0.0
  %2168 = vmatprep.subr.mxu0 0.0
  %2169 = vmatpush1.msra.mxu0 0.0
  %2170 = vmatprep.subr.mxu0 0.0
  %2171 = vmatpush1.msra.mxu0 0.0
  %2172 = vmatprep.subr.mxu0 0.0
  %2173 = vmatpush1.msra.mxu0 0.0
  %2174 = vmatprep.subr.mxu0 0.0
  %2175 = vmatpush1.msra.mxu0 0.0
  %2176 = vmatprep.subr.mxu0 0.0
  %2177 = vmatpush1.msra.mxu0 0.0
  %2178 = vmatprep.subr.mxu0 0.0
  %2179 = vmatpush1.msra.mxu0 0.0
  %2180 = vmatprep.mubr.f32.mxu0 0.0
  %2181 = vmatmul.mubr.f32.gmra.mrb[0].mxu0 %v1968
  %v2182 = vpop.f32.mrb[0].mxu0
  %v2183 = vadd.f32 0.0, %v2182
  %v2184 = vpop.f32.mrb[0].mxu0
  %2185 = vdwg.mxu0
  %v2186 = vadd.f32 %v2115, %v2183
  %s2187 = scalar_lea.vmem %s0, 60
  %v2188 = vld [vmem:[%s2187] sm:$0x3]
  %2189 = vmatprep.subr.mxu0 0.0
  %2190 = vmatpush1.msra.mxu0 %v33
  %2191 = vmatprep.subr.mxu0 0.0
  %2192 = vmatpush1.msra.mxu0 %v34
  %2193 = vmatprep.subr.mxu0 0.0
  %2194 = vmatpush1.msra.mxu0 %v35
  %2195 = vmatprep.subr.mxu0 0.0
  %2196 = vmatpush1.msra.mxu0 %v36
  %2197 = vmatprep.subr.mxu0 0.0
  %2198 = vmatpush1.msra.mxu0 0.0
  %2199 = vmatprep.subr.mxu0 0.0
  %2200 = vmatpush1.msra.mxu0 0.0
  %2201 = vmatprep.subr.mxu0 0.0
  %2202 = vmatpush1.msra.mxu0 0.0
  %2203 = vmatprep.subr.mxu0 0.0
  %2204 = vmatpush1.msra.mxu0 0.0
  %2205 = vmatprep.subr.mxu0 0.0
  %2206 = vmatpush1.msra.mxu0 0.0
  %2207 = vmatprep.subr.mxu0 0.0
  %2208 = vmatpush1.msra.mxu0 0.0
  %2209 = vmatprep.subr.mxu0 0.0
  %2210 = vmatpush1.msra.mxu0 0.0
  %2211 = vmatprep.subr.mxu0 0.0
  %2212 = vmatpush1.msra.mxu0 0.0
  %2213 = vmatprep.subr.mxu0 0.0
  %2214 = vmatpush1.msra.mxu0 0.0
  %2215 = vmatprep.subr.mxu0 0.0
  %2216 = vmatpush1.msra.mxu0 0.0
  %2217 = vmatprep.subr.mxu0 0.0
  %2218 = vmatpush1.msra.mxu0 0.0
  %2219 = vmatprep.subr.mxu0 0.0
  %2220 = vmatpush1.msra.mxu0 0.0
  %2221 = vmatprep.subr.mxu0 0.0
  %2222 = vmatpush1.msra.mxu0 0.0
  %2223 = vmatprep.subr.mxu0 0.0
  %2224 = vmatpush1.msra.mxu0 0.0
  %2225 = vmatprep.subr.mxu0 0.0
  %2226 = vmatpush1.msra.mxu0 0.0
  %2227 = vmatprep.subr.mxu0 0.0
  %2228 = vmatpush1.msra.mxu0 0.0
  %2229 = vmatprep.subr.mxu0 0.0
  %2230 = vmatpush1.msra.mxu0 0.0
  %2231 = vmatprep.subr.mxu0 0.0
  %2232 = vmatpush1.msra.mxu0 0.0
  %2233 = vmatprep.subr.mxu0 0.0
  %2234 = vmatpush1.msra.mxu0 0.0
  %2235 = vmatprep.subr.mxu0 0.0
  %2236 = vmatpush1.msra.mxu0 0.0
  %2237 = vmatprep.subr.mxu0 0.0
  %2238 = vmatpush1.msra.mxu0 0.0
  %2239 = vmatprep.subr.mxu0 0.0
  %2240 = vmatpush1.msra.mxu0 0.0
  %2241 = vmatprep.subr.mxu0 0.0
  %2242 = vmatpush1.msra.mxu0 0.0
  %2243 = vmatprep.subr.mxu0 0.0
  %2244 = vmatpush1.msra.mxu0 0.0
  %2245 = vmatprep.subr.mxu0 0.0
  %2246 = vmatpush1.msra.mxu0 0.0
  %2247 = vmatprep.subr.mxu0 0.0
  %2248 = vmatpush1.msra.mxu0 0.0
  %2249 = vmatprep.subr.mxu0 0.0
  %2250 = vmatpush1.msra.mxu0 0.0
  %2251 = vmatprep.subr.mxu0 0.0
  %2252 = vmatpush1.msra.mxu0 0.0
  %2253 = vmatprep.mubr.f32.mxu0 0.0
  %2254 = vmatmul.mubr.f32.gmra.mrb[0].mxu0 %v1968
  %v2255 = vpop.f32.mrb[0].mxu0
  %v2256 = vadd.f32 0.0, %v2255
  %v2257 = vpop.f32.mrb[0].mxu0
  %2258 = vdwg.mxu0
  %v2259 = vadd.f32 %v2188, %v2256
  %v2260 = vxor.u32 %v2040, 2147483648
  %v2261 = vmul.f32 %v2260, 1.442695
  %v2262 = vpow.pop %v2261
  %v2263 = vadd.f32 %v2262, 1.0
  %v2264 = vrcp.pop %v2263
  %v2265 = vmul.f32 1.0, %v2264
  %v2266 = vxor.u32 %v2113, 2147483648
  %v2267 = vmul.f32 %v2266, 1.442695
  %v2268 = vpow.pop %v2267
  %v2269 = vadd.f32 %v2268, 1.0
  %v2270 = vrcp.pop %v2269
  %v2271 = vmul.f32 1.0, %v2270
  %v2272 = vtanh.pop %v2186
  %v2273 = vxor.u32 %v2259, 2147483648
  %v2274 = vmul.f32 %v2273, 1.442695
  %v2275 = vpow.pop %v2274
  %v2276 = vadd.f32 %v2275, 1.0
  %v2277 = vrcp.pop %v2276
  %v2278 = vmul.f32 1.0, %v2277
  %v2279 = vmul.f32 %v2271, %v1960
  %v2280 = vmul.f32 %v2265, %v2272
  %v2281 = vadd.f32 %v2279, %v2280
  %v2282 = vtanh.pop %v2281
  %v2283 = vmul.f32 %v2278, %v2282
  %s2284 = scalar_lea.vmem %s2, 12
  %2285 = vst.msk [vmem:[%s2284] sm:$0x3] %vm358, %v2283
  %s2286 = scalar_lea.vmem %s0, 14
  %v2287 = vld [vmem:[%s2286] sm:$0x3]
  %v2289 = vsel %vm40, %v2283, 0
  %2291 = vmatprep.subr.mxu0 0.0
  %2292 = vmatpush1.msra.mxu0 %v18
  %2293 = vmatprep.subr.mxu0 0.0
  %2294 = vmatpush1.msra.mxu0 %v19
  %2295 = vmatprep.subr.mxu0 0.0
  %2296 = vmatpush1.msra.mxu0 %v20
  %2297 = vmatprep.subr.mxu0 0.0
  %2298 = vmatpush1.msra.mxu0 %v21
  %2299 = vmatprep.subr.mxu0 0.0
  %2300 = vmatpush1.msra.mxu0 0.0
  %2301 = vmatprep.subr.mxu0 0.0
  %2302 = vmatpush1.msra.mxu0 0.0
  %2303 = vmatprep.subr.mxu0 0.0
  %2304 = vmatpush1.msra.mxu0 0.0
  %2305 = vmatprep.subr.mxu0 0.0
  %2306 = vmatpush1.msra.mxu0 0.0
  %2307 = vmatprep.subr.mxu0 0.0
  %2308 = vmatpush1.msra.mxu0 0.0
  %2309 = vmatprep.subr.mxu0 0.0
  %2310 = vmatpush1.msra.mxu0 0.0
  %2311 = vmatprep.subr.mxu0 0.0
  %2312 = vmatpush1.msra.mxu0 0.0
  %2313 = vmatprep.subr.mxu0 0.0
  %2314 = vmatpush1.msra.mxu0 0.0
  %2315 = vmatprep.subr.mxu0 0.0
  %2316 = vmatpush1.msra.mxu0 0.0
  %2317 = vmatprep.subr.mxu0 0.0
  %2318 = vmatpush1.msra.mxu0 0.0
  %2319 = vmatprep.subr.mxu0 0.0
  %2320 = vmatpush1.msra.mxu0 0.0
  %2321 = vmatprep.subr.mxu0 0.0
  %2322 = vmatpush1.msra.mxu0 0.0
  %2323 = vmatprep.subr.mxu0 0.0
  %2324 = vmatpush1.msra.mxu0 0.0
  %2325 = vmatprep.subr.mxu0 0.0
  %2326 = vmatpush1.msra.mxu0 0.0
  %2327 = vmatprep.subr.mxu0 0.0
  %2328 = vmatpush1.msra.mxu0 0.0
  %2329 = vmatprep.subr.mxu0 0.0
  %2330 = vmatpush1.msra.mxu0 0.0
  %2331 = vmatprep.subr.mxu0 0.0
  %2332 = vmatpush1.msra.mxu0 0.0
  %2333 = vmatprep.subr.mxu0 0.0
  %2334 = vmatpush1.msra.mxu0 0.0
  %2335 = vmatprep.subr.mxu0 0.0
  %2336 = vmatpush1.msra.mxu0 0.0
  %2337 = vmatprep.subr.mxu0 0.0
  %2338 = vmatpush1.msra.mxu0 0.0
  %2339 = vmatprep.subr.mxu0 0.0
  %2340 = vmatpush1.msra.mxu0 0.0
  %2341 = vmatprep.subr.mxu0 0.0
  %2342 = vmatpush1.msra.mxu0 0.0
  %2343 = vmatprep.subr.mxu0 0.0
  %2344 = vmatpush1.msra.mxu0 0.0
  %2345 = vmatprep.subr.mxu0 0.0
  %2346 = vmatpush1.msra.mxu0 0.0
  %2347 = vmatprep.subr.mxu0 0.0
  %2348 = vmatpush1.msra.mxu0 0.0
  %2349 = vmatprep.subr.mxu0 0.0
  %2350 = vmatpush1.msra.mxu0 0.0
  %2351 = vmatprep.subr.mxu0 0.0
  %2352 = vmatpush1.msra.mxu0 0.0
  %2353 = vmatprep.subr.mxu0 0.0
  %2354 = vmatpush1.msra.mxu0 0.0
  %2355 = vmatprep.mubr.f32.mxu0 0.0
  %2356 = vmatmul.mubr.f32.gmra.mrb[0].mxu0 %v2289
  %v2357 = vpop.f32.mrb[0].mxu0
  %v2358 = vadd.f32 0.0, %v2357
  %v2359 = vpop.f32.mrb[0].mxu0
  %2360 = vdwg.mxu0
  %v2361 = vadd.f32 %v2287, %v2358
  %s2362 = scalar_lea.vmem %s0, 30
  %v2363 = vld [vmem:[%s2362] sm:$0x3]
  %2364 = vmatprep.subr.mxu0 0.0
  %2365 = vmatpush1.msra.mxu0 %v23
  %2366 = vmatprep.subr.mxu0 0.0
  %2367 = vmatpush1.msra.mxu0 %v24
  %2368 = vmatprep.subr.mxu0 0.0
  %2369 = vmatpush1.msra.mxu0 %v25
  %2370 = vmatprep.subr.mxu0 0.0
  %2371 = vmatpush1.msra.mxu0 %v26
  %2372 = vmatprep.subr.mxu0 0.0
  %2373 = vmatpush1.msra.mxu0 0.0
  %2374 = vmatprep.subr.mxu0 0.0
  %2375 = vmatpush1.msra.mxu0 0.0
  %2376 = vmatprep.subr.mxu0 0.0
  %2377 = vmatpush1.msra.mxu0 0.0
  %2378 = vmatprep.subr.mxu0 0.0
  %2379 = vmatpush1.msra.mxu0 0.0
  %2380 = vmatprep.subr.mxu0 0.0
  %2381 = vmatpush1.msra.mxu0 0.0
  %2382 = vmatprep.subr.mxu0 0.0
  %2383 = vmatpush1.msra.mxu0 0.0
  %2384 = vmatprep.subr.mxu0 0.0
  %2385 = vmatpush1.msra.mxu0 0.0
  %2386 = vmatprep.subr.mxu0 0.0
  %2387 = vmatpush1.msra.mxu0 0.0
  %2388 = vmatprep.subr.mxu0 0.0
  %2389 = vmatpush1.msra.mxu0 0.0
  %2390 = vmatprep.subr.mxu0 0.0
  %2391 = vmatpush1.msra.mxu0 0.0
  %2392 = vmatprep.subr.mxu0 0.0
  %2393 = vmatpush1.msra.mxu0 0.0
  %2394 = vmatprep.subr.mxu0 0.0
  %2395 = vmatpush1.msra.mxu0 0.0
  %2396 = vmatprep.subr.mxu0 0.0
  %2397 = vmatpush1.msra.mxu0 0.0
  %2398 = vmatprep.subr.mxu0 0.0
  %2399 = vmatpush1.msra.mxu0 0.0
  %2400 = vmatprep.subr.mxu0 0.0
  %2401 = vmatpush1.msra.mxu0 0.0
  %2402 = vmatprep.subr.mxu0 0.0
  %2403 = vmatpush1.msra.mxu0 0.0
  %2404 = vmatprep.subr.mxu0 0.0
  %2405 = vmatpush1.msra.mxu0 0.0
  %2406 = vmatprep.subr.mxu0 0.0
  %2407 = vmatpush1.msra.mxu0 0.0
  %2408 = vmatprep.subr.mxu0 0.0
  %2409 = vmatpush1.msra.mxu0 0.0
  %2410 = vmatprep.subr.mxu0 0.0
  %2411 = vmatpush1.msra.mxu0 0.0
  %2412 = vmatprep.subr.mxu0 0.0
  %2413 = vmatpush1.msra.mxu0 0.0
  %2414 = vmatprep.subr.mxu0 0.0
  %2415 = vmatpush1.msra.mxu0 0.0
  %2416 = vmatprep.subr.mxu0 0.0
  %2417 = vmatpush1.msra.mxu0 0.0
  %2418 = vmatprep.subr.mxu0 0.0
  %2419 = vmatpush1.msra.mxu0 0.0
  %2420 = vmatprep.subr.mxu0 0.0
  %2421 = vmatpush1.msra.mxu0 0.0
  %2422 = vmatprep.subr.mxu0 0.0
  %2423 = vmatpush1.msra.mxu0 0.0
  %2424 = vmatprep.subr.mxu0 0.0
  %2425 = vmatpush1.msra.mxu0 0.0
  %2426 = vmatprep.subr.mxu0 0.0
  %2427 = vmatpush1.msra.mxu0 0.0
  %2428 = vmatprep.mubr.f32.mxu0 0.0
  %2429 = vmatmul.mubr.f32.gmra.mrb[0].mxu0 %v2289
  %v2430 = vpop.f32.mrb[0].mxu0
  %v2431 = vadd.f32 0.0, %v2430
  %v2432 = vpop.f32.mrb[0].mxu0
  %2433 = vdwg.mxu0
  %v2434 = vadd.f32 %v2363, %v2431
  %s2435 = scalar_lea.vmem %s0, 46
  %v2436 = vld [vmem:[%s2435] sm:$0x3]
  %2437 = vmatprep.subr.mxu0 0.0
  %2438 = vmatpush1.msra.mxu0 %v28
  %2439 = vmatprep.subr.mxu0 0.0
  %2440 = vmatpush1.msra.mxu0 %v29
  %2441 = vmatprep.subr.mxu0 0.0
  %2442 = vmatpush1.msra.mxu0 %v30
  %2443 = vmatprep.subr.mxu0 0.0
  %2444 = vmatpush1.msra.mxu0 %v31
  %2445 = vmatprep.subr.mxu0 0.0
  %2446 = vmatpush1.msra.mxu0 0.0
  %2447 = vmatprep.subr.mxu0 0.0
  %2448 = vmatpush1.msra.mxu0 0.0
  %2449 = vmatprep.subr.mxu0 0.0
  %2450 = vmatpush1.msra.mxu0 0.0
  %2451 = vmatprep.subr.mxu0 0.0
  %2452 = vmatpush1.msra.mxu0 0.0
  %2453 = vmatprep.subr.mxu0 0.0
  %2454 = vmatpush1.msra.mxu0 0.0
  %2455 = vmatprep.subr.mxu0 0.0
  %2456 = vmatpush1.msra.mxu0 0.0
  %2457 = vmatprep.subr.mxu0 0.0
  %2458 = vmatpush1.msra.mxu0 0.0
  %2459 = vmatprep.subr.mxu0 0.0
  %2460 = vmatpush1.msra.mxu0 0.0
  %2461 = vmatprep.subr.mxu0 0.0
  %2462 = vmatpush1.msra.mxu0 0.0
  %2463 = vmatprep.subr.mxu0 0.0
  %2464 = vmatpush1.msra.mxu0 0.0
  %2465 = vmatprep.subr.mxu0 0.0
  %2466 = vmatpush1.msra.mxu0 0.0
  %2467 = vmatprep.subr.mxu0 0.0
  %2468 = vmatpush1.msra.mxu0 0.0
  %2469 = vmatprep.subr.mxu0 0.0
  %2470 = vmatpush1.msra.mxu0 0.0
  %2471 = vmatprep.subr.mxu0 0.0
  %2472 = vmatpush1.msra.mxu0 0.0
  %2473 = vmatprep.subr.mxu0 0.0
  %2474 = vmatpush1.msra.mxu0 0.0
  %2475 = vmatprep.subr.mxu0 0.0
  %2476 = vmatpush1.msra.mxu0 0.0
  %2477 = vmatprep.subr.mxu0 0.0
  %2478 = vmatpush1.msra.mxu0 0.0
  %2479 = vmatprep.subr.mxu0 0.0
  %2480 = vmatpush1.msra.mxu0 0.0
  %2481 = vmatprep.subr.mxu0 0.0
  %2482 = vmatpush1.msra.mxu0 0.0
  %2483 = vmatprep.subr.mxu0 0.0
  %2484 = vmatpush1.msra.mxu0 0.0
  %2485 = vmatprep.subr.mxu0 0.0
  %2486 = vmatpush1.msra.mxu0 0.0
  %2487 = vmatprep.subr.mxu0 0.0
  %2488 = vmatpush1.msra.mxu0 0.0
  %2489 = vmatprep.subr.mxu0 0.0
  %2490 = vmatpush1.msra.mxu0 0.0
  %2491 = vmatprep.subr.mxu0 0.0
  %2492 = vmatpush1.msra.mxu0 0.0
  %2493 = vmatprep.subr.mxu0 0.0
  %2494 = vmatpush1.msra.mxu0 0.0
  %2495 = vmatprep.subr.mxu0 0.0
  %2496 = vmatpush1.msra.mxu0 0.0
  %2497 = vmatprep.subr.mxu0 0.0
  %2498 = vmatpush1.msra.mxu0 0.0
  %2499 = vmatprep.subr.mxu0 0.0
  %2500 = vmatpush1.msra.mxu0 0.0
  %2501 = vmatprep.mubr.f32.mxu0 0.0
  %2502 = vmatmul.mubr.f32.gmra.mrb[0].mxu0 %v2289
  %v2503 = vpop.f32.mrb[0].mxu0
  %v2504 = vadd.f32 0.0, %v2503
  %v2505 = vpop.f32.mrb[0].mxu0
  %2506 = vdwg.mxu0
  %v2507 = vadd.f32 %v2436, %v2504
  %s2508 = scalar_lea.vmem %s0, 62
  %v2509 = vld [vmem:[%s2508] sm:$0x3]
  %2510 = vmatprep.subr.mxu0 0.0
  %2511 = vmatpush1.msra.mxu0 %v33
  %2512 = vmatprep.subr.mxu0 0.0
  %2513 = vmatpush1.msra.mxu0 %v34
  %2514 = vmatprep.subr.mxu0 0.0
  %2515 = vmatpush1.msra.mxu0 %v35
  %2516 = vmatprep.subr.mxu0 0.0
  %2517 = vmatpush1.msra.mxu0 %v36
  %2518 = vmatprep.subr.mxu0 0.0
  %2519 = vmatpush1.msra.mxu0 0.0
  %2520 = vmatprep.subr.mxu0 0.0
  %2521 = vmatpush1.msra.mxu0 0.0
  %2522 = vmatprep.subr.mxu0 0.0
  %2523 = vmatpush1.msra.mxu0 0.0
  %2524 = vmatprep.subr.mxu0 0.0
  %2525 = vmatpush1.msra.mxu0 0.0
  %2526 = vmatprep.subr.mxu0 0.0
  %2527 = vmatpush1.msra.mxu0 0.0
  %2528 = vmatprep.subr.mxu0 0.0
  %2529 = vmatpush1.msra.mxu0 0.0
  %2530 = vmatprep.subr.mxu0 0.0
  %2531 = vmatpush1.msra.mxu0 0.0
  %2532 = vmatprep.subr.mxu0 0.0
  %2533 = vmatpush1.msra.mxu0 0.0
  %2534 = vmatprep.subr.mxu0 0.0
  %2535 = vmatpush1.msra.mxu0 0.0
  %2536 = vmatprep.subr.mxu0 0.0
  %2537 = vmatpush1.msra.mxu0 0.0
  %2538 = vmatprep.subr.mxu0 0.0
  %2539 = vmatpush1.msra.mxu0 0.0
  %2540 = vmatprep.subr.mxu0 0.0
  %2541 = vmatpush1.msra.mxu0 0.0
  %2542 = vmatprep.subr.mxu0 0.0
  %2543 = vmatpush1.msra.mxu0 0.0
  %2544 = vmatprep.subr.mxu0 0.0
  %2545 = vmatpush1.msra.mxu0 0.0
  %2546 = vmatprep.subr.mxu0 0.0
  %2547 = vmatpush1.msra.mxu0 0.0
  %2548 = vmatprep.subr.mxu0 0.0
  %2549 = vmatpush1.msra.mxu0 0.0
  %2550 = vmatprep.subr.mxu0 0.0
  %2551 = vmatpush1.msra.mxu0 0.0
  %2552 = vmatprep.subr.mxu0 0.0
  %2553 = vmatpush1.msra.mxu0 0.0
  %2554 = vmatprep.subr.mxu0 0.0
  %2555 = vmatpush1.msra.mxu0 0.0
  %2556 = vmatprep.subr.mxu0 0.0
  %2557 = vmatpush1.msra.mxu0 0.0
  %2558 = vmatprep.subr.mxu0 0.0
  %2559 = vmatpush1.msra.mxu0 0.0
  %2560 = vmatprep.subr.mxu0 0.0
  %2561 = vmatpush1.msra.mxu0 0.0
  %2562 = vmatprep.subr.mxu0 0.0
  %2563 = vmatpush1.msra.mxu0 0.0
  %2564 = vmatprep.subr.mxu0 0.0
  %2565 = vmatpush1.msra.mxu0 0.0
  %2566 = vmatprep.subr.mxu0 0.0
  %2567 = vmatpush1.msra.mxu0 0.0
  %2568 = vmatprep.subr.mxu0 0.0
  %2569 = vmatpush1.msra.mxu0 0.0
  %2570 = vmatprep.subr.mxu0 0.0
  %2571 = vmatpush1.msra.mxu0 0.0
  %2572 = vmatprep.subr.mxu0 0.0
  %2573 = vmatpush1.msra.mxu0 0.0
  %2574 = vmatprep.mubr.f32.mxu0 0.0
  %2575 = vmatmul.mubr.f32.gmra.mrb[0].mxu0 %v2289
  %v2576 = vpop.f32.mrb[0].mxu0
  %v2577 = vadd.f32 0.0, %v2576
  %v2578 = vpop.f32.mrb[0].mxu0
  %2579 = vdwg.mxu0
  %v2580 = vadd.f32 %v2509, %v2577
  %v2581 = vxor.u32 %v2361, 2147483648
  %v2582 = vmul.f32 %v2581, 1.442695
  %v2583 = vpow.pop %v2582
  %v2584 = vadd.f32 %v2583, 1.0
  %v2585 = vrcp.pop %v2584
  %v2586 = vmul.f32 1.0, %v2585
  %v2587 = vxor.u32 %v2434, 2147483648
  %v2588 = vmul.f32 %v2587, 1.442695
  %v2589 = vpow.pop %v2588
  %v2590 = vadd.f32 %v2589, 1.0
  %v2591 = vrcp.pop %v2590
  %v2592 = vmul.f32 1.0, %v2591
  %v2593 = vtanh.pop %v2507
  %v2594 = vxor.u32 %v2580, 2147483648
  %v2595 = vmul.f32 %v2594, 1.442695
  %v2596 = vpow.pop %v2595
  %v2597 = vadd.f32 %v2596, 1.0
  %v2598 = vrcp.pop %v2597
  %v2599 = vmul.f32 1.0, %v2598
  %v2600 = vmul.f32 %v2592, %v2281
  %v2601 = vmul.f32 %v2586, %v2593
  %v2602 = vadd.f32 %v2600, %v2601
  %v2603 = vtanh.pop %v2602
  %v2604 = vmul.f32 %v2599, %v2603
  %s2605 = scalar_lea.vmem %s2, 14
  %2606 = vst.msk [vmem:[%s2605] sm:$0x3] %vm358, %v2604
  %2607 = vst.msk [vmem:[#allocation2] sm:$0x3] %vm358, %v2604
  %2608 = vst.msk [vmem:[#allocation3] sm:$0x3] %vm358, %v2602
  // Predicated region
  $region14: #{custom_sentence_encoder_forward.5} parent=0 // pred_check
    _
  $region15: #{custom_sentence_encoder_forward.5} parent=0 // pred_check_branch
    %2610 = sbr.rel (0) target = $region17
  $region16: #{custom_sentence_encoder_forward.5} parent=0 // pred_region
    _
  $region17: #{custom_sentence_encoder_forward.5} parent=0 // pred_fallthru
    _
  // Predicated region
  $region18: #{custom_sentence_encoder_forward.5} parent=0 // pred_check
    _
  $region19: #{custom_sentence_encoder_forward.5} parent=0 // pred_check_branch
    %2612 = sbr.rel (0) target = $region21
  $region20: #{custom_sentence_encoder_forward.5} parent=0 // pred_region
    _
  $region21: #{custom_sentence_encoder_forward.5} parent=0 // pred_fallthru
    _

</llo_original>
